<compile_context>
chip_gen: v6e
topology: v6e:2x2x1
jax: 0.10.0
libtpu: 0.0.40
codegen_flags: <defaults>
</compile_context>

<pallas_src>
import jax
import jax.numpy as jnp
from jax.experimental import pallas as pl
from jax.experimental.pallas import tpu as pltpu

# ------------------------- model config (small, synthetic) -------------------
B = 2           # batch
S = 8           # sequence length
H = 32          # hidden size
NH = 2          # attention heads
DH = H // NH    # head dim
FF = 64         # intermediate (FFN) size
NLAYERS = 2
VOCAB = 64
MAX_POS = S + 2         # RoBERTa reserves positions 0,1 (padding_idx=1)
TYPE_VOCAB = 1
NUM_LABELS = 20         # emoji classes
LN_EPS = 1e-5

VMEM_SPEC = pl.BlockSpec(memory_space=pltpu.MemorySpace.VMEM)


# ------------------------------ in-kernel helpers -----------------------------
def _layernorm(x, g, b):
    mu = jnp.mean(x, axis=-1, keepdims=True)
    var = jnp.mean((x - mu) ** 2, axis=-1, keepdims=True)
    return (x - mu) * jax.lax.rsqrt(var + LN_EPS) * g + b


def _onehot_matmul(idx2d, table, depth):
    """Embedding lookup as a tiny one-hot matmul. idx2d:[M,1] table:[depth,H]."""
    iota = jax.lax.broadcasted_iota(jnp.int32, (idx2d.shape[0], depth), 1)
    onehot = (idx2d == iota).astype(jnp.float32)
    return jnp.dot(onehot, table, preferred_element_type=jnp.float32)


# ------------------------------ fused forward kernel --------------------------
def _fused_forward_kernel(*refs):
    out_ref = refs[-1]
    it = iter(refs[:-1])

    ids2d = next(it)[...]        # [B*S, 1] int32
    pos2d = next(it)[...]        # [B*S, 1] int32
    tt2d = next(it)[...]         # [B*S, 1] int32   (unused when TYPE_VOCAB == 1)
    mask_f = next(it)[...]       # [B, S]  float32

    word_emb = next(it)[...]     # [VOCAB, H]
    pos_emb = next(it)[...]      # [MAX_POS, H]
    type_emb = next(it)[...]     # [TYPE_VOCAB, H]
    emb_ln_g = next(it)[...]     # [1, H]
    emb_ln_b = next(it)[...]     # [1, H]

    layers = []
    for _ in range(NLAYERS):
        layers.append(dict(
            wqkv=next(it)[...], bqkv=next(it)[...],
            wo=next(it)[...], bo=next(it)[...],
            ln1_g=next(it)[...], ln1_b=next(it)[...],
            w1=next(it)[...], b1=next(it)[...],
            w2=next(it)[...], b2=next(it)[...],
            ln2_g=next(it)[...], ln2_b=next(it)[...],
        ))

    cls_dense_w = next(it)[...]; cls_dense_b = next(it)[...]
    cls_out_w = next(it)[...]; cls_out_b = next(it)[...]
    l2_w = next(it)[...]; l2_b = next(it)[...]
    l4_w = next(it)[...]; l4_b = next(it)[...]

    # --- embeddings: gathers as one-hot matmuls on VMEM-resident tables ---
    we = _onehot_matmul(ids2d, word_emb, VOCAB)
    pe = _onehot_matmul(pos2d, pos_emb, MAX_POS)
    if TYPE_VOCAB > 1:
        te = _onehot_matmul(tt2d, type_emb, TYPE_VOCAB)
    else:
        # single token-type row; ids clamp to 0 (matches gather-clamp semantics)
        te = type_emb                                   # [1, H] broadcasts in sum
    x = _layernorm(we + pe + te, emb_ln_g, emb_ln_b)    # [B*S, H]

    bias = (1.0 - mask_f) * -1e9                        # [B, S] additive mask bias
    scale = 1.0 / (DH ** 0.5)

    # --- transformer encoder layers (fully unrolled, all values in VMEM/vregs) ---
    for lp in layers:
        # fused Q|K|V projection: one [B*S, 3H] matmul, sliced in-register
        qkv = jnp.dot(x, lp["wqkv"], preferred_element_type=jnp.float32) + lp["bqkv"]
        q = qkv[:, 0 * H:1 * H]
        k = qkv[:, 1 * H:2 * H]
        v = qkv[:, 2 * H:3 * H]

        # attention: explicit 2-D matmuls per (batch, head); head split by lane slices
        ctx_rows = []
        for b in range(B):
            bias_b = bias[b:b + 1, :]                   # [1, S]
            head_ctxs = []
            for h in range(NH):
                r0, r1 = b * S, (b + 1) * S
                c0, c1 = h * DH, (h + 1) * DH
                q_bh = q[r0:r1, c0:c1]                  # [S, DH]
                k_bh = k[r0:r1, c0:c1]
                v_bh = v[r0:r1, c0:c1]
                s = jnp.dot(q_bh, k_bh.T,
                            preferred_element_type=jnp.float32) * scale + bias_b
                m = jnp.max(s, axis=-1, keepdims=True)
                p = jnp.exp(s - m)
                l = jnp.sum(p, axis=-1, keepdims=True)
                p = p * pl.reciprocal(l, approx=True)   # EUP slot, free-ish
                head_ctxs.append(
                    jnp.dot(p, v_bh, preferred_element_type=jnp.float32))
            ctx_rows.append(jnp.concatenate(head_ctxs, axis=1))   # [S, H]
        ctx = jnp.concatenate(ctx_rows, axis=0)                    # [B*S, H]

        attn_out = jnp.dot(ctx, lp["wo"],
                           preferred_element_type=jnp.float32) + lp["bo"]
        x = _layernorm(attn_out + x, lp["ln1_g"], lp["ln1_b"])

        h1 = jnp.dot(x, lp["w1"], preferred_element_type=jnp.float32) + lp["b1"]
        # TODO(synk): HF RoBERTa uses exact erf-GELU; tanh approximation used here.
        h1 = jax.nn.gelu(h1, approximate=True)
        h2 = jnp.dot(h1, lp["w2"], preferred_element_type=jnp.float32) + lp["b2"]
        x = _layernorm(h2 + x, lp["ln2_g"], lp["ln2_b"])

    # --- RoBERTa classification head + wrapper MLP (all in the same kernel) ---
    pooled = jnp.concatenate([x[b * S:b * S + 1, :] for b in range(B)], axis=0)  # <s> token
    hcls = jnp.tanh(jnp.dot(pooled, cls_dense_w,
                            preferred_element_type=jnp.float32) + cls_dense_b)
    logits = jnp.dot(hcls, cls_out_w,
                     preferred_element_type=jnp.float32) + cls_out_b            # [B, 20]
    y = jnp.maximum(jnp.dot(logits, l2_w,
                            preferred_element_type=jnp.float32) + l2_b, 0.0)    # Linear+ReLU
    z = jnp.dot(y, l4_w, preferred_element_type=jnp.float32) + l4_b             # Linear(20,1)
    out_ref[...] = jax.nn.sigmoid(z)                                            # [B, 1]


# ------------------------------ parameter init --------------------------------
def init_params(key):
    def normal(k, shape, scale=0.02):
        return (scale * jax.random.normal(k, shape)).astype(jnp.float32)

    keys = iter(jax.random.split(key, 256))
    p = {
        "word_emb": normal(next(keys), (VOCAB, H)),
        "pos_emb": normal(next(keys), (MAX_POS, H)),
        "type_emb": normal(next(keys), (TYPE_VOCAB, H)),
        "emb_ln_g": jnp.ones((1, H), jnp.float32),
        "emb_ln_b": jnp.zeros((1, H), jnp.float32),
        "layers": [],
        # RobertaClassificationHead
        "cls_dense_w": normal(next(keys), (H, H)),
        "cls_dense_b": jnp.zeros((1, H), jnp.float32),
        "cls_out_w": normal(next(keys), (H, NUM_LABELS)),
        "cls_out_b": jnp.zeros((1, NUM_LABELS), jnp.float32),
        # wrapper MLP: l2 / l4
        "l2_w": normal(next(keys), (NUM_LABELS, NUM_LABELS), scale=0.1),
        "l2_b": normal(next(keys), (1, NUM_LABELS), scale=0.1),
        "l4_w": normal(next(keys), (NUM_LABELS, 1), scale=0.1),
        "l4_b": normal(next(keys), (1, 1), scale=0.1),
    }
    for _ in range(NLAYERS):
        lp = {
            # fused Q|K|V projection weight: [H, 3H], bias [1, 3H]
            "wqkv": normal(next(keys), (H, 3 * H)),
            "bqkv": jnp.zeros((1, 3 * H), jnp.float32),
            "wo": normal(next(keys), (H, H)), "bo": jnp.zeros((1, H), jnp.float32),
            "ln1_g": jnp.ones((1, H), jnp.float32),
            "ln1_b": jnp.zeros((1, H), jnp.float32),
            "w1": normal(next(keys), (H, FF)), "b1": jnp.zeros((1, FF), jnp.float32),
            "w2": normal(next(keys), (FF, H)), "b2": jnp.zeros((1, H), jnp.float32),
            "ln2_g": jnp.ones((1, H), jnp.float32),
            "ln2_b": jnp.zeros((1, H), jnp.float32),
        }
        p["layers"].append(lp)
    return p


# ------------------------------ forward pass (wrapper) -------------------------
def roberta_emoji_forward(params, ids, mask, token_type_ids):
    mask_f = mask.astype(jnp.float32)
    # RoBERTa position ids: padding_idx=1, positions = cumsum(mask)*mask + 1
    pos_ids = (jnp.cumsum(mask, axis=1) * mask + 1).astype(jnp.int32)

    args = [
        ids.reshape(B * S, 1).astype(jnp.int32),
        pos_ids.reshape(B * S, 1),
        token_type_ids.reshape(B * S, 1).astype(jnp.int32),
        mask_f,
        params["word_emb"], params["pos_emb"], params["type_emb"],
        params["emb_ln_g"], params["emb_ln_b"],
    ]
    for lp in params["layers"]:
        args += [lp["wqkv"], lp["bqkv"], lp["wo"], lp["bo"],
                 lp["ln1_g"], lp["ln1_b"], lp["w1"], lp["b1"],
                 lp["w2"], lp["b2"], lp["ln2_g"], lp["ln2_b"]]
    args += [params["cls_dense_w"], params["cls_dense_b"],
             params["cls_out_w"], params["cls_out_b"],
             params["l2_w"], params["l2_b"], params["l4_w"], params["l4_b"]]

    return pl.pallas_call(
        _fused_forward_kernel,
        out_shape=jax.ShapeDtypeStruct((B, 1), jnp.float32),
        in_specs=[VMEM_SPEC] * len(args),
        out_specs=VMEM_SPEC,
    )(*args)


# ----------------------------------- main ---------------------------------------
if __name__ == "__main__":
    key = jax.random.PRNGKey(0)
    k_param, k_ids = jax.random.split(key)

    params = init_params(k_param)

    ids = jax.random.randint(k_ids, (B, S), 0, VOCAB, dtype=jnp.int32)
    mask = jnp.ones((B, S), dtype=jnp.int32)
    token_type_ids = jnp.zeros((B, S), dtype=jnp.int32)

    out = roberta_emoji_forward(params, ids, mask, token_type_ids)
    out = jax.block_until_ready(out)

    assert out.shape == (B, 1)
    assert bool(jnp.all((out >= 0.0) & (out <= 1.0)))
    print("KERNEL_OK")
</pallas_src>

<mosaic_0001>
module attributes {stable_mosaic.version = 11 : i64} {
  func.func @_fused_forward_kernel(%arg0: memref<16x1xi32, #tpu.memory_space<vmem>>, %arg1: memref<16x1xi32, #tpu.memory_space<vmem>>, %arg2: memref<16x1xi32, #tpu.memory_space<vmem>>, %arg3: memref<2x8xf32, #tpu.memory_space<vmem>>, %arg4: memref<64x32xf32, #tpu.memory_space<vmem>>, %arg5: memref<10x32xf32, #tpu.memory_space<vmem>>, %arg6: memref<1x32xf32, #tpu.memory_space<vmem>>, %arg7: memref<1x32xf32, #tpu.memory_space<vmem>>, %arg8: memref<1x32xf32, #tpu.memory_space<vmem>>, %arg9: memref<32x96xf32, #tpu.memory_space<vmem>>, %arg10: memref<1x96xf32, #tpu.memory_space<vmem>>, %arg11: memref<32x32xf32, #tpu.memory_space<vmem>>, %arg12: memref<1x32xf32, #tpu.memory_space<vmem>>, %arg13: memref<1x32xf32, #tpu.memory_space<vmem>>, %arg14: memref<1x32xf32, #tpu.memory_space<vmem>>, %arg15: memref<32x64xf32, #tpu.memory_space<vmem>>, %arg16: memref<1x64xf32, #tpu.memory_space<vmem>>, %arg17: memref<64x32xf32, #tpu.memory_space<vmem>>, %arg18: memref<1x32xf32, #tpu.memory_space<vmem>>, %arg19: memref<1x32xf32, #tpu.memory_space<vmem>>, %arg20: memref<1x32xf32, #tpu.memory_space<vmem>>, %arg21: memref<32x96xf32, #tpu.memory_space<vmem>>, %arg22: memref<1x96xf32, #tpu.memory_space<vmem>>, %arg23: memref<32x32xf32, #tpu.memory_space<vmem>>, %arg24: memref<1x32xf32, #tpu.memory_space<vmem>>, %arg25: memref<1x32xf32, #tpu.memory_space<vmem>>, %arg26: memref<1x32xf32, #tpu.memory_space<vmem>>, %arg27: memref<32x64xf32, #tpu.memory_space<vmem>>, %arg28: memref<1x64xf32, #tpu.memory_space<vmem>>, %arg29: memref<64x32xf32, #tpu.memory_space<vmem>>, %arg30: memref<1x32xf32, #tpu.memory_space<vmem>>, %arg31: memref<1x32xf32, #tpu.memory_space<vmem>>, %arg32: memref<1x32xf32, #tpu.memory_space<vmem>>, %arg33: memref<32x32xf32, #tpu.memory_space<vmem>>, %arg34: memref<1x32xf32, #tpu.memory_space<vmem>>, %arg35: memref<32x20xf32, #tpu.memory_space<vmem>>, %arg36: memref<1x20xf32, #tpu.memory_space<vmem>>, %arg37: memref<20x20xf32, #tpu.memory_space<vmem>>, %arg38: memref<1x20xf32, #tpu.memory_space<vmem>>, %arg39: memref<20x1xf32, #tpu.memory_space<vmem>>, %arg40: memref<1x1xf32, #tpu.memory_space<vmem>>, %arg41: memref<2x1xf32, #tpu.memory_space<vmem>>) attributes {dimension_semantics = [], scalar_prefetch = 0 : i64, scratch_operands = 0 : i64, tpu.core_type = #tpu.core_type<tc>} {
    %c0 = arith.constant 0 : index
    %c0_0 = arith.constant 0 : index
    %0 = vector.load %arg0[%c0, %c0_0] : memref<16x1xi32, #tpu.memory_space<vmem>>, vector<16x1xi32>
    %c0_1 = arith.constant 0 : index
    %c0_2 = arith.constant 0 : index
    %1 = vector.load %arg1[%c0_1, %c0_2] : memref<16x1xi32, #tpu.memory_space<vmem>>, vector<16x1xi32>
    %c0_3 = arith.constant 0 : index
    %c0_4 = arith.constant 0 : index
    %2 = vector.load %arg3[%c0_3, %c0_4] : memref<2x8xf32, #tpu.memory_space<vmem>>, vector<2x8xf32>
    %c0_5 = arith.constant 0 : index
    %c0_6 = arith.constant 0 : index
    %3 = vector.load %arg4[%c0_5, %c0_6] : memref<64x32xf32, #tpu.memory_space<vmem>>, vector<64x32xf32>
    %c0_7 = arith.constant 0 : index
    %c0_8 = arith.constant 0 : index
    %4 = vector.load %arg5[%c0_7, %c0_8] : memref<10x32xf32, #tpu.memory_space<vmem>>, vector<10x32xf32>
    %c0_9 = arith.constant 0 : index
    %c0_10 = arith.constant 0 : index
    %5 = vector.load %arg6[%c0_9, %c0_10] : memref<1x32xf32, #tpu.memory_space<vmem>>, vector<1x32xf32>
    %c0_11 = arith.constant 0 : index
    %c0_12 = arith.constant 0 : index
    %6 = vector.load %arg7[%c0_11, %c0_12] : memref<1x32xf32, #tpu.memory_space<vmem>>, vector<1x32xf32>
    %c0_13 = arith.constant 0 : index
    %c0_14 = arith.constant 0 : index
    %7 = vector.load %arg8[%c0_13, %c0_14] : memref<1x32xf32, #tpu.memory_space<vmem>>, vector<1x32xf32>
    %c0_15 = arith.constant 0 : index
    %c0_16 = arith.constant 0 : index
    %8 = vector.load %arg9[%c0_15, %c0_16] : memref<32x96xf32, #tpu.memory_space<vmem>>, vector<32x96xf32>
    %c0_17 = arith.constant 0 : index
    %c0_18 = arith.constant 0 : index
    %9 = vector.load %arg10[%c0_17, %c0_18] : memref<1x96xf32, #tpu.memory_space<vmem>>, vector<1x96xf32>
    %c0_19 = arith.constant 0 : index
    %c0_20 = arith.constant 0 : index
    %10 = vector.load %arg11[%c0_19, %c0_20] : memref<32x32xf32, #tpu.memory_space<vmem>>, vector<32x32xf32>
    %c0_21 = arith.constant 0 : index
    %c0_22 = arith.constant 0 : index
    %11 = vector.load %arg12[%c0_21, %c0_22] : memref<1x32xf32, #tpu.memory_space<vmem>>, vector<1x32xf32>
    %c0_23 = arith.constant 0 : index
    %c0_24 = arith.constant 0 : index
    %12 = vector.load %arg13[%c0_23, %c0_24] : memref<1x32xf32, #tpu.memory_space<vmem>>, vector<1x32xf32>
    %c0_25 = arith.constant 0 : index
    %c0_26 = arith.constant 0 : index
    %13 = vector.load %arg14[%c0_25, %c0_26] : memref<1x32xf32, #tpu.memory_space<vmem>>, vector<1x32xf32>
    %c0_27 = arith.constant 0 : index
    %c0_28 = arith.constant 0 : index
    %14 = vector.load %arg15[%c0_27, %c0_28] : memref<32x64xf32, #tpu.memory_space<vmem>>, vector<32x64xf32>
    %c0_29 = arith.constant 0 : index
    %c0_30 = arith.constant 0 : index
    %15 = vector.load %arg16[%c0_29, %c0_30] : memref<1x64xf32, #tpu.memory_space<vmem>>, vector<1x64xf32>
    %c0_31 = arith.constant 0 : index
    %c0_32 = arith.constant 0 : index
    %16 = vector.load %arg17[%c0_31, %c0_32] : memref<64x32xf32, #tpu.memory_space<vmem>>, vector<64x32xf32>
    %c0_33 = arith.constant 0 : index
    %c0_34 = arith.constant 0 : index
    %17 = vector.load %arg18[%c0_33, %c0_34] : memref<1x32xf32, #tpu.memory_space<vmem>>, vector<1x32xf32>
    %c0_35 = arith.constant 0 : index
    %c0_36 = arith.constant 0 : index
    %18 = vector.load %arg19[%c0_35, %c0_36] : memref<1x32xf32, #tpu.memory_space<vmem>>, vector<1x32xf32>
    %c0_37 = arith.constant 0 : index
    %c0_38 = arith.constant 0 : index
    %19 = vector.load %arg20[%c0_37, %c0_38] : memref<1x32xf32, #tpu.memory_space<vmem>>, vector<1x32xf32>
    %c0_39 = arith.constant 0 : index
    %c0_40 = arith.constant 0 : index
    %20 = vector.load %arg21[%c0_39, %c0_40] : memref<32x96xf32, #tpu.memory_space<vmem>>, vector<32x96xf32>
    %c0_41 = arith.constant 0 : index
    %c0_42 = arith.constant 0 : index
    %21 = vector.load %arg22[%c0_41, %c0_42] : memref<1x96xf32, #tpu.memory_space<vmem>>, vector<1x96xf32>
    %c0_43 = arith.constant 0 : index
    %c0_44 = arith.constant 0 : index
    %22 = vector.load %arg23[%c0_43, %c0_44] : memref<32x32xf32, #tpu.memory_space<vmem>>, vector<32x32xf32>
    %c0_45 = arith.constant 0 : index
    %c0_46 = arith.constant 0 : index
    %23 = vector.load %arg24[%c0_45, %c0_46] : memref<1x32xf32, #tpu.memory_space<vmem>>, vector<1x32xf32>
    %c0_47 = arith.constant 0 : index
    %c0_48 = arith.constant 0 : index
    %24 = vector.load %arg25[%c0_47, %c0_48] : memref<1x32xf32, #tpu.memory_space<vmem>>, vector<1x32xf32>
    %c0_49 = arith.constant 0 : index
    %c0_50 = arith.constant 0 : index
    %25 = vector.load %arg26[%c0_49, %c0_50] : memref<1x32xf32, #tpu.memory_space<vmem>>, vector<1x32xf32>
    %c0_51 = arith.constant 0 : index
    %c0_52 = arith.constant 0 : index
    %26 = vector.load %arg27[%c0_51, %c0_52] : memref<32x64xf32, #tpu.memory_space<vmem>>, vector<32x64xf32>
    %c0_53 = arith.constant 0 : index
    %c0_54 = arith.constant 0 : index
    %27 = vector.load %arg28[%c0_53, %c0_54] : memref<1x64xf32, #tpu.memory_space<vmem>>, vector<1x64xf32>
    %c0_55 = arith.constant 0 : index
    %c0_56 = arith.constant 0 : index
    %28 = vector.load %arg29[%c0_55, %c0_56] : memref<64x32xf32, #tpu.memory_space<vmem>>, vector<64x32xf32>
    %c0_57 = arith.constant 0 : index
    %c0_58 = arith.constant 0 : index
    %29 = vector.load %arg30[%c0_57, %c0_58] : memref<1x32xf32, #tpu.memory_space<vmem>>, vector<1x32xf32>
    %c0_59 = arith.constant 0 : index
    %c0_60 = arith.constant 0 : index
    %30 = vector.load %arg31[%c0_59, %c0_60] : memref<1x32xf32, #tpu.memory_space<vmem>>, vector<1x32xf32>
    %c0_61 = arith.constant 0 : index
    %c0_62 = arith.constant 0 : index
    %31 = vector.load %arg32[%c0_61, %c0_62] : memref<1x32xf32, #tpu.memory_space<vmem>>, vector<1x32xf32>
    %c0_63 = arith.constant 0 : index
    %c0_64 = arith.constant 0 : index
    %32 = vector.load %arg33[%c0_63, %c0_64] : memref<32x32xf32, #tpu.memory_space<vmem>>, vector<32x32xf32>
    %c0_65 = arith.constant 0 : index
    %c0_66 = arith.constant 0 : index
    %33 = vector.load %arg34[%c0_65, %c0_66] : memref<1x32xf32, #tpu.memory_space<vmem>>, vector<1x32xf32>
    %c0_67 = arith.constant 0 : index
    %c0_68 = arith.constant 0 : index
    %34 = vector.load %arg35[%c0_67, %c0_68] : memref<32x20xf32, #tpu.memory_space<vmem>>, vector<32x20xf32>
    %c0_69 = arith.constant 0 : index
    %c0_70 = arith.constant 0 : index
    %35 = vector.load %arg36[%c0_69, %c0_70] : memref<1x20xf32, #tpu.memory_space<vmem>>, vector<1x20xf32>
    %c0_71 = arith.constant 0 : index
    %c0_72 = arith.constant 0 : index
    %36 = vector.load %arg37[%c0_71, %c0_72] : memref<20x20xf32, #tpu.memory_space<vmem>>, vector<20x20xf32>
    %c0_73 = arith.constant 0 : index
    %c0_74 = arith.constant 0 : index
    %37 = vector.load %arg38[%c0_73, %c0_74] : memref<1x20xf32, #tpu.memory_space<vmem>>, vector<1x20xf32>
    %c0_75 = arith.constant 0 : index
    %c0_76 = arith.constant 0 : index
    %38 = vector.load %arg39[%c0_75, %c0_76] : memref<20x1xf32, #tpu.memory_space<vmem>>, vector<20x1xf32>
    %c0_77 = arith.constant 0 : index
    %c0_78 = arith.constant 0 : index
    %39 = vector.load %arg40[%c0_77, %c0_78] : memref<1x1xf32, #tpu.memory_space<vmem>>, vector<1x1xf32>
    %40 = tpu.iota {dimensions = array<i32: 1>} : vector<16x64xi32>
    %41 = vector.broadcast %0 : vector<16x1xi32> to vector<16x64xi32>
    %42 = arith.cmpi eq, %41, %40 : vector<16x64xi32>
    %43 = arith.extui %42 : vector<16x64xi1> to vector<16x64xi32>
    %44 = arith.sitofp %43 : vector<16x64xi32> to vector<16x64xf32>
    %cst = arith.constant dense<0.000000e+00> : vector<16x32xf32>
    %45 = tpu.matmul %44, %3, %cst {dimension_numbers = #tpu.dot_dimension_numbers<[1], [0], [0], [1], [0, 0, 1, 1], [], []>} : vector<16x64xf32>, vector<64x32xf32>, vector<16x32xf32> -> vector<16x32xf32>
    %46 = tpu.iota {dimensions = array<i32: 1>} : vector<16x10xi32>
    %47 = vector.broadcast %1 : vector<16x1xi32> to vector<16x10xi32>
    %48 = arith.cmpi eq, %47, %46 : vector<16x10xi32>
    %49 = arith.extui %48 : vector<16x10xi1> to vector<16x10xi32>
    %50 = arith.sitofp %49 : vector<16x10xi32> to vector<16x10xf32>
    %cst_79 = arith.constant dense<0.000000e+00> : vector<16x32xf32>
    %51 = tpu.matmul %50, %4, %cst_79 {dimension_numbers = #tpu.dot_dimension_numbers<[1], [0], [0], [1], [0, 0, 1, 1], [], []>} : vector<16x10xf32>, vector<10x32xf32>, vector<16x32xf32> -> vector<16x32xf32>
    %52 = arith.addf %45, %51 : vector<16x32xf32>
    %53 = vector.broadcast %5 : vector<1x32xf32> to vector<16x32xf32>
    %54 = arith.addf %52, %53 : vector<16x32xf32>
    %cst_80 = arith.constant dense<0.000000e+00> : vector<16xf32>
    %55 = vector.multi_reduction <add>, %54, %cst_80 [1] : vector<16x32xf32> to vector<16xf32>
    %56 = vector.shape_cast %55 : vector<16xf32> to vector<16x1xf32>
    %cst_81 = arith.constant 3.200000e+01 : f32
    %57 = vector.broadcast %cst_81 : f32 to vector<16x1xf32>
    %58 = arith.divf %56, %57 : vector<16x1xf32>
    %59 = vector.broadcast %58 : vector<16x1xf32> to vector<16x32xf32>
    %60 = arith.subf %54, %59 : vector<16x32xf32>
    %61 = arith.mulf %60, %60 : vector<16x32xf32>
    %cst_82 = arith.constant dense<0.000000e+00> : vector<16xf32>
    %62 = vector.multi_reduction <add>, %61, %cst_82 [1] : vector<16x32xf32> to vector<16xf32>
    %63 = vector.shape_cast %62 : vector<16xf32> to vector<16x1xf32>
    %cst_83 = arith.constant 3.200000e+01 : f32
    %64 = vector.broadcast %cst_83 : f32 to vector<16x1xf32>
    %65 = arith.divf %63, %64 : vector<16x1xf32>
    %66 = vector.broadcast %58 : vector<16x1xf32> to vector<16x32xf32>
    %67 = arith.subf %54, %66 : vector<16x32xf32>
    %cst_84 = arith.constant 9.99999974E-6 : f32
    %68 = vector.broadcast %cst_84 : f32 to vector<16x1xf32>
    %69 = arith.addf %65, %68 : vector<16x1xf32>
    %70 = math.rsqrt %69 : vector<16x1xf32>
    %71 = vector.broadcast %70 : vector<16x1xf32> to vector<16x32xf32>
    %72 = arith.mulf %67, %71 : vector<16x32xf32>
    %73 = vector.broadcast %6 : vector<1x32xf32> to vector<16x32xf32>
    %74 = arith.mulf %72, %73 : vector<16x32xf32>
    %75 = vector.broadcast %7 : vector<1x32xf32> to vector<16x32xf32>
    %76 = arith.addf %74, %75 : vector<16x32xf32>
    %cst_85 = arith.constant 1.000000e+00 : f32
    %77 = vector.broadcast %cst_85 : f32 to vector<2x8xf32>
    %78 = arith.subf %77, %2 : vector<2x8xf32>
    %cst_86 = arith.constant -1.000000e+09 : f32
    %79 = vector.broadcast %cst_86 : f32 to vector<2x8xf32>
    %80 = arith.mulf %78, %79 : vector<2x8xf32>
    %cst_87 = arith.constant dense<0.000000e+00> : vector<16x96xf32>
    %81 = tpu.matmul %76, %8, %cst_87 {dimension_numbers = #tpu.dot_dimension_numbers<[1], [0], [0], [1], [0, 0, 1, 1], [], []>} : vector<16x32xf32>, vector<32x96xf32>, vector<16x96xf32> -> vector<16x96xf32>
    %82 = vector.broadcast %9 : vector<1x96xf32> to vector<16x96xf32>
    %83 = arith.addf %81, %82 : vector<16x96xf32>
    %84 = vector.extract_strided_slice %83 {offsets = [0, 0], sizes = [16, 32], strides = [1, 1]} : vector<16x96xf32> to vector<16x32xf32>
    %85 = vector.extract_strided_slice %83 {offsets = [0, 32], sizes = [16, 32], strides = [1, 1]} : vector<16x96xf32> to vector<16x32xf32>
    %86 = vector.extract_strided_slice %83 {offsets = [0, 64], sizes = [16, 32], strides = [1, 1]} : vector<16x96xf32> to vector<16x32xf32>
    %87 = vector.extract_strided_slice %80 {offsets = [0, 0], sizes = [1, 8], strides = [1, 1]} : vector<2x8xf32> to vector<1x8xf32>
    %88 = vector.extract_strided_slice %84 {offsets = [0, 0], sizes = [8, 16], strides = [1, 1]} : vector<16x32xf32> to vector<8x16xf32>
    %89 = vector.extract_strided_slice %85 {offsets = [0, 0], sizes = [8, 16], strides = [1, 1]} : vector<16x32xf32> to vector<8x16xf32>
    %90 = vector.extract_strided_slice %86 {offsets = [0, 0], sizes = [8, 16], strides = [1, 1]} : vector<16x32xf32> to vector<8x16xf32>
    %91 = tpu.transpose %89, [1, 0] : vector<8x16xf32> -> vector<16x8xf32>
    %cst_88 = arith.constant dense<0.000000e+00> : vector<8x8xf32>
    %92 = tpu.matmul %88, %91, %cst_88 {dimension_numbers = #tpu.dot_dimension_numbers<[1], [0], [0], [1], [0, 0, 1, 1], [], []>} : vector<8x16xf32>, vector<16x8xf32>, vector<8x8xf32> -> vector<8x8xf32>
    %cst_89 = arith.constant 2.500000e-01 : f32
    %93 = vector.broadcast %cst_89 : f32 to vector<8x8xf32>
    %94 = arith.mulf %92, %93 : vector<8x8xf32>
    %95 = vector.broadcast %87 : vector<1x8xf32> to vector<8x8xf32>
    %96 = arith.addf %94, %95 : vector<8x8xf32>
    %cst_90 = arith.constant dense<0xFF800000> : vector<8xf32>
    %97 = vector.multi_reduction <maximumf>, %96, %cst_90 [1] : vector<8x8xf32> to vector<8xf32>
    %98 = vector.shape_cast %97 : vector<8xf32> to vector<8x1xf32>
    %99 = vector.broadcast %98 : vector<8x1xf32> to vector<8x8xf32>
    %100 = arith.subf %96, %99 : vector<8x8xf32>
    %101 = math.exp %100 : vector<8x8xf32>
    %cst_91 = arith.constant dense<0.000000e+00> : vector<8xf32>
    %102 = vector.multi_reduction <add>, %101, %cst_91 [1] : vector<8x8xf32> to vector<8xf32>
    %103 = vector.shape_cast %102 : vector<8xf32> to vector<8x1xf32>
    %104 = tpu.reciprocal %103 {approx = true} : vector<8x1xf32> -> vector<8x1xf32>
    %105 = vector.broadcast %104 : vector<8x1xf32> to vector<8x8xf32>
    %106 = arith.mulf %101, %105 : vector<8x8xf32>
    %cst_92 = arith.constant dense<0.000000e+00> : vector<8x16xf32>
    %107 = tpu.matmul %106, %90, %cst_92 {dimension_numbers = #tpu.dot_dimension_numbers<[1], [0], [0], [1], [0, 0, 1, 1], [], []>} : vector<8x8xf32>, vector<8x16xf32>, vector<8x16xf32> -> vector<8x16xf32>
    %108 = vector.extract_strided_slice %84 {offsets = [0, 16], sizes = [8, 16], strides = [1, 1]} : vector<16x32xf32> to vector<8x16xf32>
    %109 = vector.extract_strided_slice %85 {offsets = [0, 16], sizes = [8, 16], strides = [1, 1]} : vector<16x32xf32> to vector<8x16xf32>
    %110 = vector.extract_strided_slice %86 {offsets = [0, 16], sizes = [8, 16], strides = [1, 1]} : vector<16x32xf32> to vector<8x16xf32>
    %111 = tpu.transpose %109, [1, 0] : vector<8x16xf32> -> vector<16x8xf32>
    %cst_93 = arith.constant dense<0.000000e+00> : vector<8x8xf32>
    %112 = tpu.matmul %108, %111, %cst_93 {dimension_numbers = #tpu.dot_dimension_numbers<[1], [0], [0], [1], [0, 0, 1, 1], [], []>} : vector<8x16xf32>, vector<16x8xf32>, vector<8x8xf32> -> vector<8x8xf32>
    %cst_94 = arith.constant 2.500000e-01 : f32
    %113 = vector.broadcast %cst_94 : f32 to vector<8x8xf32>
    %114 = arith.mulf %112, %113 : vector<8x8xf32>
    %115 = vector.broadcast %87 : vector<1x8xf32> to vector<8x8xf32>
    %116 = arith.addf %114, %115 : vector<8x8xf32>
    %cst_95 = arith.constant dense<0xFF800000> : vector<8xf32>
    %117 = vector.multi_reduction <maximumf>, %116, %cst_95 [1] : vector<8x8xf32> to vector<8xf32>
    %118 = vector.shape_cast %117 : vector<8xf32> to vector<8x1xf32>
    %119 = vector.broadcast %118 : vector<8x1xf32> to vector<8x8xf32>
    %120 = arith.subf %116, %119 : vector<8x8xf32>
    %121 = math.exp %120 : vector<8x8xf32>
    %cst_96 = arith.constant dense<0.000000e+00> : vector<8xf32>
    %122 = vector.multi_reduction <add>, %121, %cst_96 [1] : vector<8x8xf32> to vector<8xf32>
    %123 = vector.shape_cast %122 : vector<8xf32> to vector<8x1xf32>
    %124 = tpu.reciprocal %123 {approx = true} : vector<8x1xf32> -> vector<8x1xf32>
    %125 = vector.broadcast %124 : vector<8x1xf32> to vector<8x8xf32>
    %126 = arith.mulf %121, %125 : vector<8x8xf32>
    %cst_97 = arith.constant dense<0.000000e+00> : vector<8x16xf32>
    %127 = tpu.matmul %126, %110, %cst_97 {dimension_numbers = #tpu.dot_dimension_numbers<[1], [0], [0], [1], [0, 0, 1, 1], [], []>} : vector<8x8xf32>, vector<8x16xf32>, vector<8x16xf32> -> vector<8x16xf32>
    %128 = tpu.concatenate %107, %127 in 1 : vector<8x16xf32>, vector<8x16xf32> -> vector<8x32xf32>
    %129 = vector.extract_strided_slice %80 {offsets = [1, 0], sizes = [1, 8], strides = [1, 1]} : vector<2x8xf32> to vector<1x8xf32>
    %130 = vector.extract_strided_slice %84 {offsets = [8, 0], sizes = [8, 16], strides = [1, 1]} : vector<16x32xf32> to vector<8x16xf32>
    %131 = vector.extract_strided_slice %85 {offsets = [8, 0], sizes = [8, 16], strides = [1, 1]} : vector<16x32xf32> to vector<8x16xf32>
    %132 = vector.extract_strided_slice %86 {offsets = [8, 0], sizes = [8, 16], strides = [1, 1]} : vector<16x32xf32> to vector<8x16xf32>
    %133 = tpu.transpose %131, [1, 0] : vector<8x16xf32> -> vector<16x8xf32>
    %cst_98 = arith.constant dense<0.000000e+00> : vector<8x8xf32>
    %134 = tpu.matmul %130, %133, %cst_98 {dimension_numbers = #tpu.dot_dimension_numbers<[1], [0], [0], [1], [0, 0, 1, 1], [], []>} : vector<8x16xf32>, vector<16x8xf32>, vector<8x8xf32> -> vector<8x8xf32>
    %cst_99 = arith.constant 2.500000e-01 : f32
    %135 = vector.broadcast %cst_99 : f32 to vector<8x8xf32>
    %136 = arith.mulf %134, %135 : vector<8x8xf32>
    %137 = vector.broadcast %129 : vector<1x8xf32> to vector<8x8xf32>
    %138 = arith.addf %136, %137 : vector<8x8xf32>
    %cst_100 = arith.constant dense<0xFF800000> : vector<8xf32>
    %139 = vector.multi_reduction <maximumf>, %138, %cst_100 [1] : vector<8x8xf32> to vector<8xf32>
    %140 = vector.shape_cast %139 : vector<8xf32> to vector<8x1xf32>
    %141 = vector.broadcast %140 : vector<8x1xf32> to vector<8x8xf32>
    %142 = arith.subf %138, %141 : vector<8x8xf32>
    %143 = math.exp %142 : vector<8x8xf32>
    %cst_101 = arith.constant dense<0.000000e+00> : vector<8xf32>
    %144 = vector.multi_reduction <add>, %143, %cst_101 [1] : vector<8x8xf32> to vector<8xf32>
    %145 = vector.shape_cast %144 : vector<8xf32> to vector<8x1xf32>
    %146 = tpu.reciprocal %145 {approx = true} : vector<8x1xf32> -> vector<8x1xf32>
    %147 = vector.broadcast %146 : vector<8x1xf32> to vector<8x8xf32>
    %148 = arith.mulf %143, %147 : vector<8x8xf32>
    %cst_102 = arith.constant dense<0.000000e+00> : vector<8x16xf32>
    %149 = tpu.matmul %148, %132, %cst_102 {dimension_numbers = #tpu.dot_dimension_numbers<[1], [0], [0], [1], [0, 0, 1, 1], [], []>} : vector<8x8xf32>, vector<8x16xf32>, vector<8x16xf32> -> vector<8x16xf32>
    %150 = vector.extract_strided_slice %84 {offsets = [8, 16], sizes = [8, 16], strides = [1, 1]} : vector<16x32xf32> to vector<8x16xf32>
    %151 = vector.extract_strided_slice %85 {offsets = [8, 16], sizes = [8, 16], strides = [1, 1]} : vector<16x32xf32> to vector<8x16xf32>
    %152 = vector.extract_strided_slice %86 {offsets = [8, 16], sizes = [8, 16], strides = [1, 1]} : vector<16x32xf32> to vector<8x16xf32>
    %153 = tpu.transpose %151, [1, 0] : vector<8x16xf32> -> vector<16x8xf32>
    %cst_103 = arith.constant dense<0.000000e+00> : vector<8x8xf32>
    %154 = tpu.matmul %150, %153, %cst_103 {dimension_numbers = #tpu.dot_dimension_numbers<[1], [0], [0], [1], [0, 0, 1, 1], [], []>} : vector<8x16xf32>, vector<16x8xf32>, vector<8x8xf32> -> vector<8x8xf32>
    %cst_104 = arith.constant 2.500000e-01 : f32
    %155 = vector.broadcast %cst_104 : f32 to vector<8x8xf32>
    %156 = arith.mulf %154, %155 : vector<8x8xf32>
    %157 = vector.broadcast %129 : vector<1x8xf32> to vector<8x8xf32>
    %158 = arith.addf %156, %157 : vector<8x8xf32>
    %cst_105 = arith.constant dense<0xFF800000> : vector<8xf32>
    %159 = vector.multi_reduction <maximumf>, %158, %cst_105 [1] : vector<8x8xf32> to vector<8xf32>
    %160 = vector.shape_cast %159 : vector<8xf32> to vector<8x1xf32>
    %161 = vector.broadcast %160 : vector<8x1xf32> to vector<8x8xf32>
    %162 = arith.subf %158, %161 : vector<8x8xf32>
    %163 = math.exp %162 : vector<8x8xf32>
    %cst_106 = arith.constant dense<0.000000e+00> : vector<8xf32>
    %164 = vector.multi_reduction <add>, %163, %cst_106 [1] : vector<8x8xf32> to vector<8xf32>
    %165 = vector.shape_cast %164 : vector<8xf32> to vector<8x1xf32>
    %166 = tpu.reciprocal %165 {approx = true} : vector<8x1xf32> -> vector<8x1xf32>
    %167 = vector.broadcast %166 : vector<8x1xf32> to vector<8x8xf32>
    %168 = arith.mulf %163, %167 : vector<8x8xf32>
    %cst_107 = arith.constant dense<0.000000e+00> : vector<8x16xf32>
    %169 = tpu.matmul %168, %152, %cst_107 {dimension_numbers = #tpu.dot_dimension_numbers<[1], [0], [0], [1], [0, 0, 1, 1], [], []>} : vector<8x8xf32>, vector<8x16xf32>, vector<8x16xf32> -> vector<8x16xf32>
    %170 = tpu.concatenate %149, %169 in 1 : vector<8x16xf32>, vector<8x16xf32> -> vector<8x32xf32>
    %171 = tpu.concatenate %128, %170 in 0 : vector<8x32xf32>, vector<8x32xf32> -> vector<16x32xf32>
    %cst_108 = arith.constant dense<0.000000e+00> : vector<16x32xf32>
    %172 = tpu.matmul %171, %10, %cst_108 {dimension_numbers = #tpu.dot_dimension_numbers<[1], [0], [0], [1], [0, 0, 1, 1], [], []>} : vector<16x32xf32>, vector<32x32xf32>, vector<16x32xf32> -> vector<16x32xf32>
    %173 = vector.broadcast %11 : vector<1x32xf32> to vector<16x32xf32>
    %174 = arith.addf %172, %173 : vector<16x32xf32>
    %175 = arith.addf %174, %76 : vector<16x32xf32>
    %cst_109 = arith.constant dense<0.000000e+00> : vector<16xf32>
    %176 = vector.multi_reduction <add>, %175, %cst_109 [1] : vector<16x32xf32> to vector<16xf32>
    %177 = vector.shape_cast %176 : vector<16xf32> to vector<16x1xf32>
    %cst_110 = arith.constant 3.200000e+01 : f32
    %178 = vector.broadcast %cst_110 : f32 to vector<16x1xf32>
    %179 = arith.divf %177, %178 : vector<16x1xf32>
    %180 = vector.broadcast %179 : vector<16x1xf32> to vector<16x32xf32>
    %181 = arith.subf %175, %180 : vector<16x32xf32>
    %182 = arith.mulf %181, %181 : vector<16x32xf32>
    %cst_111 = arith.constant dense<0.000000e+00> : vector<16xf32>
    %183 = vector.multi_reduction <add>, %182, %cst_111 [1] : vector<16x32xf32> to vector<16xf32>
    %184 = vector.shape_cast %183 : vector<16xf32> to vector<16x1xf32>
    %cst_112 = arith.constant 3.200000e+01 : f32
    %185 = vector.broadcast %cst_112 : f32 to vector<16x1xf32>
    %186 = arith.divf %184, %185 : vector<16x1xf32>
    %187 = vector.broadcast %179 : vector<16x1xf32> to vector<16x32xf32>
    %188 = arith.subf %175, %187 : vector<16x32xf32>
    %cst_113 = arith.constant 9.99999974E-6 : f32
    %189 = vector.broadcast %cst_113 : f32 to vector<16x1xf32>
    %190 = arith.addf %186, %189 : vector<16x1xf32>
    %191 = math.rsqrt %190 : vector<16x1xf32>
    %192 = vector.broadcast %191 : vector<16x1xf32> to vector<16x32xf32>
    %193 = arith.mulf %188, %192 : vector<16x32xf32>
    %194 = vector.broadcast %12 : vector<1x32xf32> to vector<16x32xf32>
    %195 = arith.mulf %193, %194 : vector<16x32xf32>
    %196 = vector.broadcast %13 : vector<1x32xf32> to vector<16x32xf32>
    %197 = arith.addf %195, %196 : vector<16x32xf32>
    %cst_114 = arith.constant dense<0.000000e+00> : vector<16x64xf32>
    %198 = tpu.matmul %197, %14, %cst_114 {dimension_numbers = #tpu.dot_dimension_numbers<[1], [0], [0], [1], [0, 0, 1, 1], [], []>} : vector<16x32xf32>, vector<32x64xf32>, vector<16x64xf32> -> vector<16x64xf32>
    %199 = vector.broadcast %15 : vector<1x64xf32> to vector<16x64xf32>
    %200 = arith.addf %198, %199 : vector<16x64xf32>
    %201 = arith.mulf %200, %200 : vector<16x64xf32>
    %202 = arith.mulf %200, %201 : vector<16x64xf32>
    %cst_115 = arith.constant 4.471500e-02 : f32
    %203 = vector.broadcast %cst_115 : f32 to vector<16x64xf32>
    %204 = arith.mulf %203, %202 : vector<16x64xf32>
    %205 = arith.addf %200, %204 : vector<16x64xf32>
    %cst_116 = arith.constant 0.797884583 : f32
    %206 = vector.broadcast %cst_116 : f32 to vector<16x64xf32>
    %207 = arith.mulf %206, %205 : vector<16x64xf32>
    %208 = math.tanh %207 : vector<16x64xf32>
    %cst_117 = arith.constant 1.000000e+00 : f32
    %209 = vector.broadcast %cst_117 : f32 to vector<16x64xf32>
    %210 = arith.addf %209, %208 : vector<16x64xf32>
    %cst_118 = arith.constant 5.000000e-01 : f32
    %211 = vector.broadcast %cst_118 : f32 to vector<16x64xf32>
    %212 = arith.mulf %211, %210 : vector<16x64xf32>
    %213 = arith.mulf %200, %212 : vector<16x64xf32>
    %cst_119 = arith.constant dense<0.000000e+00> : vector<16x32xf32>
    %214 = tpu.matmul %213, %16, %cst_119 {dimension_numbers = #tpu.dot_dimension_numbers<[1], [0], [0], [1], [0, 0, 1, 1], [], []>} : vector<16x64xf32>, vector<64x32xf32>, vector<16x32xf32> -> vector<16x32xf32>
    %215 = vector.broadcast %17 : vector<1x32xf32> to vector<16x32xf32>
    %216 = arith.addf %214, %215 : vector<16x32xf32>
    %217 = arith.addf %216, %197 : vector<16x32xf32>
    %cst_120 = arith.constant dense<0.000000e+00> : vector<16xf32>
    %218 = vector.multi_reduction <add>, %217, %cst_120 [1] : vector<16x32xf32> to vector<16xf32>
    %219 = vector.shape_cast %218 : vector<16xf32> to vector<16x1xf32>
    %cst_121 = arith.constant 3.200000e+01 : f32
    %220 = vector.broadcast %cst_121 : f32 to vector<16x1xf32>
    %221 = arith.divf %219, %220 : vector<16x1xf32>
    %222 = vector.broadcast %221 : vector<16x1xf32> to vector<16x32xf32>
    %223 = arith.subf %217, %222 : vector<16x32xf32>
    %224 = arith.mulf %223, %223 : vector<16x32xf32>
    %cst_122 = arith.constant dense<0.000000e+00> : vector<16xf32>
    %225 = vector.multi_reduction <add>, %224, %cst_122 [1] : vector<16x32xf32> to vector<16xf32>
    %226 = vector.shape_cast %225 : vector<16xf32> to vector<16x1xf32>
    %cst_123 = arith.constant 3.200000e+01 : f32
    %227 = vector.broadcast %cst_123 : f32 to vector<16x1xf32>
    %228 = arith.divf %226, %227 : vector<16x1xf32>
    %229 = vector.broadcast %221 : vector<16x1xf32> to vector<16x32xf32>
    %230 = arith.subf %217, %229 : vector<16x32xf32>
    %cst_124 = arith.constant 9.99999974E-6 : f32
    %231 = vector.broadcast %cst_124 : f32 to vector<16x1xf32>
    %232 = arith.addf %228, %231 : vector<16x1xf32>
    %233 = math.rsqrt %232 : vector<16x1xf32>
    %234 = vector.broadcast %233 : vector<16x1xf32> to vector<16x32xf32>
    %235 = arith.mulf %230, %234 : vector<16x32xf32>
    %236 = vector.broadcast %18 : vector<1x32xf32> to vector<16x32xf32>
    %237 = arith.mulf %235, %236 : vector<16x32xf32>
    %238 = vector.broadcast %19 : vector<1x32xf32> to vector<16x32xf32>
    %239 = arith.addf %237, %238 : vector<16x32xf32>
    %cst_125 = arith.constant dense<0.000000e+00> : vector<16x96xf32>
    %240 = tpu.matmul %239, %20, %cst_125 {dimension_numbers = #tpu.dot_dimension_numbers<[1], [0], [0], [1], [0, 0, 1, 1], [], []>} : vector<16x32xf32>, vector<32x96xf32>, vector<16x96xf32> -> vector<16x96xf32>
    %241 = vector.broadcast %21 : vector<1x96xf32> to vector<16x96xf32>
    %242 = arith.addf %240, %241 : vector<16x96xf32>
    %243 = vector.extract_strided_slice %242 {offsets = [0, 0], sizes = [16, 32], strides = [1, 1]} : vector<16x96xf32> to vector<16x32xf32>
    %244 = vector.extract_strided_slice %242 {offsets = [0, 32], sizes = [16, 32], strides = [1, 1]} : vector<16x96xf32> to vector<16x32xf32>
    %245 = vector.extract_strided_slice %242 {offsets = [0, 64], sizes = [16, 32], strides = [1, 1]} : vector<16x96xf32> to vector<16x32xf32>
    %246 = vector.extract_strided_slice %80 {offsets = [0, 0], sizes = [1, 8], strides = [1, 1]} : vector<2x8xf32> to vector<1x8xf32>
    %247 = vector.extract_strided_slice %243 {offsets = [0, 0], sizes = [8, 16], strides = [1, 1]} : vector<16x32xf32> to vector<8x16xf32>
    %248 = vector.extract_strided_slice %244 {offsets = [0, 0], sizes = [8, 16], strides = [1, 1]} : vector<16x32xf32> to vector<8x16xf32>
    %249 = vector.extract_strided_slice %245 {offsets = [0, 0], sizes = [8, 16], strides = [1, 1]} : vector<16x32xf32> to vector<8x16xf32>
    %250 = tpu.transpose %248, [1, 0] : vector<8x16xf32> -> vector<16x8xf32>
    %cst_126 = arith.constant dense<0.000000e+00> : vector<8x8xf32>
    %251 = tpu.matmul %247, %250, %cst_126 {dimension_numbers = #tpu.dot_dimension_numbers<[1], [0], [0], [1], [0, 0, 1, 1], [], []>} : vector<8x16xf32>, vector<16x8xf32>, vector<8x8xf32> -> vector<8x8xf32>
    %cst_127 = arith.constant 2.500000e-01 : f32
    %252 = vector.broadcast %cst_127 : f32 to vector<8x8xf32>
    %253 = arith.mulf %251, %252 : vector<8x8xf32>
    %254 = vector.broadcast %246 : vector<1x8xf32> to vector<8x8xf32>
    %255 = arith.addf %253, %254 : vector<8x8xf32>
    %cst_128 = arith.constant dense<0xFF800000> : vector<8xf32>
    %256 = vector.multi_reduction <maximumf>, %255, %cst_128 [1] : vector<8x8xf32> to vector<8xf32>
    %257 = vector.shape_cast %256 : vector<8xf32> to vector<8x1xf32>
    %258 = vector.broadcast %257 : vector<8x1xf32> to vector<8x8xf32>
    %259 = arith.subf %255, %258 : vector<8x8xf32>
    %260 = math.exp %259 : vector<8x8xf32>
    %cst_129 = arith.constant dense<0.000000e+00> : vector<8xf32>
    %261 = vector.multi_reduction <add>, %260, %cst_129 [1] : vector<8x8xf32> to vector<8xf32>
    %262 = vector.shape_cast %261 : vector<8xf32> to vector<8x1xf32>
    %263 = tpu.reciprocal %262 {approx = true} : vector<8x1xf32> -> vector<8x1xf32>
    %264 = vector.broadcast %263 : vector<8x1xf32> to vector<8x8xf32>
    %265 = arith.mulf %260, %264 : vector<8x8xf32>
    %cst_130 = arith.constant dense<0.000000e+00> : vector<8x16xf32>
    %266 = tpu.matmul %265, %249, %cst_130 {dimension_numbers = #tpu.dot_dimension_numbers<[1], [0], [0], [1], [0, 0, 1, 1], [], []>} : vector<8x8xf32>, vector<8x16xf32>, vector<8x16xf32> -> vector<8x16xf32>
    %267 = vector.extract_strided_slice %243 {offsets = [0, 16], sizes = [8, 16], strides = [1, 1]} : vector<16x32xf32> to vector<8x16xf32>
    %268 = vector.extract_strided_slice %244 {offsets = [0, 16], sizes = [8, 16], strides = [1, 1]} : vector<16x32xf32> to vector<8x16xf32>
    %269 = vector.extract_strided_slice %245 {offsets = [0, 16], sizes = [8, 16], strides = [1, 1]} : vector<16x32xf32> to vector<8x16xf32>
    %270 = tpu.transpose %268, [1, 0] : vector<8x16xf32> -> vector<16x8xf32>
    %cst_131 = arith.constant dense<0.000000e+00> : vector<8x8xf32>
    %271 = tpu.matmul %267, %270, %cst_131 {dimension_numbers = #tpu.dot_dimension_numbers<[1], [0], [0], [1], [0, 0, 1, 1], [], []>} : vector<8x16xf32>, vector<16x8xf32>, vector<8x8xf32> -> vector<8x8xf32>
    %cst_132 = arith.constant 2.500000e-01 : f32
    %272 = vector.broadcast %cst_132 : f32 to vector<8x8xf32>
    %273 = arith.mulf %271, %272 : vector<8x8xf32>
    %274 = vector.broadcast %246 : vector<1x8xf32> to vector<8x8xf32>
    %275 = arith.addf %273, %274 : vector<8x8xf32>
    %cst_133 = arith.constant dense<0xFF800000> : vector<8xf32>
    %276 = vector.multi_reduction <maximumf>, %275, %cst_133 [1] : vector<8x8xf32> to vector<8xf32>
    %277 = vector.shape_cast %276 : vector<8xf32> to vector<8x1xf32>
    %278 = vector.broadcast %277 : vector<8x1xf32> to vector<8x8xf32>
    %279 = arith.subf %275, %278 : vector<8x8xf32>
    %280 = math.exp %279 : vector<8x8xf32>
    %cst_134 = arith.constant dense<0.000000e+00> : vector<8xf32>
    %281 = vector.multi_reduction <add>, %280, %cst_134 [1] : vector<8x8xf32> to vector<8xf32>
    %282 = vector.shape_cast %281 : vector<8xf32> to vector<8x1xf32>
    %283 = tpu.reciprocal %282 {approx = true} : vector<8x1xf32> -> vector<8x1xf32>
    %284 = vector.broadcast %283 : vector<8x1xf32> to vector<8x8xf32>
    %285 = arith.mulf %280, %284 : vector<8x8xf32>
    %cst_135 = arith.constant dense<0.000000e+00> : vector<8x16xf32>
    %286 = tpu.matmul %285, %269, %cst_135 {dimension_numbers = #tpu.dot_dimension_numbers<[1], [0], [0], [1], [0, 0, 1, 1], [], []>} : vector<8x8xf32>, vector<8x16xf32>, vector<8x16xf32> -> vector<8x16xf32>
    %287 = tpu.concatenate %266, %286 in 1 : vector<8x16xf32>, vector<8x16xf32> -> vector<8x32xf32>
    %288 = vector.extract_strided_slice %80 {offsets = [1, 0], sizes = [1, 8], strides = [1, 1]} : vector<2x8xf32> to vector<1x8xf32>
    %289 = vector.extract_strided_slice %243 {offsets = [8, 0], sizes = [8, 16], strides = [1, 1]} : vector<16x32xf32> to vector<8x16xf32>
    %290 = vector.extract_strided_slice %244 {offsets = [8, 0], sizes = [8, 16], strides = [1, 1]} : vector<16x32xf32> to vector<8x16xf32>
    %291 = vector.extract_strided_slice %245 {offsets = [8, 0], sizes = [8, 16], strides = [1, 1]} : vector<16x32xf32> to vector<8x16xf32>
    %292 = tpu.transpose %290, [1, 0] : vector<8x16xf32> -> vector<16x8xf32>
    %cst_136 = arith.constant dense<0.000000e+00> : vector<8x8xf32>
    %293 = tpu.matmul %289, %292, %cst_136 {dimension_numbers = #tpu.dot_dimension_numbers<[1], [0], [0], [1], [0, 0, 1, 1], [], []>} : vector<8x16xf32>, vector<16x8xf32>, vector<8x8xf32> -> vector<8x8xf32>
    %cst_137 = arith.constant 2.500000e-01 : f32
    %294 = vector.broadcast %cst_137 : f32 to vector<8x8xf32>
    %295 = arith.mulf %293, %294 : vector<8x8xf32>
    %296 = vector.broadcast %288 : vector<1x8xf32> to vector<8x8xf32>
    %297 = arith.addf %295, %296 : vector<8x8xf32>
    %cst_138 = arith.constant dense<0xFF800000> : vector<8xf32>
    %298 = vector.multi_reduction <maximumf>, %297, %cst_138 [1] : vector<8x8xf32> to vector<8xf32>
    %299 = vector.shape_cast %298 : vector<8xf32> to vector<8x1xf32>
    %300 = vector.broadcast %299 : vector<8x1xf32> to vector<8x8xf32>
    %301 = arith.subf %297, %300 : vector<8x8xf32>
    %302 = math.exp %301 : vector<8x8xf32>
    %cst_139 = arith.constant dense<0.000000e+00> : vector<8xf32>
    %303 = vector.multi_reduction <add>, %302, %cst_139 [1] : vector<8x8xf32> to vector<8xf32>
    %304 = vector.shape_cast %303 : vector<8xf32> to vector<8x1xf32>
    %305 = tpu.reciprocal %304 {approx = true} : vector<8x1xf32> -> vector<8x1xf32>
    %306 = vector.broadcast %305 : vector<8x1xf32> to vector<8x8xf32>
    %307 = arith.mulf %302, %306 : vector<8x8xf32>
    %cst_140 = arith.constant dense<0.000000e+00> : vector<8x16xf32>
    %308 = tpu.matmul %307, %291, %cst_140 {dimension_numbers = #tpu.dot_dimension_numbers<[1], [0], [0], [1], [0, 0, 1, 1], [], []>} : vector<8x8xf32>, vector<8x16xf32>, vector<8x16xf32> -> vector<8x16xf32>
    %309 = vector.extract_strided_slice %243 {offsets = [8, 16], sizes = [8, 16], strides = [1, 1]} : vector<16x32xf32> to vector<8x16xf32>
    %310 = vector.extract_strided_slice %244 {offsets = [8, 16], sizes = [8, 16], strides = [1, 1]} : vector<16x32xf32> to vector<8x16xf32>
    %311 = vector.extract_strided_slice %245 {offsets = [8, 16], sizes = [8, 16], strides = [1, 1]} : vector<16x32xf32> to vector<8x16xf32>
    %312 = tpu.transpose %310, [1, 0] : vector<8x16xf32> -> vector<16x8xf32>
    %cst_141 = arith.constant dense<0.000000e+00> : vector<8x8xf32>
    %313 = tpu.matmul %309, %312, %cst_141 {dimension_numbers = #tpu.dot_dimension_numbers<[1], [0], [0], [1], [0, 0, 1, 1], [], []>} : vector<8x16xf32>, vector<16x8xf32>, vector<8x8xf32> -> vector<8x8xf32>
    %cst_142 = arith.constant 2.500000e-01 : f32
    %314 = vector.broadcast %cst_142 : f32 to vector<8x8xf32>
    %315 = arith.mulf %313, %314 : vector<8x8xf32>
    %316 = vector.broadcast %288 : vector<1x8xf32> to vector<8x8xf32>
    %317 = arith.addf %315, %316 : vector<8x8xf32>
    %cst_143 = arith.constant dense<0xFF800000> : vector<8xf32>
    %318 = vector.multi_reduction <maximumf>, %317, %cst_143 [1] : vector<8x8xf32> to vector<8xf32>
    %319 = vector.shape_cast %318 : vector<8xf32> to vector<8x1xf32>
    %320 = vector.broadcast %319 : vector<8x1xf32> to vector<8x8xf32>
    %321 = arith.subf %317, %320 : vector<8x8xf32>
    %322 = math.exp %321 : vector<8x8xf32>
    %cst_144 = arith.constant dense<0.000000e+00> : vector<8xf32>
    %323 = vector.multi_reduction <add>, %322, %cst_144 [1] : vector<8x8xf32> to vector<8xf32>
    %324 = vector.shape_cast %323 : vector<8xf32> to vector<8x1xf32>
    %325 = tpu.reciprocal %324 {approx = true} : vector<8x1xf32> -> vector<8x1xf32>
    %326 = vector.broadcast %325 : vector<8x1xf32> to vector<8x8xf32>
    %327 = arith.mulf %322, %326 : vector<8x8xf32>
    %cst_145 = arith.constant dense<0.000000e+00> : vector<8x16xf32>
    %328 = tpu.matmul %327, %311, %cst_145 {dimension_numbers = #tpu.dot_dimension_numbers<[1], [0], [0], [1], [0, 0, 1, 1], [], []>} : vector<8x8xf32>, vector<8x16xf32>, vector<8x16xf32> -> vector<8x16xf32>
    %329 = tpu.concatenate %308, %328 in 1 : vector<8x16xf32>, vector<8x16xf32> -> vector<8x32xf32>
    %330 = tpu.concatenate %287, %329 in 0 : vector<8x32xf32>, vector<8x32xf32> -> vector<16x32xf32>
    %cst_146 = arith.constant dense<0.000000e+00> : vector<16x32xf32>
    %331 = tpu.matmul %330, %22, %cst_146 {dimension_numbers = #tpu.dot_dimension_numbers<[1], [0], [0], [1], [0, 0, 1, 1], [], []>} : vector<16x32xf32>, vector<32x32xf32>, vector<16x32xf32> -> vector<16x32xf32>
    %332 = vector.broadcast %23 : vector<1x32xf32> to vector<16x32xf32>
    %333 = arith.addf %331, %332 : vector<16x32xf32>
    %334 = arith.addf %333, %239 : vector<16x32xf32>
    %cst_147 = arith.constant dense<0.000000e+00> : vector<16xf32>
    %335 = vector.multi_reduction <add>, %334, %cst_147 [1] : vector<16x32xf32> to vector<16xf32>
    %336 = vector.shape_cast %335 : vector<16xf32> to vector<16x1xf32>
    %cst_148 = arith.constant 3.200000e+01 : f32
    %337 = vector.broadcast %cst_148 : f32 to vector<16x1xf32>
    %338 = arith.divf %336, %337 : vector<16x1xf32>
    %339 = vector.broadcast %338 : vector<16x1xf32> to vector<16x32xf32>
    %340 = arith.subf %334, %339 : vector<16x32xf32>
    %341 = arith.mulf %340, %340 : vector<16x32xf32>
    %cst_149 = arith.constant dense<0.000000e+00> : vector<16xf32>
    %342 = vector.multi_reduction <add>, %341, %cst_149 [1] : vector<16x32xf32> to vector<16xf32>
    %343 = vector.shape_cast %342 : vector<16xf32> to vector<16x1xf32>
    %cst_150 = arith.constant 3.200000e+01 : f32
    %344 = vector.broadcast %cst_150 : f32 to vector<16x1xf32>
    %345 = arith.divf %343, %344 : vector<16x1xf32>
    %346 = vector.broadcast %338 : vector<16x1xf32> to vector<16x32xf32>
    %347 = arith.subf %334, %346 : vector<16x32xf32>
    %cst_151 = arith.constant 9.99999974E-6 : f32
    %348 = vector.broadcast %cst_151 : f32 to vector<16x1xf32>
    %349 = arith.addf %345, %348 : vector<16x1xf32>
    %350 = math.rsqrt %349 : vector<16x1xf32>
    %351 = vector.broadcast %350 : vector<16x1xf32> to vector<16x32xf32>
    %352 = arith.mulf %347, %351 : vector<16x32xf32>
    %353 = vector.broadcast %24 : vector<1x32xf32> to vector<16x32xf32>
    %354 = arith.mulf %352, %353 : vector<16x32xf32>
    %355 = vector.broadcast %25 : vector<1x32xf32> to vector<16x32xf32>
    %356 = arith.addf %354, %355 : vector<16x32xf32>
    %cst_152 = arith.constant dense<0.000000e+00> : vector<16x64xf32>
    %357 = tpu.matmul %356, %26, %cst_152 {dimension_numbers = #tpu.dot_dimension_numbers<[1], [0], [0], [1], [0, 0, 1, 1], [], []>} : vector<16x32xf32>, vector<32x64xf32>, vector<16x64xf32> -> vector<16x64xf32>
    %358 = vector.broadcast %27 : vector<1x64xf32> to vector<16x64xf32>
    %359 = arith.addf %357, %358 : vector<16x64xf32>
    %360 = arith.mulf %359, %359 : vector<16x64xf32>
    %361 = arith.mulf %359, %360 : vector<16x64xf32>
    %cst_153 = arith.constant 4.471500e-02 : f32
    %362 = vector.broadcast %cst_153 : f32 to vector<16x64xf32>
    %363 = arith.mulf %362, %361 : vector<16x64xf32>
    %364 = arith.addf %359, %363 : vector<16x64xf32>
    %cst_154 = arith.constant 0.797884583 : f32
    %365 = vector.broadcast %cst_154 : f32 to vector<16x64xf32>
    %366 = arith.mulf %365, %364 : vector<16x64xf32>
    %367 = math.tanh %366 : vector<16x64xf32>
    %cst_155 = arith.constant 1.000000e+00 : f32
    %368 = vector.broadcast %cst_155 : f32 to vector<16x64xf32>
    %369 = arith.addf %368, %367 : vector<16x64xf32>
    %cst_156 = arith.constant 5.000000e-01 : f32
    %370 = vector.broadcast %cst_156 : f32 to vector<16x64xf32>
    %371 = arith.mulf %370, %369 : vector<16x64xf32>
    %372 = arith.mulf %359, %371 : vector<16x64xf32>
    %cst_157 = arith.constant dense<0.000000e+00> : vector<16x32xf32>
    %373 = tpu.matmul %372, %28, %cst_157 {dimension_numbers = #tpu.dot_dimension_numbers<[1], [0], [0], [1], [0, 0, 1, 1], [], []>} : vector<16x64xf32>, vector<64x32xf32>, vector<16x32xf32> -> vector<16x32xf32>
    %374 = vector.broadcast %29 : vector<1x32xf32> to vector<16x32xf32>
    %375 = arith.addf %373, %374 : vector<16x32xf32>
    %376 = arith.addf %375, %356 : vector<16x32xf32>
    %cst_158 = arith.constant dense<0.000000e+00> : vector<16xf32>
    %377 = vector.multi_reduction <add>, %376, %cst_158 [1] : vector<16x32xf32> to vector<16xf32>
    %378 = vector.shape_cast %377 : vector<16xf32> to vector<16x1xf32>
    %cst_159 = arith.constant 3.200000e+01 : f32
    %379 = vector.broadcast %cst_159 : f32 to vector<16x1xf32>
    %380 = arith.divf %378, %379 : vector<16x1xf32>
    %381 = vector.broadcast %380 : vector<16x1xf32> to vector<16x32xf32>
    %382 = arith.subf %376, %381 : vector<16x32xf32>
    %383 = arith.mulf %382, %382 : vector<16x32xf32>
    %cst_160 = arith.constant dense<0.000000e+00> : vector<16xf32>
    %384 = vector.multi_reduction <add>, %383, %cst_160 [1] : vector<16x32xf32> to vector<16xf32>
    %385 = vector.shape_cast %384 : vector<16xf32> to vector<16x1xf32>
    %cst_161 = arith.constant 3.200000e+01 : f32
    %386 = vector.broadcast %cst_161 : f32 to vector<16x1xf32>
    %387 = arith.divf %385, %386 : vector<16x1xf32>
    %388 = vector.broadcast %380 : vector<16x1xf32> to vector<16x32xf32>
    %389 = arith.subf %376, %388 : vector<16x32xf32>
    %cst_162 = arith.constant 9.99999974E-6 : f32
    %390 = vector.broadcast %cst_162 : f32 to vector<16x1xf32>
    %391 = arith.addf %387, %390 : vector<16x1xf32>
    %392 = math.rsqrt %391 : vector<16x1xf32>
    %393 = vector.broadcast %392 : vector<16x1xf32> to vector<16x32xf32>
    %394 = arith.mulf %389, %393 : vector<16x32xf32>
    %395 = vector.broadcast %30 : vector<1x32xf32> to vector<16x32xf32>
    %396 = arith.mulf %394, %395 : vector<16x32xf32>
    %397 = vector.broadcast %31 : vector<1x32xf32> to vector<16x32xf32>
    %398 = arith.addf %396, %397 : vector<16x32xf32>
    %399 = vector.extract_strided_slice %398 {offsets = [0, 0], sizes = [1, 32], strides = [1, 1]} : vector<16x32xf32> to vector<1x32xf32>
    %400 = vector.extract_strided_slice %398 {offsets = [8, 0], sizes = [1, 32], strides = [1, 1]} : vector<16x32xf32> to vector<1x32xf32>
    %401 = tpu.concatenate %399, %400 in 0 : vector<1x32xf32>, vector<1x32xf32> -> vector<2x32xf32>
    %cst_163 = arith.constant dense<0.000000e+00> : vector<2x32xf32>
    %402 = tpu.matmul %401, %32, %cst_163 {dimension_numbers = #tpu.dot_dimension_numbers<[1], [0], [0], [1], [0, 0, 1, 1], [], []>} : vector<2x32xf32>, vector<32x32xf32>, vector<2x32xf32> -> vector<2x32xf32>
    %403 = vector.broadcast %33 : vector<1x32xf32> to vector<2x32xf32>
    %404 = arith.addf %402, %403 : vector<2x32xf32>
    %405 = math.tanh %404 : vector<2x32xf32>
    %cst_164 = arith.constant dense<0.000000e+00> : vector<2x20xf32>
    %406 = tpu.matmul %405, %34, %cst_164 {dimension_numbers = #tpu.dot_dimension_numbers<[1], [0], [0], [1], [0, 0, 1, 1], [], []>} : vector<2x32xf32>, vector<32x20xf32>, vector<2x20xf32> -> vector<2x20xf32>
    %407 = vector.broadcast %35 : vector<1x20xf32> to vector<2x20xf32>
    %408 = arith.addf %406, %407 : vector<2x20xf32>
    %cst_165 = arith.constant dense<0.000000e+00> : vector<2x20xf32>
    %409 = tpu.matmul %408, %36, %cst_165 {dimension_numbers = #tpu.dot_dimension_numbers<[1], [0], [0], [1], [0, 0, 1, 1], [], []>} : vector<2x20xf32>, vector<20x20xf32>, vector<2x20xf32> -> vector<2x20xf32>
    %410 = vector.broadcast %37 : vector<1x20xf32> to vector<2x20xf32>
    %411 = arith.addf %409, %410 : vector<2x20xf32>
    %cst_166 = arith.constant 0.000000e+00 : f32
    %412 = vector.broadcast %cst_166 : f32 to vector<2x20xf32>
    %413 = arith.maximumf %411, %412 : vector<2x20xf32>
    %cst_167 = arith.constant dense<0.000000e+00> : vector<2x1xf32>
    %414 = tpu.matmul %413, %38, %cst_167 {dimension_numbers = #tpu.dot_dimension_numbers<[1], [0], [0], [1], [0, 0, 1, 1], [], []>} : vector<2x20xf32>, vector<20x1xf32>, vector<2x1xf32> -> vector<2x1xf32>
    %415 = vector.broadcast %39 : vector<1x1xf32> to vector<2x1xf32>
    %416 = arith.addf %414, %415 : vector<2x1xf32>
    %417 = arith.negf %416 : vector<2x1xf32>
    %418 = math.exp %417 : vector<2x1xf32>
    %cst_168 = arith.constant 1.000000e+00 : f32
    %419 = vector.broadcast %cst_168 : f32 to vector<2x1xf32>
    %420 = arith.addf %419, %418 : vector<2x1xf32>
    %421 = arith.divf %419, %420 : vector<2x1xf32>
    %c0_169 = arith.constant 0 : index
    %c0_170 = arith.constant 0 : index
    %422 = vector.load %arg41[%c0_169, %c0_170] : memref<2x1xf32, #tpu.memory_space<vmem>>, vector<2x1xf32>
    tpu.vector_store %arg41[%c0_169, %c0_170], %421 {strides = array<i32>} : memref<2x1xf32, #tpu.memory_space<vmem>>, vector<2x1xf32>,
    return
  }
}

</mosaic_0001>

<llo_original>
// kernel: tpu_custom_call.1
$region0: #{tpu_custom_call.1}
  #allocation0 [shape = 'u32[]', space=smem, size = 0x4, offset = 0x4, fixed_abs, tag = 'smem constant byte address 0x4 - core index']
  #allocation1 [shape = 'u32[144,128]{1,0:T(1,128)}', space=vmem, size = 0x12000, scoped, tag = 'internal scratch']
  #allocation2 [shape = 'f32[1,1]{1,0:T(1,128)S(1)}', space=vmem, size = 0x200, scoped, tag = 'scoped memory for tpu_custom_call.1']
  %s0 = inlined_call_operand.smem [shape: u32[42], index: -1, kind: input, shape index: {}]
  %s1 = sld [smem:[%s0]]
  %s2 = scalar_lea.smem %s0, 1
  %s3 = sld [smem:[%s2]]
  %s4 = scalar_lea.smem %s0, 2
  %s5 = sld [smem:[%s4]]
  %s6 = scalar_lea.smem %s0, 3
  %s7 = sld [smem:[%s6]]
  %s8 = scalar_lea.smem %s0, 4
  %s9 = sld [smem:[%s8]]
  %s10 = scalar_lea.smem %s0, 5
  %s11 = sld [smem:[%s10]]
  %s12 = scalar_lea.smem %s0, 6
  %s13 = sld [smem:[%s12]]
  %s14 = scalar_lea.smem %s0, 7
  %s15 = sld [smem:[%s14]]
  %s16 = scalar_lea.smem %s0, 8
  %s17 = sld [smem:[%s16]]
  %s18 = scalar_lea.smem %s0, 9
  %s19 = sld [smem:[%s18]]
  %s20 = scalar_lea.smem %s0, 10
  %s21 = sld [smem:[%s20]]
  %s22 = scalar_lea.smem %s0, 11
  %s23 = sld [smem:[%s22]]
  %s24 = scalar_lea.smem %s0, 12
  %s25 = sld [smem:[%s24]]
  %s26 = scalar_lea.smem %s0, 13
  %s27 = sld [smem:[%s26]]
  %s28 = scalar_lea.smem %s0, 14
  %s29 = sld [smem:[%s28]]
  %s30 = scalar_lea.smem %s0, 15
  %s31 = sld [smem:[%s30]]
  %s32 = scalar_lea.smem %s0, 16
  %s33 = sld [smem:[%s32]]
  %s34 = scalar_lea.smem %s0, 17
  %s35 = sld [smem:[%s34]]
  %s36 = scalar_lea.smem %s0, 18
  %s37 = sld [smem:[%s36]]
  %s38 = scalar_lea.smem %s0, 19
  %s39 = sld [smem:[%s38]]
  %s40 = scalar_lea.smem %s0, 20
  %s41 = sld [smem:[%s40]]
  %s42 = scalar_lea.smem %s0, 21
  %s43 = sld [smem:[%s42]]
  %s44 = scalar_lea.smem %s0, 22
  %s45 = sld [smem:[%s44]]
  %s46 = scalar_lea.smem %s0, 23
  %s47 = sld [smem:[%s46]]
  %s48 = scalar_lea.smem %s0, 24
  %s49 = sld [smem:[%s48]]
  %s50 = scalar_lea.smem %s0, 25
  %s51 = sld [smem:[%s50]]
  %s52 = scalar_lea.smem %s0, 26
  %s53 = sld [smem:[%s52]]
  %s54 = scalar_lea.smem %s0, 27
  %s55 = sld [smem:[%s54]]
  %s56 = scalar_lea.smem %s0, 28
  %s57 = sld [smem:[%s56]]
  %s58 = scalar_lea.smem %s0, 29
  %s59 = sld [smem:[%s58]]
  %s60 = scalar_lea.smem %s0, 30
  %s61 = sld [smem:[%s60]]
  %s62 = scalar_lea.smem %s0, 31
  %s63 = sld [smem:[%s62]]
  %s64 = scalar_lea.smem %s0, 32
  %s65 = sld [smem:[%s64]]
  %s66 = scalar_lea.smem %s0, 33
  %s67 = sld [smem:[%s66]]
  %s68 = scalar_lea.smem %s0, 34
  %s69 = sld [smem:[%s68]]
  %s70 = scalar_lea.smem %s0, 35
  %s71 = sld [smem:[%s70]]
  %s72 = scalar_lea.smem %s0, 36
  %s73 = sld [smem:[%s72]]
  %s74 = scalar_lea.smem %s0, 37
  %s75 = sld [smem:[%s74]]
  %s76 = scalar_lea.smem %s0, 38
  %s77 = sld [smem:[%s76]]
  %s78 = scalar_lea.smem %s0, 39
  %s79 = sld [smem:[%s78]]
  %s80 = scalar_lea.smem %s0, 40
  %s81 = sld [smem:[%s80]]
  %s82 = scalar_lea.smem %s0, 41
  %s83 = sld [smem:[%s82]]
  %s84 = sld [smem:[#allocation0]]
  $region174: #{tpu_custom_call.1} parent=0
    _
  %s86 = ssub.s32 1, %s84
  %s87 = scalar_select 0, %s86, %s84
  %v88 = vstv %s81
  %89 = vst [vmem:[#allocation2] sm:$0x1] %v88
  // Predicated region
  $region2: #{tpu_custom_call.1} parent=0 // pred_check
    _
  $region3: #{tpu_custom_call.1} parent=0 // pred_check_branch
    %91 = sbr.rel (0) target = $region5
  $region4: #{tpu_custom_call.1} parent=0 // pred_region
    _
  $region5: #{tpu_custom_call.1} parent=0 // pred_fallthru
    _
  // Predicated region
  $region6: #{tpu_custom_call.1} parent=0 // pred_check
    _
  $region7: #{tpu_custom_call.1} parent=0 // pred_check_branch
    %93 = sbr.rel (0) target = $region9
  $region8: #{tpu_custom_call.1} parent=0 // pred_region
    _
  $region9: #{tpu_custom_call.1} parent=0 // pred_fallthru
    _
  // Predicated region
  $region10: #{tpu_custom_call.1} parent=0 // pred_check
    _
  $region11: #{tpu_custom_call.1} parent=0 // pred_check_branch
    %95 = sbr.rel (0) target = $region13
  $region12: #{tpu_custom_call.1} parent=0 // pred_region
    _
  $region13: #{tpu_custom_call.1} parent=0 // pred_fallthru
    _
  // Predicated region
  $region14: #{tpu_custom_call.1} parent=0 // pred_check
    _
  $region15: #{tpu_custom_call.1} parent=0 // pred_check_branch
    %97 = sbr.rel (0) target = $region17
  $region16: #{tpu_custom_call.1} parent=0 // pred_region
    _
  $region17: #{tpu_custom_call.1} parent=0 // pred_fallthru
    _
  // Predicated region
  $region18: #{tpu_custom_call.1} parent=0 // pred_check
    _
  $region19: #{tpu_custom_call.1} parent=0 // pred_check_branch
    %99 = sbr.rel (0) target = $region21
  $region20: #{tpu_custom_call.1} parent=0 // pred_region
    _
  $region21: #{tpu_custom_call.1} parent=0 // pred_fallthru
    _
  // Predicated region
  $region22: #{tpu_custom_call.1} parent=0 // pred_check
    _
  $region23: #{tpu_custom_call.1} parent=0 // pred_check_branch
    %101 = sbr.rel (0) target = $region25
  $region24: #{tpu_custom_call.1} parent=0 // pred_region
    _
  $region25: #{tpu_custom_call.1} parent=0 // pred_fallthru
    _
  // Predicated region
  $region26: #{tpu_custom_call.1} parent=0 // pred_check
    _
  $region27: #{tpu_custom_call.1} parent=0 // pred_check_branch
    %103 = sbr.rel (0) target = $region29
  $region28: #{tpu_custom_call.1} parent=0 // pred_region
    _
  $region29: #{tpu_custom_call.1} parent=0 // pred_fallthru
    _
  // Predicated region
  $region30: #{tpu_custom_call.1} parent=0 // pred_check
    _
  $region31: #{tpu_custom_call.1} parent=0 // pred_check_branch
    %105 = sbr.rel (0) target = $region33
  $region32: #{tpu_custom_call.1} parent=0 // pred_region
    _
  $region33: #{tpu_custom_call.1} parent=0 // pred_fallthru
    _
  // Predicated region
  $region34: #{tpu_custom_call.1} parent=0 // pred_check
    _
  $region35: #{tpu_custom_call.1} parent=0 // pred_check_branch
    %107 = sbr.rel (0) target = $region37
  $region36: #{tpu_custom_call.1} parent=0 // pred_region
    _
  $region37: #{tpu_custom_call.1} parent=0 // pred_fallthru
    _
  // Predicated region
  $region38: #{tpu_custom_call.1} parent=0 // pred_check
    _
  $region39: #{tpu_custom_call.1} parent=0 // pred_check_branch
    %109 = sbr.rel (0) target = $region41
  $region40: #{tpu_custom_call.1} parent=0 // pred_region
    _
  $region41: #{tpu_custom_call.1} parent=0 // pred_fallthru
    _
  // Predicated region
  $region42: #{tpu_custom_call.1} parent=0 // pred_check
    _
  $region43: #{tpu_custom_call.1} parent=0 // pred_check_branch
    %111 = sbr.rel (0) target = $region45
  $region44: #{tpu_custom_call.1} parent=0 // pred_region
    _
  $region45: #{tpu_custom_call.1} parent=0 // pred_fallthru
    _
  // Predicated region
  $region46: #{tpu_custom_call.1} parent=0 // pred_check
    _
  $region47: #{tpu_custom_call.1} parent=0 // pred_check_branch
    %113 = sbr.rel (0) target = $region49
  $region48: #{tpu_custom_call.1} parent=0 // pred_region
    _
  $region49: #{tpu_custom_call.1} parent=0 // pred_fallthru
    _
  // Predicated region
  $region50: #{tpu_custom_call.1} parent=0 // pred_check
    _
  $region51: #{tpu_custom_call.1} parent=0 // pred_check_branch
    %115 = sbr.rel (0) target = $region53
  $region52: #{tpu_custom_call.1} parent=0 // pred_region
    _
  $region53: #{tpu_custom_call.1} parent=0 // pred_fallthru
    _
  // Predicated region
  $region54: #{tpu_custom_call.1} parent=0 // pred_check
    _
  $region55: #{tpu_custom_call.1} parent=0 // pred_check_branch
    %117 = sbr.rel (0) target = $region57
  $region56: #{tpu_custom_call.1} parent=0 // pred_region
    _
  $region57: #{tpu_custom_call.1} parent=0 // pred_fallthru
    _
  // Predicated region
  $region58: #{tpu_custom_call.1} parent=0 // pred_check
    _
  $region59: #{tpu_custom_call.1} parent=0 // pred_check_branch
    %119 = sbr.rel (0) target = $region61
  $region60: #{tpu_custom_call.1} parent=0 // pred_region
    _
  $region61: #{tpu_custom_call.1} parent=0 // pred_fallthru
    _
  // Predicated region
  $region62: #{tpu_custom_call.1} parent=0 // pred_check
    _
  $region63: #{tpu_custom_call.1} parent=0 // pred_check_branch
    %121 = sbr.rel (0) target = $region65
  $region64: #{tpu_custom_call.1} parent=0 // pred_region
    _
  $region65: #{tpu_custom_call.1} parent=0 // pred_fallthru
    _
  // Predicated region
  $region66: #{tpu_custom_call.1} parent=0 // pred_check
    _
  $region67: #{tpu_custom_call.1} parent=0 // pred_check_branch
    %123 = sbr.rel (0) target = $region69
  $region68: #{tpu_custom_call.1} parent=0 // pred_region
    _
  $region69: #{tpu_custom_call.1} parent=0 // pred_fallthru
    _
  // Predicated region
  $region70: #{tpu_custom_call.1} parent=0 // pred_check
    _
  $region71: #{tpu_custom_call.1} parent=0 // pred_check_branch
    %125 = sbr.rel (0) target = $region73
  $region72: #{tpu_custom_call.1} parent=0 // pred_region
    _
  $region73: #{tpu_custom_call.1} parent=0 // pred_fallthru
    _
  // Predicated region
  $region74: #{tpu_custom_call.1} parent=0 // pred_check
    _
  $region75: #{tpu_custom_call.1} parent=0 // pred_check_branch
    %127 = sbr.rel (0) target = $region77
  $region76: #{tpu_custom_call.1} parent=0 // pred_region
    _
  $region77: #{tpu_custom_call.1} parent=0 // pred_fallthru
    _
  // Predicated region
  $region78: #{tpu_custom_call.1} parent=0 // pred_check
    _
  $region79: #{tpu_custom_call.1} parent=0 // pred_check_branch
    %129 = sbr.rel (0) target = $region81
  $region80: #{tpu_custom_call.1} parent=0 // pred_region
    _
  $region81: #{tpu_custom_call.1} parent=0 // pred_fallthru
    _
  // Predicated region
  $region82: #{tpu_custom_call.1} parent=0 // pred_check
    _
  $region83: #{tpu_custom_call.1} parent=0 // pred_check_branch
    %131 = sbr.rel (0) target = $region85
  $region84: #{tpu_custom_call.1} parent=0 // pred_region
    _
  $region85: #{tpu_custom_call.1} parent=0 // pred_fallthru
    _
  // Predicated region
  $region86: #{tpu_custom_call.1} parent=0 // pred_check
    _
  $region87: #{tpu_custom_call.1} parent=0 // pred_check_branch
    %133 = sbr.rel (0) target = $region89
  $region88: #{tpu_custom_call.1} parent=0 // pred_region
    _
  $region89: #{tpu_custom_call.1} parent=0 // pred_fallthru
    _
  // Predicated region
  $region90: #{tpu_custom_call.1} parent=0 // pred_check
    _
  $region91: #{tpu_custom_call.1} parent=0 // pred_check_branch
    %135 = sbr.rel (0) target = $region93
  $region92: #{tpu_custom_call.1} parent=0 // pred_region
    _
  $region93: #{tpu_custom_call.1} parent=0 // pred_fallthru
    _
  // Predicated region
  $region94: #{tpu_custom_call.1} parent=0 // pred_check
    _
  $region95: #{tpu_custom_call.1} parent=0 // pred_check_branch
    %137 = sbr.rel (0) target = $region97
  $region96: #{tpu_custom_call.1} parent=0 // pred_region
    _
  $region97: #{tpu_custom_call.1} parent=0 // pred_fallthru
    _
  // Predicated region
  $region98: #{tpu_custom_call.1} parent=0 // pred_check
    _
  $region99: #{tpu_custom_call.1} parent=0 // pred_check_branch
    %139 = sbr.rel (0) target = $region101
  $region100: #{tpu_custom_call.1} parent=0 // pred_region
    _
  $region101: #{tpu_custom_call.1} parent=0 // pred_fallthru
    _
  // Predicated region
  $region102: #{tpu_custom_call.1} parent=0 // pred_check
    _
  $region103: #{tpu_custom_call.1} parent=0 // pred_check_branch
    %141 = sbr.rel (0) target = $region105
  $region104: #{tpu_custom_call.1} parent=0 // pred_region
    _
  $region105: #{tpu_custom_call.1} parent=0 // pred_fallthru
    _
  // Predicated region
  $region106: #{tpu_custom_call.1} parent=0 // pred_check
    _
  $region107: #{tpu_custom_call.1} parent=0 // pred_check_branch
    %143 = sbr.rel (0) target = $region109
  $region108: #{tpu_custom_call.1} parent=0 // pred_region
    _
  $region109: #{tpu_custom_call.1} parent=0 // pred_fallthru
    _
  // Predicated region
  $region110: #{tpu_custom_call.1} parent=0 // pred_check
    _
  $region111: #{tpu_custom_call.1} parent=0 // pred_check_branch
    %145 = sbr.rel (0) target = $region113
  $region112: #{tpu_custom_call.1} parent=0 // pred_region
    _
  $region113: #{tpu_custom_call.1} parent=0 // pred_fallthru
    _
  // Predicated region
  $region114: #{tpu_custom_call.1} parent=0 // pred_check
    _
  $region115: #{tpu_custom_call.1} parent=0 // pred_check_branch
    %147 = sbr.rel (0) target = $region117
  $region116: #{tpu_custom_call.1} parent=0 // pred_region
    _
  $region117: #{tpu_custom_call.1} parent=0 // pred_fallthru
    _
  // Predicated region
  $region118: #{tpu_custom_call.1} parent=0 // pred_check
    _
  $region119: #{tpu_custom_call.1} parent=0 // pred_check_branch
    %149 = sbr.rel (0) target = $region121
  $region120: #{tpu_custom_call.1} parent=0 // pred_region
    _
  $region121: #{tpu_custom_call.1} parent=0 // pred_fallthru
    _
  // Predicated region
  $region122: #{tpu_custom_call.1} parent=0 // pred_check
    _
  $region123: #{tpu_custom_call.1} parent=0 // pred_check_branch
    %151 = sbr.rel (0) target = $region125
  $region124: #{tpu_custom_call.1} parent=0 // pred_region
    _
  $region125: #{tpu_custom_call.1} parent=0 // pred_fallthru
    _
  // Predicated region
  $region126: #{tpu_custom_call.1} parent=0 // pred_check
    _
  $region127: #{tpu_custom_call.1} parent=0 // pred_check_branch
    %153 = sbr.rel (0) target = $region129
  $region128: #{tpu_custom_call.1} parent=0 // pred_region
    _
  $region129: #{tpu_custom_call.1} parent=0 // pred_fallthru
    _
  // Predicated region
  $region130: #{tpu_custom_call.1} parent=0 // pred_check
    _
  $region131: #{tpu_custom_call.1} parent=0 // pred_check_branch
    %155 = sbr.rel (0) target = $region133
  $region132: #{tpu_custom_call.1} parent=0 // pred_region
    _
  $region133: #{tpu_custom_call.1} parent=0 // pred_fallthru
    _
  // Predicated region
  $region134: #{tpu_custom_call.1} parent=0 // pred_check
    _
  $region135: #{tpu_custom_call.1} parent=0 // pred_check_branch
    %157 = sbr.rel (0) target = $region137
  $region136: #{tpu_custom_call.1} parent=0 // pred_region
    _
  $region137: #{tpu_custom_call.1} parent=0 // pred_fallthru
    _
  // Predicated region
  $region138: #{tpu_custom_call.1} parent=0 // pred_check
    _
  $region139: #{tpu_custom_call.1} parent=0 // pred_check_branch
    %159 = sbr.rel (0) target = $region141
  $region140: #{tpu_custom_call.1} parent=0 // pred_region
    _
  $region141: #{tpu_custom_call.1} parent=0 // pred_fallthru
    _
  // Predicated region
  $region142: #{tpu_custom_call.1} parent=0 // pred_check
    _
  $region143: #{tpu_custom_call.1} parent=0 // pred_check_branch
    %161 = sbr.rel (0) target = $region145
  $region144: #{tpu_custom_call.1} parent=0 // pred_region
    _
  $region145: #{tpu_custom_call.1} parent=0 // pred_fallthru
    _
  // Predicated region
  $region146: #{tpu_custom_call.1} parent=0 // pred_check
    _
  $region147: #{tpu_custom_call.1} parent=0 // pred_check_branch
    %163 = sbr.rel (0) target = $region149
  $region148: #{tpu_custom_call.1} parent=0 // pred_region
    _
  $region149: #{tpu_custom_call.1} parent=0 // pred_fallthru
    _
  // Predicated region
  $region150: #{tpu_custom_call.1} parent=0 // pred_check
    _
  $region151: #{tpu_custom_call.1} parent=0 // pred_check_branch
    %165 = sbr.rel (0) target = $region153
  $region152: #{tpu_custom_call.1} parent=0 // pred_region
    _
  $region153: #{tpu_custom_call.1} parent=0 // pred_fallthru
    _
  // Predicated region
  $region154: #{tpu_custom_call.1} parent=0 // pred_check
    _
  $region155: #{tpu_custom_call.1} parent=0 // pred_check_branch
    %167 = sbr.rel (0) target = $region157
  $region156: #{tpu_custom_call.1} parent=0 // pred_region
    _
  $region157: #{tpu_custom_call.1} parent=0 // pred_fallthru
    _
  // Predicated region
  $region158: #{tpu_custom_call.1} parent=0 // pred_check
    _
  $region159: #{tpu_custom_call.1} parent=0 // pred_check_branch
    %169 = sbr.rel (0) target = $region161
  $region160: #{tpu_custom_call.1} parent=0 // pred_region
    _
  $region161: #{tpu_custom_call.1} parent=0 // pred_fallthru
    _
  // Predicated region
  $region162: #{tpu_custom_call.1} parent=0 // pred_check
    _
  $region163: #{tpu_custom_call.1} parent=0 // pred_check_branch
    %171 = sbr.rel (0) target = $region165
  $region164: #{tpu_custom_call.1} parent=0 // pred_region
    _
  $region165: #{tpu_custom_call.1} parent=0 // pred_fallthru
    _
  %v172 = vld [vmem:[%s1] sm:$0xff]
  %v173 = vld [vmem:[%s1 + $0x8] sm:$0xff]
  %v174 = vld [vmem:[%s3] sm:$0xff]
  %v175 = vld [vmem:[%s3 + $0x8] sm:$0xff]
  %v176 = vld [vmem:[%s7] sm:$0x3]
  %v177 = vld [vmem:[%s9] sm:$0xff]
  %v178 = vld [vmem:[%s9 + $0x8] sm:$0xff]
  %v179 = vld [vmem:[%s9 + $0x10] sm:$0xff]
  %v180 = vld [vmem:[%s9 + $0x18] sm:$0xff]
  %v181 = vld [vmem:[%s9 + $0x20] sm:$0xff]
  %v182 = vld [vmem:[%s9 + $0x28] sm:$0xff]
  %v183 = vld [vmem:[%s9 + $0x30] sm:$0xff]
  %v184 = vld [vmem:[%s9 + $0x38] sm:$0xff]
  %v185 = vld [vmem:[%s11] sm:$0xff]
  %v186 = vld [vmem:[%s11 + $0x8] sm:$0x3]
  %v187 = vld [vmem:[%s13] sm:$0x1]
  %v188 = vld [vmem:[%s15] sm:$0x1]
  %v189 = vld [vmem:[%s17] sm:$0x1]
  %v190 = vld [vmem:[%s19] sm:$0xff]
  %v191 = vld [vmem:[%s19 + $0x8] sm:$0xff]
  %v192 = vld [vmem:[%s19 + $0x10] sm:$0xff]
  %v193 = vld [vmem:[%s19 + $0x18] sm:$0xff]
  %v194 = vld [vmem:[%s21] sm:$0x1]
  %v195 = vld [vmem:[%s23] sm:$0xff]
  %v196 = vld [vmem:[%s23 + $0x8] sm:$0xff]
  %v197 = vld [vmem:[%s23 + $0x10] sm:$0xff]
  %v198 = vld [vmem:[%s23 + $0x18] sm:$0xff]
  %v199 = vld [vmem:[%s25] sm:$0x1]
  %v200 = vld [vmem:[%s27] sm:$0x1]
  %v201 = vld [vmem:[%s29] sm:$0x1]
  %v202 = vld [vmem:[%s31] sm:$0xff]
  %v203 = vld [vmem:[%s31 + $0x8] sm:$0xff]
  %v204 = vld [vmem:[%s31 + $0x10] sm:$0xff]
  %v205 = vld [vmem:[%s31 + $0x18] sm:$0xff]
  %v206 = vld [vmem:[%s33] sm:$0x1]
  %v207 = vld [vmem:[%s35] sm:$0xff]
  %v208 = vld [vmem:[%s35 + $0x8] sm:$0xff]
  %v209 = vld [vmem:[%s35 + $0x10] sm:$0xff]
  %v210 = vld [vmem:[%s35 + $0x18] sm:$0xff]
  %v211 = vld [vmem:[%s35 + $0x20] sm:$0xff]
  %v212 = vld [vmem:[%s35 + $0x28] sm:$0xff]
  %v213 = vld [vmem:[%s35 + $0x30] sm:$0xff]
  %v214 = vld [vmem:[%s35 + $0x38] sm:$0xff]
  %v215 = vld [vmem:[%s37] sm:$0x1]
  %v216 = vld [vmem:[%s39] sm:$0x1]
  %v217 = vld [vmem:[%s41] sm:$0x1]
  %v218 = vld [vmem:[%s43] sm:$0xff]
  %v219 = vld [vmem:[%s43 + $0x8] sm:$0xff]
  %v220 = vld [vmem:[%s43 + $0x10] sm:$0xff]
  %v221 = vld [vmem:[%s43 + $0x18] sm:$0xff]
  %v222 = vld [vmem:[%s45] sm:$0x1]
  %v223 = vld [vmem:[%s47] sm:$0xff]
  %v224 = vld [vmem:[%s47 + $0x8] sm:$0xff]
  %v225 = vld [vmem:[%s47 + $0x10] sm:$0xff]
  %v226 = vld [vmem:[%s47 + $0x18] sm:$0xff]
  %v227 = vld [vmem:[%s49] sm:$0x1]
  %v228 = vld [vmem:[%s51] sm:$0x1]
  %v229 = vld [vmem:[%s53] sm:$0x1]
  %v230 = vld [vmem:[%s55] sm:$0xff]
  %v231 = vld [vmem:[%s55 + $0x8] sm:$0xff]
  %v232 = vld [vmem:[%s55 + $0x10] sm:$0xff]
  %v233 = vld [vmem:[%s55 + $0x18] sm:$0xff]
  %v234 = vld [vmem:[%s57] sm:$0x1]
  %v235 = vld [vmem:[%s59] sm:$0xff]
  %v236 = vld [vmem:[%s59 + $0x8] sm:$0xff]
  %v237 = vld [vmem:[%s59 + $0x10] sm:$0xff]
  %v238 = vld [vmem:[%s59 + $0x18] sm:$0xff]
  %v239 = vld [vmem:[%s59 + $0x20] sm:$0xff]
  %v240 = vld [vmem:[%s59 + $0x28] sm:$0xff]
  %v241 = vld [vmem:[%s59 + $0x30] sm:$0xff]
  %v242 = vld [vmem:[%s59 + $0x38] sm:$0xff]
  %v243 = vld [vmem:[%s61] sm:$0x1]
  %v244 = vld [vmem:[%s63] sm:$0x1]
  %v245 = vld [vmem:[%s65] sm:$0x1]
  %v246 = vld [vmem:[%s67] sm:$0xff]
  %v247 = vld [vmem:[%s67 + $0x8] sm:$0xff]
  %v248 = vld [vmem:[%s67 + $0x10] sm:$0xff]
  %v249 = vld [vmem:[%s67 + $0x18] sm:$0xff]
  %v250 = vld [vmem:[%s69] sm:$0x1]
  %v251 = vld [vmem:[%s71] sm:$0xff]
  %v252 = vld [vmem:[%s71 + $0x8] sm:$0xff]
  %v253 = vld [vmem:[%s71 + $0x10] sm:$0xff]
  %v254 = vld [vmem:[%s71 + $0x18] sm:$0xff]
  %v255 = vld [vmem:[%s73] sm:$0x1]
  %v256 = vld [vmem:[%s75] sm:$0xff]
  %v257 = vld [vmem:[%s75 + $0x8] sm:$0xff]
  %v258 = vld [vmem:[%s75 + $0x10] sm:$0xf]
  %v259 = vld [vmem:[%s77] sm:$0x1]
  %v260 = vld [vmem:[%s79] sm:$0xff]
  %v261 = vld [vmem:[%s79 + $0x8] sm:$0xff]
  %v262 = vld [vmem:[%s79 + $0x10] sm:$0xf]
  %v263 = vld [vmem:[#allocation2] sm:$0x1]
  %v264 = vlaneseq
  %v265 = vand.u32 %v264, 127
  %266 = vset.pattern.permute.xlu0 0
  %267 = vperm.xlu0 %266, %v172
  %v268 = vpop.permute.xlu0 %267
  %269 = vset.pattern.permute.xlu0 0
  %270 = vperm.xlu0 %269, %v173
  %v271 = vpop.permute.xlu0 %270
  %vm272 = vcmp.eq.s32.totalorder %v268, %v265
  %vm273 = vcmp.eq.s32.totalorder %v271, %v265
  %v274 = vsel %vm272, 1, 0
  %v275 = vsel %vm273, 1, 0
  %v276 = vcvt.s32.f32 %v274
  %v277 = vcvt.s32.f32 %v275
  %278 = vset.pattern.permute.xlu0 0
  %279 = vperm.xlu0 %278, %v174
  %v280 = vpop.permute.xlu0 %279
  %281 = vset.pattern.permute.xlu0 0
  %282 = vperm.xlu0 %281, %v175
  %v283 = vpop.permute.xlu0 %282
  %vm284 = vcmp.eq.s32.totalorder %v280, %v265
  %vm285 = vcmp.eq.s32.totalorder %v283, %v265
  %v286 = vsel %vm284, 1, 0
  %v287 = vsel %vm285, 1, 0
  %v288 = vcvt.s32.f32 %v286
  %v289 = vcvt.s32.f32 %v287
  %vm290 = vcmask 80896
  %v292 = vsel %vm290, %v288, 0
  %v295 = vsel %vm290, %v289, 0
  %vm297 = vcmask 1041408
  %v299 = vsel %vm297, %v186, 0
  %301 = vmatprep.subr.mxu0 0.0
  %302 = vmatpush1.msra.mxu0 0.0
  %303 = vmatprep.subr.mxu0 0.0
  %304 = vmatpush1.msra.mxu0 0.0
  %305 = vmatprep.subr.mxu0 0.0
  %306 = vmatpush1.msra.mxu0 0.0
  %307 = vmatprep.subr.mxu0 0.0
  %308 = vmatpush1.msra.mxu0 0.0
  %309 = vmatprep.subr.mxu0 0.0
  %310 = vmatpush1.msra.mxu0 0.0
  %311 = vmatprep.subr.mxu0 0.0
  %312 = vmatpush1.msra.mxu0 0.0
  %313 = vmatprep.subr.mxu0 0.0
  %314 = vmatpush1.msra.mxu0 0.0
  %315 = vmatprep.subr.mxu0 0.0
  %316 = vmatpush1.msra.mxu0 0.0
  %317 = vmatprep.subr.mxu0 0.0
  %318 = vmatpush1.msra.mxu0 0.0
  %319 = vmatprep.subr.mxu0 0.0
  %320 = vmatpush1.msra.mxu0 0.0
  %321 = vmatprep.subr.mxu0 0.0
  %322 = vmatpush1.msra.mxu0 0.0
  %323 = vmatprep.subr.mxu0 0.0
  %324 = vmatpush1.msra.mxu0 0.0
  %325 = vmatprep.subr.mxu0 0.0
  %326 = vmatpush1.msra.mxu0 0.0
  %327 = vmatprep.subr.mxu0 0.0
  %328 = vmatpush1.msra.mxu0 0.0
  %329 = vmatprep.subr.mxu0 0.0
  %330 = vmatpush1.msra.mxu0 %v299
  %331 = vmatprep.subr.mxu0 0.0
  %332 = vmatpush1.msra.mxu0 %v185
  %333 = vmatprep.subr.mxu0 0.0
  %334 = vmatpush2.msra.mxu0 0.0
  %335 = vmatprep.subr.mxu0 0.0
  %336 = vmatpush2.msra.mxu0 0.0
  %337 = vmatprep.subr.mxu0 0.0
  %338 = vmatpush2.msra.mxu0 0.0
  %339 = vmatprep.subr.mxu0 0.0
  %340 = vmatpush2.msra.mxu0 0.0
  %341 = vmatprep.subr.mxu0 0.0
  %342 = vmatpush2.msra.mxu0 0.0
  %343 = vmatprep.subr.mxu0 0.0
  %344 = vmatpush2.msra.mxu0 0.0
  %345 = vmatprep.subr.mxu0 0.0
  %346 = vmatpush2.msra.mxu0 0.0
  %347 = vmatprep.subr.mxu0 0.0
  %348 = vmatpush2.msra.mxu0 0.0
  %349 = vmatprep.subr.mxu0 0.0
  %350 = vmatpush2.msra.mxu0 0.0
  %351 = vmatprep.subr.mxu0 0.0
  %352 = vmatpush2.msra.mxu0 0.0
  %353 = vmatprep.subr.mxu0 0.0
  %354 = vmatpush2.msra.mxu0 0.0
  %355 = vmatprep.subr.mxu0 0.0
  %356 = vmatpush2.msra.mxu0 0.0
  %357 = vmatprep.subr.mxu0 0.0
  %358 = vmatpush2.msra.mxu0 0.0
  %359 = vmatprep.subr.mxu0 0.0
  %360 = vmatpush2.msra.mxu0 0.0
  %361 = vmatprep.subr.mxu0 0.0
  %362 = vmatpush2.msra.mxu0 0.0
  %363 = vmatprep.subr.mxu0 0.0
  %364 = vmatpush2.msra.mxu0 0.0
  %365 = vmatprep.mubr.f32.mxu0 0.0
  %366 = vmatmul.mubr.f32.gmra.mxu0 %v292
  %v367 = vpop.f32.mrf.mxu0
  %v368 = vadd.f32 0.0, %v367
  %v369 = vpop.f32.mrf.mxu0
  %370 = vmatprep.mubr.f32.mxu0 0.0
  %371 = vmatmul.mubr.f32.gmra.mxu0 %v295
  %v372 = vpop.f32.mrf.mxu0
  %v373 = vadd.f32 0.0, %v372
  %v374 = vpop.f32.mrf.mxu0
  %375 = vdwg.mxu0
  %vm376 = vcmask 523264
  %v378 = vsel %vm376, %v276, 0
  %v381 = vsel %vm376, %v277, 0
  %383 = vmatprep.subr.mxu0 0.0
  %384 = vmatpush1.msra.mxu0 0.0
  %385 = vmatprep.subr.mxu0 0.0
  %386 = vmatpush1.msra.mxu0 0.0
  %387 = vmatprep.subr.mxu0 0.0
  %388 = vmatpush1.msra.mxu0 0.0
  %389 = vmatprep.subr.mxu0 0.0
  %390 = vmatpush1.msra.mxu0 0.0
  %391 = vmatprep.subr.mxu0 0.0
  %392 = vmatpush1.msra.mxu0 0.0
  %393 = vmatprep.subr.mxu0 0.0
  %394 = vmatpush1.msra.mxu0 0.0
  %395 = vmatprep.subr.mxu0 0.0
  %396 = vmatpush1.msra.mxu0 0.0
  %397 = vmatprep.subr.mxu0 0.0
  %398 = vmatpush1.msra.mxu0 0.0
  %399 = vmatprep.subr.mxu0 0.0
  %400 = vmatpush1.msra.mxu0 %v184
  %401 = vmatprep.subr.mxu0 0.0
  %402 = vmatpush1.msra.mxu0 %v183
  %403 = vmatprep.subr.mxu0 0.0
  %404 = vmatpush1.msra.mxu0 %v182
  %405 = vmatprep.subr.mxu0 0.0
  %406 = vmatpush1.msra.mxu0 %v181
  %407 = vmatprep.subr.mxu0 0.0
  %408 = vmatpush1.msra.mxu0 %v180
  %409 = vmatprep.subr.mxu0 0.0
  %410 = vmatpush1.msra.mxu0 %v179
  %411 = vmatprep.subr.mxu0 0.0
  %412 = vmatpush1.msra.mxu0 %v178
  %413 = vmatprep.subr.mxu0 0.0
  %414 = vmatpush1.msra.mxu0 %v177
  %415 = vmatprep.subr.mxu0 0.0
  %416 = vmatpush2.msra.mxu0 0.0
  %417 = vmatprep.subr.mxu0 0.0
  %418 = vmatpush2.msra.mxu0 0.0
  %419 = vmatprep.subr.mxu0 0.0
  %420 = vmatpush2.msra.mxu0 0.0
  %421 = vmatprep.subr.mxu0 0.0
  %422 = vmatpush2.msra.mxu0 0.0
  %423 = vmatprep.subr.mxu0 0.0
  %424 = vmatpush2.msra.mxu0 0.0
  %425 = vmatprep.subr.mxu0 0.0
  %426 = vmatpush2.msra.mxu0 0.0
  %427 = vmatprep.subr.mxu0 0.0
  %428 = vmatpush2.msra.mxu0 0.0
  %429 = vmatprep.subr.mxu0 0.0
  %430 = vmatpush2.msra.mxu0 0.0
  %431 = vmatprep.subr.mxu0 0.0
  %432 = vmatpush2.msra.mxu0 0.0
  %433 = vmatprep.subr.mxu0 0.0
  %434 = vmatpush2.msra.mxu0 0.0
  %435 = vmatprep.subr.mxu0 0.0
  %436 = vmatpush2.msra.mxu0 0.0
  %437 = vmatprep.subr.mxu0 0.0
  %438 = vmatpush2.msra.mxu0 0.0
  %439 = vmatprep.subr.mxu0 0.0
  %440 = vmatpush2.msra.mxu0 0.0
  %441 = vmatprep.subr.mxu0 0.0
  %442 = vmatpush2.msra.mxu0 0.0
  %443 = vmatprep.subr.mxu0 0.0
  %444 = vmatpush2.msra.mxu0 0.0
  %445 = vmatprep.subr.mxu0 0.0
  %446 = vmatpush2.msra.mxu0 0.0
  %447 = vmatprep.mubr.f32.mxu0 0.0
  %448 = vmatmul.mubr.f32.gmra.mxu0 %v378
  %v449 = vpop.f32.mrf.mxu0
  %v450 = vadd.f32 %v368, %v449
  %v451 = vpop.f32.mrf.mxu0
  %452 = vmatprep.mubr.f32.mxu0 0.0
  %453 = vmatmul.mubr.f32.gmra.mxu0 %v381
  %v454 = vpop.f32.mrf.mxu0
  %v455 = vadd.f32 %v373, %v454
  %v456 = vpop.f32.mrf.mxu0
  %457 = vdwg.mxu0
  %v459 = vlaneseq
  %v460 = vshrl.u32 %v459, 7
  %v461 = vsub.s32 0, %v460
  %v462 = vrot.slane %v187, %v461
  %v464 = vadd.f32 %v450, %v462
  %v465 = vadd.f32 %v455, %v462
  %vm466 = vcmask 261120
  %v467 = vsel %vm466, %v464, 0.0
  %468 = vadd.xlane.f32.xlu0 %v467
  %v469 = vpop.xlane.xlu0 %468
  %v470 = vsel %vm466, %v465, 0.0
  %471 = vadd.xlane.f32.xlu0 %v470
  %v472 = vpop.xlane.xlu0 %471
  %v473 = vrcp.pop 32.0
  %v474 = vmul.f32 %v469, %v473
  %v475 = vmul.f32 %v472, %v473
  %v476 = vsub.f32 %v464, %v474
  %v477 = vsub.f32 %v465, %v475
  %v478 = vmul.f32 %v476, %v476
  %v479 = vmul.f32 %v477, %v477
  %v480 = vsel %vm466, %v478, 0.0
  %481 = vadd.xlane.f32.xlu0 %v480
  %v482 = vpop.xlane.xlu0 %481
  %v483 = vsel %vm466, %v479, 0.0
  %484 = vadd.xlane.f32.xlu0 %v483
  %v485 = vpop.xlane.xlu0 %484
  %v486 = vmul.f32 %v482, %v473
  %v487 = vmul.f32 %v485, %v473
  %v488 = vadd.f32 %v486, 1e-05
  %v489 = vadd.f32 %v487, 1e-05
  %v490 = vrsqrt.pop %v488
  %v491 = vrsqrt.pop %v489
  %v492 = vmul.f32 %v476, %v490
  %v493 = vmul.f32 %v477, %v491
  %v495 = vlaneseq
  %v496 = vshrl.u32 %v495, 7
  %v497 = vsub.s32 0, %v496
  %v498 = vrot.slane %v188, %v497
  %v500 = vmul.f32 %v492, %v498
  %v501 = vmul.f32 %v493, %v498
  %v503 = vlaneseq
  %v504 = vshrl.u32 %v503, 7
  %v505 = vsub.s32 0, %v504
  %v506 = vrot.slane %v189, %v505
  %v508 = vadd.f32 %v500, %v506
  %v509 = vadd.f32 %v501, %v506
  %v510 = vsub.f32 1.0, %v176
  %v511 = vmul.f32 %v510, -1e+09
  %v513 = vlaneseq
  %v514 = vshrl.u32 %v513, 7
  %v515 = vsub.s32 0, %v514
  %v516 = vrot.slane %v194, %v515
  %v519 = vsel %vm466, %v508, 0
  %v522 = vsel %vm466, %v509, 0
  %524 = vmatprep.subr.mxu0 0.0
  %525 = vmatpush1.msra.mxu0 0.0
  %526 = vmatprep.subr.mxu0 0.0
  %527 = vmatpush1.msra.mxu0 0.0
  %528 = vmatprep.subr.mxu0 0.0
  %529 = vmatpush1.msra.mxu0 0.0
  %530 = vmatprep.subr.mxu0 0.0
  %531 = vmatpush1.msra.mxu0 0.0
  %532 = vmatprep.subr.mxu0 0.0
  %533 = vmatpush1.msra.mxu0 0.0
  %534 = vmatprep.subr.mxu0 0.0
  %535 = vmatpush1.msra.mxu0 0.0
  %536 = vmatprep.subr.mxu0 0.0
  %537 = vmatpush1.msra.mxu0 0.0
  %538 = vmatprep.subr.mxu0 0.0
  %539 = vmatpush1.msra.mxu0 0.0
  %540 = vmatprep.subr.mxu0 0.0
  %541 = vmatpush1.msra.mxu0 0.0
  %542 = vmatprep.subr.mxu0 0.0
  %543 = vmatpush1.msra.mxu0 0.0
  %544 = vmatprep.subr.mxu0 0.0
  %545 = vmatpush1.msra.mxu0 0.0
  %546 = vmatprep.subr.mxu0 0.0
  %547 = vmatpush1.msra.mxu0 0.0
  %548 = vmatprep.subr.mxu0 0.0
  %549 = vmatpush1.msra.mxu0 %v193
  %550 = vmatprep.subr.mxu0 0.0
  %551 = vmatpush1.msra.mxu0 %v192
  %552 = vmatprep.subr.mxu0 0.0
  %553 = vmatpush1.msra.mxu0 %v191
  %554 = vmatprep.subr.mxu0 0.0
  %555 = vmatpush1.msra.mxu0 %v190
  %556 = vmatprep.subr.mxu0 0.0
  %557 = vmatpush2.msra.mxu0 0.0
  %558 = vmatprep.subr.mxu0 0.0
  %559 = vmatpush2.msra.mxu0 0.0
  %560 = vmatprep.subr.mxu0 0.0
  %561 = vmatpush2.msra.mxu0 0.0
  %562 = vmatprep.subr.mxu0 0.0
  %563 = vmatpush2.msra.mxu0 0.0
  %564 = vmatprep.subr.mxu0 0.0
  %565 = vmatpush2.msra.mxu0 0.0
  %566 = vmatprep.subr.mxu0 0.0
  %567 = vmatpush2.msra.mxu0 0.0
  %568 = vmatprep.subr.mxu0 0.0
  %569 = vmatpush2.msra.mxu0 0.0
  %570 = vmatprep.subr.mxu0 0.0
  %571 = vmatpush2.msra.mxu0 0.0
  %572 = vmatprep.subr.mxu0 0.0
  %573 = vmatpush2.msra.mxu0 0.0
  %574 = vmatprep.subr.mxu0 0.0
  %575 = vmatpush2.msra.mxu0 0.0
  %576 = vmatprep.subr.mxu0 0.0
  %577 = vmatpush2.msra.mxu0 0.0
  %578 = vmatprep.subr.mxu0 0.0
  %579 = vmatpush2.msra.mxu0 0.0
  %580 = vmatprep.subr.mxu0 0.0
  %581 = vmatpush2.msra.mxu0 0.0
  %582 = vmatprep.subr.mxu0 0.0
  %583 = vmatpush2.msra.mxu0 0.0
  %584 = vmatprep.subr.mxu0 0.0
  %585 = vmatpush2.msra.mxu0 0.0
  %586 = vmatprep.subr.mxu0 0.0
  %587 = vmatpush2.msra.mxu0 0.0
  %588 = vmatprep.mubr.f32.mxu0 0.0
  %589 = vmatmul.mubr.f32.gmra.mxu0 %v519
  %v590 = vpop.f32.mrf.mxu0
  %v591 = vadd.f32 %v516, %v590
  %v592 = vpop.f32.mrf.mxu0
  %593 = vmatprep.mubr.f32.mxu0 0.0
  %594 = vmatmul.mubr.f32.gmra.mxu0 %v522
  %v595 = vpop.f32.mrf.mxu0
  %v596 = vadd.f32 %v516, %v595
  %v597 = vpop.f32.mrf.mxu0
  %598 = vdwg.mxu0
  %600 = vrot.lane.b32.xlu0 %v591, 96
  %v601 = vpop.permute.xlu0 %600
  %vm602 = vcmask 130048
  %v603 = vsel %vm602, %v591, 0
  %v605 = vsel %vm602, %v601, 0
  %607 = vmatprep.subr.mxu0 0.0
  %608 = vmatpush1.xpose.msra.mxu0 0.0
  %609 = vmatprep.subr.mxu0 0.0
  %610 = vmatpush1.xpose.msra.mxu0 0.0
  %611 = vmatprep.subr.mxu0 0.0
  %612 = vmatpush1.xpose.msra.mxu0 0.0
  %613 = vmatprep.subr.mxu0 0.0
  %614 = vmatpush1.xpose.msra.mxu0 0.0
  %615 = vmatprep.subr.mxu0 0.0
  %616 = vmatpush1.xpose.msra.mxu0 0.0
  %617 = vmatprep.subr.mxu0 0.0
  %618 = vmatpush1.xpose.msra.mxu0 0.0
  %619 = vmatprep.subr.mxu0 0.0
  %620 = vmatpush1.xpose.msra.mxu0 0.0
  %621 = vmatprep.subr.mxu0 0.0
  %622 = vmatpush1.xpose.msra.mxu0 0.0
  %623 = vmatprep.subr.mxu0 0.0
  %624 = vmatpush1.xpose.msra.mxu0 0.0
  %625 = vmatprep.subr.mxu0 0.0
  %626 = vmatpush1.xpose.msra.mxu0 0.0
  %627 = vmatprep.subr.mxu0 0.0
  %628 = vmatpush1.xpose.msra.mxu0 0.0
  %629 = vmatprep.subr.mxu0 0.0
  %630 = vmatpush1.xpose.msra.mxu0 0.0
  %631 = vmatprep.subr.mxu0 0.0
  %632 = vmatpush1.xpose.msra.mxu0 0.0
  %633 = vmatprep.subr.mxu0 0.0
  %634 = vmatpush1.xpose.msra.mxu0 0.0
  %635 = vmatprep.subr.mxu0 0.0
  %636 = vmatpush1.xpose.msra.mxu0 0.0
  %637 = vmatprep.subr.mxu0 0.0
  %638 = vmatpush1.xpose.msra.mxu0 %v605
  %639 = vmatprep.subr.mxu0 0.0
  %640 = vmatpush2.xpose.msra.mxu0 0.0
  %641 = vmatprep.subr.mxu0 0.0
  %642 = vmatpush2.xpose.msra.mxu0 0.0
  %643 = vmatprep.subr.mxu0 0.0
  %644 = vmatpush2.xpose.msra.mxu0 0.0
  %645 = vmatprep.subr.mxu0 0.0
  %646 = vmatpush2.xpose.msra.mxu0 0.0
  %647 = vmatprep.subr.mxu0 0.0
  %648 = vmatpush2.xpose.msra.mxu0 0.0
  %649 = vmatprep.subr.mxu0 0.0
  %650 = vmatpush2.xpose.msra.mxu0 0.0
  %651 = vmatprep.subr.mxu0 0.0
  %652 = vmatpush2.xpose.msra.mxu0 0.0
  %653 = vmatprep.subr.mxu0 0.0
  %654 = vmatpush2.xpose.msra.mxu0 0.0
  %655 = vmatprep.subr.mxu0 0.0
  %656 = vmatpush2.xpose.msra.mxu0 0.0
  %657 = vmatprep.subr.mxu0 0.0
  %658 = vmatpush2.xpose.msra.mxu0 0.0
  %659 = vmatprep.subr.mxu0 0.0
  %660 = vmatpush2.xpose.msra.mxu0 0.0
  %661 = vmatprep.subr.mxu0 0.0
  %662 = vmatpush2.xpose.msra.mxu0 0.0
  %663 = vmatprep.subr.mxu0 0.0
  %664 = vmatpush2.xpose.msra.mxu0 0.0
  %665 = vmatprep.subr.mxu0 0.0
  %666 = vmatpush2.xpose.msra.mxu0 0.0
  %667 = vmatprep.subr.mxu0 0.0
  %668 = vmatpush2.xpose.msra.mxu0 0.0
  %669 = vmatprep.subr.mxu0 0.0
  %670 = vmatpush2.xpose.msra.mxu0 0.0
  %671 = vmatprep.mubr.f32.mxu0 0.0
  %672 = vmatmul.mubr.f32.gmra.mxu0 %v603
  %v673 = vpop.f32.mrf.mxu0
  %v674 = vadd.f32 0.0, %v673
  %v675 = vpop.f32.mrf.mxu0
  %676 = vdwg.mxu0
  %v677 = vmul.f32 %v674, 0.25
  %v678 = vlaneseq
  %v679 = vshrl.u32 %v678, 7
  %v680 = vsub.s32 0, %v679
  %v681 = vrot.slane %v511, %v680
  %v682 = vadd.f32 %v677, %v681
  %vm683 = vcmask 64512
  %v684 = vsel %vm683, %v682, -inf
  %685 = vmax.xlane.f32.xlu0 %v684
  %v686 = vpop.xlane.xlu0 %685
  %v687 = vsub.f32 %v682, %v686
  %v688 = vmul.f32 %v687, 1.442695
  %v689 = vpow.pop %v688
  %v690 = vsel %vm683, %v689, 0.0
  %691 = vadd.xlane.f32.xlu0 %v690
  %v692 = vpop.xlane.xlu0 %691
  %v693 = vrcp.pop %v692
  %v694 = vmul.f32 %v689, %v693
  %695 = vrot.lane.b32.xlu0 %v591, 64
  %v696 = vpop.permute.xlu0 %695
  %v699 = vsel %vm683, %v694, 0
  %701 = vmatprep.subr.mxu0 0.0
  %702 = vmatpush1.msra.mxu0 0.0
  %703 = vmatprep.subr.mxu0 0.0
  %704 = vmatpush1.msra.mxu0 0.0
  %705 = vmatprep.subr.mxu0 0.0
  %706 = vmatpush1.msra.mxu0 0.0
  %707 = vmatprep.subr.mxu0 0.0
  %708 = vmatpush1.msra.mxu0 0.0
  %709 = vmatprep.subr.mxu0 0.0
  %710 = vmatpush1.msra.mxu0 0.0
  %711 = vmatprep.subr.mxu0 0.0
  %712 = vmatpush1.msra.mxu0 0.0
  %713 = vmatprep.subr.mxu0 0.0
  %714 = vmatpush1.msra.mxu0 0.0
  %715 = vmatprep.subr.mxu0 0.0
  %716 = vmatpush1.msra.mxu0 0.0
  %717 = vmatprep.subr.mxu0 0.0
  %718 = vmatpush1.msra.mxu0 0.0
  %719 = vmatprep.subr.mxu0 0.0
  %720 = vmatpush1.msra.mxu0 0.0
  %721 = vmatprep.subr.mxu0 0.0
  %722 = vmatpush1.msra.mxu0 0.0
  %723 = vmatprep.subr.mxu0 0.0
  %724 = vmatpush1.msra.mxu0 0.0
  %725 = vmatprep.subr.mxu0 0.0
  %726 = vmatpush1.msra.mxu0 0.0
  %727 = vmatprep.subr.mxu0 0.0
  %728 = vmatpush1.msra.mxu0 0.0
  %729 = vmatprep.subr.mxu0 0.0
  %730 = vmatpush1.msra.mxu0 0.0
  %731 = vmatprep.subr.mxu0 0.0
  %732 = vmatpush1.msra.mxu0 %v696
  %733 = vmatprep.subr.mxu0 0.0
  %734 = vmatpush2.msra.mxu0 0.0
  %735 = vmatprep.subr.mxu0 0.0
  %736 = vmatpush2.msra.mxu0 0.0
  %737 = vmatprep.subr.mxu0 0.0
  %738 = vmatpush2.msra.mxu0 0.0
  %739 = vmatprep.subr.mxu0 0.0
  %740 = vmatpush2.msra.mxu0 0.0
  %741 = vmatprep.subr.mxu0 0.0
  %742 = vmatpush2.msra.mxu0 0.0
  %743 = vmatprep.subr.mxu0 0.0
  %744 = vmatpush2.msra.mxu0 0.0
  %745 = vmatprep.subr.mxu0 0.0
  %746 = vmatpush2.msra.mxu0 0.0
  %747 = vmatprep.subr.mxu0 0.0
  %748 = vmatpush2.msra.mxu0 0.0
  %749 = vmatprep.subr.mxu0 0.0
  %750 = vmatpush2.msra.mxu0 0.0
  %751 = vmatprep.subr.mxu0 0.0
  %752 = vmatpush2.msra.mxu0 0.0
  %753 = vmatprep.subr.mxu0 0.0
  %754 = vmatpush2.msra.mxu0 0.0
  %755 = vmatprep.subr.mxu0 0.0
  %756 = vmatpush2.msra.mxu0 0.0
  %757 = vmatprep.subr.mxu0 0.0
  %758 = vmatpush2.msra.mxu0 0.0
  %759 = vmatprep.subr.mxu0 0.0
  %760 = vmatpush2.msra.mxu0 0.0
  %761 = vmatprep.subr.mxu0 0.0
  %762 = vmatpush2.msra.mxu0 0.0
  %763 = vmatprep.subr.mxu0 0.0
  %764 = vmatpush2.msra.mxu0 0.0
  %765 = vmatprep.mubr.f32.mxu0 0.0
  %766 = vmatmul.mubr.f32.gmra.mxu0 %v699
  %v767 = vpop.f32.mrf.mxu0
  %v768 = vadd.f32 0.0, %v767
  %v769 = vpop.f32.mrf.mxu0
  %770 = vdwg.mxu0
  %771 = vrot.lane.b32.xlu0 %v591, 112
  %v772 = vpop.permute.xlu0 %771
  %773 = vrot.lane.b32.xlu0 %v591, 80
  %v774 = vpop.permute.xlu0 %773
  %v775 = vsel %vm602, %v772, 0
  %v777 = vsel %vm602, %v774, 0
  %779 = vmatprep.subr.mxu0 0.0
  %780 = vmatpush1.xpose.msra.mxu0 0.0
  %781 = vmatprep.subr.mxu0 0.0
  %782 = vmatpush1.xpose.msra.mxu0 0.0
  %783 = vmatprep.subr.mxu0 0.0
  %784 = vmatpush1.xpose.msra.mxu0 0.0
  %785 = vmatprep.subr.mxu0 0.0
  %786 = vmatpush1.xpose.msra.mxu0 0.0
  %787 = vmatprep.subr.mxu0 0.0
  %788 = vmatpush1.xpose.msra.mxu0 0.0
  %789 = vmatprep.subr.mxu0 0.0
  %790 = vmatpush1.xpose.msra.mxu0 0.0
  %791 = vmatprep.subr.mxu0 0.0
  %792 = vmatpush1.xpose.msra.mxu0 0.0
  %793 = vmatprep.subr.mxu0 0.0
  %794 = vmatpush1.xpose.msra.mxu0 0.0
  %795 = vmatprep.subr.mxu0 0.0
  %796 = vmatpush1.xpose.msra.mxu0 0.0
  %797 = vmatprep.subr.mxu0 0.0
  %798 = vmatpush1.xpose.msra.mxu0 0.0
  %799 = vmatprep.subr.mxu0 0.0
  %800 = vmatpush1.xpose.msra.mxu0 0.0
  %801 = vmatprep.subr.mxu0 0.0
  %802 = vmatpush1.xpose.msra.mxu0 0.0
  %803 = vmatprep.subr.mxu0 0.0
  %804 = vmatpush1.xpose.msra.mxu0 0.0
  %805 = vmatprep.subr.mxu0 0.0
  %806 = vmatpush1.xpose.msra.mxu0 0.0
  %807 = vmatprep.subr.mxu0 0.0
  %808 = vmatpush1.xpose.msra.mxu0 0.0
  %809 = vmatprep.subr.mxu0 0.0
  %810 = vmatpush1.xpose.msra.mxu0 %v777
  %811 = vmatprep.subr.mxu0 0.0
  %812 = vmatpush2.xpose.msra.mxu0 0.0
  %813 = vmatprep.subr.mxu0 0.0
  %814 = vmatpush2.xpose.msra.mxu0 0.0
  %815 = vmatprep.subr.mxu0 0.0
  %816 = vmatpush2.xpose.msra.mxu0 0.0
  %817 = vmatprep.subr.mxu0 0.0
  %818 = vmatpush2.xpose.msra.mxu0 0.0
  %819 = vmatprep.subr.mxu0 0.0
  %820 = vmatpush2.xpose.msra.mxu0 0.0
  %821 = vmatprep.subr.mxu0 0.0
  %822 = vmatpush2.xpose.msra.mxu0 0.0
  %823 = vmatprep.subr.mxu0 0.0
  %824 = vmatpush2.xpose.msra.mxu0 0.0
  %825 = vmatprep.subr.mxu0 0.0
  %826 = vmatpush2.xpose.msra.mxu0 0.0
  %827 = vmatprep.subr.mxu0 0.0
  %828 = vmatpush2.xpose.msra.mxu0 0.0
  %829 = vmatprep.subr.mxu0 0.0
  %830 = vmatpush2.xpose.msra.mxu0 0.0
  %831 = vmatprep.subr.mxu0 0.0
  %832 = vmatpush2.xpose.msra.mxu0 0.0
  %833 = vmatprep.subr.mxu0 0.0
  %834 = vmatpush2.xpose.msra.mxu0 0.0
  %835 = vmatprep.subr.mxu0 0.0
  %836 = vmatpush2.xpose.msra.mxu0 0.0
  %837 = vmatprep.subr.mxu0 0.0
  %838 = vmatpush2.xpose.msra.mxu0 0.0
  %839 = vmatprep.subr.mxu0 0.0
  %840 = vmatpush2.xpose.msra.mxu0 0.0
  %841 = vmatprep.subr.mxu0 0.0
  %842 = vmatpush2.xpose.msra.mxu0 0.0
  %843 = vmatprep.mubr.f32.mxu0 0.0
  %844 = vmatmul.mubr.f32.gmra.mxu0 %v775
  %v845 = vpop.f32.mrf.mxu0
  %v846 = vadd.f32 0.0, %v845
  %v847 = vpop.f32.mrf.mxu0
  %848 = vdwg.mxu0
  %v849 = vmul.f32 %v846, 0.25
  %v850 = vadd.f32 %v849, %v681
  %v851 = vsel %vm683, %v850, -inf
  %852 = vmax.xlane.f32.xlu0 %v851
  %v853 = vpop.xlane.xlu0 %852
  %v854 = vsub.f32 %v850, %v853
  %v855 = vmul.f32 %v854, 1.442695
  %v856 = vpow.pop %v855
  %v857 = vsel %vm683, %v856, 0.0
  %858 = vadd.xlane.f32.xlu0 %v857
  %v859 = vpop.xlane.xlu0 %858
  %v860 = vrcp.pop %v859
  %v861 = vmul.f32 %v856, %v860
  %862 = vrot.lane.b32.xlu0 %v591, 48
  %v863 = vpop.permute.xlu0 %862
  %v866 = vsel %vm683, %v861, 0
  %868 = vmatprep.subr.mxu0 0.0
  %869 = vmatpush1.msra.mxu0 0.0
  %870 = vmatprep.subr.mxu0 0.0
  %871 = vmatpush1.msra.mxu0 0.0
  %872 = vmatprep.subr.mxu0 0.0
  %873 = vmatpush1.msra.mxu0 0.0
  %874 = vmatprep.subr.mxu0 0.0
  %875 = vmatpush1.msra.mxu0 0.0
  %876 = vmatprep.subr.mxu0 0.0
  %877 = vmatpush1.msra.mxu0 0.0
  %878 = vmatprep.subr.mxu0 0.0
  %879 = vmatpush1.msra.mxu0 0.0
  %880 = vmatprep.subr.mxu0 0.0
  %881 = vmatpush1.msra.mxu0 0.0
  %882 = vmatprep.subr.mxu0 0.0
  %883 = vmatpush1.msra.mxu0 0.0
  %884 = vmatprep.subr.mxu0 0.0
  %885 = vmatpush1.msra.mxu0 0.0
  %886 = vmatprep.subr.mxu0 0.0
  %887 = vmatpush1.msra.mxu0 0.0
  %888 = vmatprep.subr.mxu0 0.0
  %889 = vmatpush1.msra.mxu0 0.0
  %890 = vmatprep.subr.mxu0 0.0
  %891 = vmatpush1.msra.mxu0 0.0
  %892 = vmatprep.subr.mxu0 0.0
  %893 = vmatpush1.msra.mxu0 0.0
  %894 = vmatprep.subr.mxu0 0.0
  %895 = vmatpush1.msra.mxu0 0.0
  %896 = vmatprep.subr.mxu0 0.0
  %897 = vmatpush1.msra.mxu0 0.0
  %898 = vmatprep.subr.mxu0 0.0
  %899 = vmatpush1.msra.mxu0 %v863
  %900 = vmatprep.subr.mxu0 0.0
  %901 = vmatpush2.msra.mxu0 0.0
  %902 = vmatprep.subr.mxu0 0.0
  %903 = vmatpush2.msra.mxu0 0.0
  %904 = vmatprep.subr.mxu0 0.0
  %905 = vmatpush2.msra.mxu0 0.0
  %906 = vmatprep.subr.mxu0 0.0
  %907 = vmatpush2.msra.mxu0 0.0
  %908 = vmatprep.subr.mxu0 0.0
  %909 = vmatpush2.msra.mxu0 0.0
  %910 = vmatprep.subr.mxu0 0.0
  %911 = vmatpush2.msra.mxu0 0.0
  %912 = vmatprep.subr.mxu0 0.0
  %913 = vmatpush2.msra.mxu0 0.0
  %914 = vmatprep.subr.mxu0 0.0
  %915 = vmatpush2.msra.mxu0 0.0
  %916 = vmatprep.subr.mxu0 0.0
  %917 = vmatpush2.msra.mxu0 0.0
  %918 = vmatprep.subr.mxu0 0.0
  %919 = vmatpush2.msra.mxu0 0.0
  %920 = vmatprep.subr.mxu0 0.0
  %921 = vmatpush2.msra.mxu0 0.0
  %922 = vmatprep.subr.mxu0 0.0
  %923 = vmatpush2.msra.mxu0 0.0
  %924 = vmatprep.subr.mxu0 0.0
  %925 = vmatpush2.msra.mxu0 0.0
  %926 = vmatprep.subr.mxu0 0.0
  %927 = vmatpush2.msra.mxu0 0.0
  %928 = vmatprep.subr.mxu0 0.0
  %929 = vmatpush2.msra.mxu0 0.0
  %930 = vmatprep.subr.mxu0 0.0
  %931 = vmatpush2.msra.mxu0 0.0
  %932 = vmatprep.mubr.f32.mxu0 0.0
  %933 = vmatmul.mubr.f32.gmra.mxu0 %v866
  %v934 = vpop.f32.mrf.mxu0
  %v935 = vadd.f32 0.0, %v934
  %v936 = vpop.f32.mrf.mxu0
  %937 = vdwg.mxu0
  %939 = vrot.lane.b32.xlu0 %v935, 16
  %v940 = vpop.permute.xlu0 %939
  %v942 = vsel %vm602, %v768, %v940
  %944 = vrot.lane.b32.xlu0 %v596, 96
  %v945 = vpop.permute.xlu0 %944
  %v946 = vsel %vm602, %v596, 0
  %v948 = vsel %vm602, %v945, 0
  %950 = vmatprep.subr.mxu0 0.0
  %951 = vmatpush1.xpose.msra.mxu0 0.0
  %952 = vmatprep.subr.mxu0 0.0
  %953 = vmatpush1.xpose.msra.mxu0 0.0
  %954 = vmatprep.subr.mxu0 0.0
  %955 = vmatpush1.xpose.msra.mxu0 0.0
  %956 = vmatprep.subr.mxu0 0.0
  %957 = vmatpush1.xpose.msra.mxu0 0.0
  %958 = vmatprep.subr.mxu0 0.0
  %959 = vmatpush1.xpose.msra.mxu0 0.0
  %960 = vmatprep.subr.mxu0 0.0
  %961 = vmatpush1.xpose.msra.mxu0 0.0
  %962 = vmatprep.subr.mxu0 0.0
  %963 = vmatpush1.xpose.msra.mxu0 0.0
  %964 = vmatprep.subr.mxu0 0.0
  %965 = vmatpush1.xpose.msra.mxu0 0.0
  %966 = vmatprep.subr.mxu0 0.0
  %967 = vmatpush1.xpose.msra.mxu0 0.0
  %968 = vmatprep.subr.mxu0 0.0
  %969 = vmatpush1.xpose.msra.mxu0 0.0
  %970 = vmatprep.subr.mxu0 0.0
  %971 = vmatpush1.xpose.msra.mxu0 0.0
  %972 = vmatprep.subr.mxu0 0.0
  %973 = vmatpush1.xpose.msra.mxu0 0.0
  %974 = vmatprep.subr.mxu0 0.0
  %975 = vmatpush1.xpose.msra.mxu0 0.0
  %976 = vmatprep.subr.mxu0 0.0
  %977 = vmatpush1.xpose.msra.mxu0 0.0
  %978 = vmatprep.subr.mxu0 0.0
  %979 = vmatpush1.xpose.msra.mxu0 0.0
  %980 = vmatprep.subr.mxu0 0.0
  %981 = vmatpush1.xpose.msra.mxu0 %v948
  %982 = vmatprep.subr.mxu0 0.0
  %983 = vmatpush2.xpose.msra.mxu0 0.0
  %984 = vmatprep.subr.mxu0 0.0
  %985 = vmatpush2.xpose.msra.mxu0 0.0
  %986 = vmatprep.subr.mxu0 0.0
  %987 = vmatpush2.xpose.msra.mxu0 0.0
  %988 = vmatprep.subr.mxu0 0.0
  %989 = vmatpush2.xpose.msra.mxu0 0.0
  %990 = vmatprep.subr.mxu0 0.0
  %991 = vmatpush2.xpose.msra.mxu0 0.0
  %992 = vmatprep.subr.mxu0 0.0
  %993 = vmatpush2.xpose.msra.mxu0 0.0
  %994 = vmatprep.subr.mxu0 0.0
  %995 = vmatpush2.xpose.msra.mxu0 0.0
  %996 = vmatprep.subr.mxu0 0.0
  %997 = vmatpush2.xpose.msra.mxu0 0.0
  %998 = vmatprep.subr.mxu0 0.0
  %999 = vmatpush2.xpose.msra.mxu0 0.0
  %1000 = vmatprep.subr.mxu0 0.0
  %1001 = vmatpush2.xpose.msra.mxu0 0.0
  %1002 = vmatprep.subr.mxu0 0.0
  %1003 = vmatpush2.xpose.msra.mxu0 0.0
  %1004 = vmatprep.subr.mxu0 0.0
  %1005 = vmatpush2.xpose.msra.mxu0 0.0
  %1006 = vmatprep.subr.mxu0 0.0
  %1007 = vmatpush2.xpose.msra.mxu0 0.0
  %1008 = vmatprep.subr.mxu0 0.0
  %1009 = vmatpush2.xpose.msra.mxu0 0.0
  %1010 = vmatprep.subr.mxu0 0.0
  %1011 = vmatpush2.xpose.msra.mxu0 0.0
  %1012 = vmatprep.subr.mxu0 0.0
  %1013 = vmatpush2.xpose.msra.mxu0 0.0
  %1014 = vmatprep.mubr.f32.mxu0 0.0
  %1015 = vmatmul.mubr.f32.gmra.mxu0 %v946
  %v1016 = vpop.f32.mrf.mxu0
  %v1017 = vadd.f32 0.0, %v1016
  %v1018 = vpop.f32.mrf.mxu0
  %1019 = vdwg.mxu0
  %v1020 = vmul.f32 %v1017, 0.25
  %v1021 = vlaneseq
  %v1022 = vshrl.u32 %v1021, 7
  %v1023 = vsub.s32 1, %v1022
  %v1024 = vrot.slane %v511, %v1023
  %v1025 = vadd.f32 %v1020, %v1024
  %v1026 = vsel %vm683, %v1025, -inf
  %1027 = vmax.xlane.f32.xlu0 %v1026
  %v1028 = vpop.xlane.xlu0 %1027
  %v1029 = vsub.f32 %v1025, %v1028
  %v1030 = vmul.f32 %v1029, 1.442695
  %v1031 = vpow.pop %v1030
  %v1032 = vsel %vm683, %v1031, 0.0
  %1033 = vadd.xlane.f32.xlu0 %v1032
  %v1034 = vpop.xlane.xlu0 %1033
  %v1035 = vrcp.pop %v1034
  %v1036 = vmul.f32 %v1031, %v1035
  %1037 = vrot.lane.b32.xlu0 %v596, 64
  %v1038 = vpop.permute.xlu0 %1037
  %v1041 = vsel %vm683, %v1036, 0
  %1043 = vmatprep.subr.mxu0 0.0
  %1044 = vmatpush1.msra.mxu0 0.0
  %1045 = vmatprep.subr.mxu0 0.0
  %1046 = vmatpush1.msra.mxu0 0.0
  %1047 = vmatprep.subr.mxu0 0.0
  %1048 = vmatpush1.msra.mxu0 0.0
  %1049 = vmatprep.subr.mxu0 0.0
  %1050 = vmatpush1.msra.mxu0 0.0
  %1051 = vmatprep.subr.mxu0 0.0
  %1052 = vmatpush1.msra.mxu0 0.0
  %1053 = vmatprep.subr.mxu0 0.0
  %1054 = vmatpush1.msra.mxu0 0.0
  %1055 = vmatprep.subr.mxu0 0.0
  %1056 = vmatpush1.msra.mxu0 0.0
  %1057 = vmatprep.subr.mxu0 0.0
  %1058 = vmatpush1.msra.mxu0 0.0
  %1059 = vmatprep.subr.mxu0 0.0
  %1060 = vmatpush1.msra.mxu0 0.0
  %1061 = vmatprep.subr.mxu0 0.0
  %1062 = vmatpush1.msra.mxu0 0.0
  %1063 = vmatprep.subr.mxu0 0.0
  %1064 = vmatpush1.msra.mxu0 0.0
  %1065 = vmatprep.subr.mxu0 0.0
  %1066 = vmatpush1.msra.mxu0 0.0
  %1067 = vmatprep.subr.mxu0 0.0
  %1068 = vmatpush1.msra.mxu0 0.0
  %1069 = vmatprep.subr.mxu0 0.0
  %1070 = vmatpush1.msra.mxu0 0.0
  %1071 = vmatprep.subr.mxu0 0.0
  %1072 = vmatpush1.msra.mxu0 0.0
  %1073 = vmatprep.subr.mxu0 0.0
  %1074 = vmatpush1.msra.mxu0 %v1038
  %1075 = vmatprep.subr.mxu0 0.0
  %1076 = vmatpush2.msra.mxu0 0.0
  %1077 = vmatprep.subr.mxu0 0.0
  %1078 = vmatpush2.msra.mxu0 0.0
  %1079 = vmatprep.subr.mxu0 0.0
  %1080 = vmatpush2.msra.mxu0 0.0
  %1081 = vmatprep.subr.mxu0 0.0
  %1082 = vmatpush2.msra.mxu0 0.0
  %1083 = vmatprep.subr.mxu0 0.0
  %1084 = vmatpush2.msra.mxu0 0.0
  %1085 = vmatprep.subr.mxu0 0.0
  %1086 = vmatpush2.msra.mxu0 0.0
  %1087 = vmatprep.subr.mxu0 0.0
  %1088 = vmatpush2.msra.mxu0 0.0
  %1089 = vmatprep.subr.mxu0 0.0
  %1090 = vmatpush2.msra.mxu0 0.0
  %1091 = vmatprep.subr.mxu0 0.0
  %1092 = vmatpush2.msra.mxu0 0.0
  %1093 = vmatprep.subr.mxu0 0.0
  %1094 = vmatpush2.msra.mxu0 0.0
  %1095 = vmatprep.subr.mxu0 0.0
  %1096 = vmatpush2.msra.mxu0 0.0
  %1097 = vmatprep.subr.mxu0 0.0
  %1098 = vmatpush2.msra.mxu0 0.0
  %1099 = vmatprep.subr.mxu0 0.0
  %1100 = vmatpush2.msra.mxu0 0.0
  %1101 = vmatprep.subr.mxu0 0.0
  %1102 = vmatpush2.msra.mxu0 0.0
  %1103 = vmatprep.subr.mxu0 0.0
  %1104 = vmatpush2.msra.mxu0 0.0
  %1105 = vmatprep.subr.mxu0 0.0
  %1106 = vmatpush2.msra.mxu0 0.0
  %1107 = vmatprep.mubr.f32.mxu0 0.0
  %1108 = vmatmul.mubr.f32.gmra.mxu0 %v1041
  %v1109 = vpop.f32.mrf.mxu0
  %v1110 = vadd.f32 0.0, %v1109
  %v1111 = vpop.f32.mrf.mxu0
  %1112 = vdwg.mxu0
  %1113 = vrot.lane.b32.xlu0 %v596, 112
  %v1114 = vpop.permute.xlu0 %1113
  %1115 = vrot.lane.b32.xlu0 %v596, 80
  %v1116 = vpop.permute.xlu0 %1115
  %v1117 = vsel %vm602, %v1114, 0
  %v1119 = vsel %vm602, %v1116, 0
  %1121 = vmatprep.subr.mxu0 0.0
  %1122 = vmatpush1.xpose.msra.mxu0 0.0
  %1123 = vmatprep.subr.mxu0 0.0
  %1124 = vmatpush1.xpose.msra.mxu0 0.0
  %1125 = vmatprep.subr.mxu0 0.0
  %1126 = vmatpush1.xpose.msra.mxu0 0.0
  %1127 = vmatprep.subr.mxu0 0.0
  %1128 = vmatpush1.xpose.msra.mxu0 0.0
  %1129 = vmatprep.subr.mxu0 0.0
  %1130 = vmatpush1.xpose.msra.mxu0 0.0
  %1131 = vmatprep.subr.mxu0 0.0
  %1132 = vmatpush1.xpose.msra.mxu0 0.0
  %1133 = vmatprep.subr.mxu0 0.0
  %1134 = vmatpush1.xpose.msra.mxu0 0.0
  %1135 = vmatprep.subr.mxu0 0.0
  %1136 = vmatpush1.xpose.msra.mxu0 0.0
  %1137 = vmatprep.subr.mxu0 0.0
  %1138 = vmatpush1.xpose.msra.mxu0 0.0
  %1139 = vmatprep.subr.mxu0 0.0
  %1140 = vmatpush1.xpose.msra.mxu0 0.0
  %1141 = vmatprep.subr.mxu0 0.0
  %1142 = vmatpush1.xpose.msra.mxu0 0.0
  %1143 = vmatprep.subr.mxu0 0.0
  %1144 = vmatpush1.xpose.msra.mxu0 0.0
  %1145 = vmatprep.subr.mxu0 0.0
  %1146 = vmatpush1.xpose.msra.mxu0 0.0
  %1147 = vmatprep.subr.mxu0 0.0
  %1148 = vmatpush1.xpose.msra.mxu0 0.0
  %1149 = vmatprep.subr.mxu0 0.0
  %1150 = vmatpush1.xpose.msra.mxu0 0.0
  %1151 = vmatprep.subr.mxu0 0.0
  %1152 = vmatpush1.xpose.msra.mxu0 %v1119
  %1153 = vmatprep.subr.mxu0 0.0
  %1154 = vmatpush2.xpose.msra.mxu0 0.0
  %1155 = vmatprep.subr.mxu0 0.0
  %1156 = vmatpush2.xpose.msra.mxu0 0.0
  %1157 = vmatprep.subr.mxu0 0.0
  %1158 = vmatpush2.xpose.msra.mxu0 0.0
  %1159 = vmatprep.subr.mxu0 0.0
  %1160 = vmatpush2.xpose.msra.mxu0 0.0
  %1161 = vmatprep.subr.mxu0 0.0
  %1162 = vmatpush2.xpose.msra.mxu0 0.0
  %1163 = vmatprep.subr.mxu0 0.0
  %1164 = vmatpush2.xpose.msra.mxu0 0.0
  %1165 = vmatprep.subr.mxu0 0.0
  %1166 = vmatpush2.xpose.msra.mxu0 0.0
  %1167 = vmatprep.subr.mxu0 0.0
  %1168 = vmatpush2.xpose.msra.mxu0 0.0
  %1169 = vmatprep.subr.mxu0 0.0
  %1170 = vmatpush2.xpose.msra.mxu0 0.0
  %1171 = vmatprep.subr.mxu0 0.0
  %1172 = vmatpush2.xpose.msra.mxu0 0.0
  %1173 = vmatprep.subr.mxu0 0.0
  %1174 = vmatpush2.xpose.msra.mxu0 0.0
  %1175 = vmatprep.subr.mxu0 0.0
  %1176 = vmatpush2.xpose.msra.mxu0 0.0
  %1177 = vmatprep.subr.mxu0 0.0
  %1178 = vmatpush2.xpose.msra.mxu0 0.0
  %1179 = vmatprep.subr.mxu0 0.0
  %1180 = vmatpush2.xpose.msra.mxu0 0.0
  %1181 = vmatprep.subr.mxu0 0.0
  %1182 = vmatpush2.xpose.msra.mxu0 0.0
  %1183 = vmatprep.subr.mxu0 0.0
  %1184 = vmatpush2.xpose.msra.mxu0 0.0
  %1185 = vmatprep.mubr.f32.mxu0 0.0
  %1186 = vmatmul.mubr.f32.gmra.mxu0 %v1117
  %v1187 = vpop.f32.mrf.mxu0
  %v1188 = vadd.f32 0.0, %v1187
  %v1189 = vpop.f32.mrf.mxu0
  %1190 = vdwg.mxu0
  %v1191 = vmul.f32 %v1188, 0.25
  %v1192 = vadd.f32 %v1191, %v1024
  %v1193 = vsel %vm683, %v1192, -inf
  %1194 = vmax.xlane.f32.xlu0 %v1193
  %v1195 = vpop.xlane.xlu0 %1194
  %v1196 = vsub.f32 %v1192, %v1195
  %v1197 = vmul.f32 %v1196, 1.442695
  %v1198 = vpow.pop %v1197
  %v1199 = vsel %vm683, %v1198, 0.0
  %1200 = vadd.xlane.f32.xlu0 %v1199
  %v1201 = vpop.xlane.xlu0 %1200
  %v1202 = vrcp.pop %v1201
  %v1203 = vmul.f32 %v1198, %v1202
  %1204 = vrot.lane.b32.xlu0 %v596, 48
  %v1205 = vpop.permute.xlu0 %1204
  %v1208 = vsel %vm683, %v1203, 0
  %1210 = vmatprep.subr.mxu0 0.0
  %1211 = vmatpush1.msra.mxu0 0.0
  %1212 = vmatprep.subr.mxu0 0.0
  %1213 = vmatpush1.msra.mxu0 0.0
  %1214 = vmatprep.subr.mxu0 0.0
  %1215 = vmatpush1.msra.mxu0 0.0
  %1216 = vmatprep.subr.mxu0 0.0
  %1217 = vmatpush1.msra.mxu0 0.0
  %1218 = vmatprep.subr.mxu0 0.0
  %1219 = vmatpush1.msra.mxu0 0.0
  %1220 = vmatprep.subr.mxu0 0.0
  %1221 = vmatpush1.msra.mxu0 0.0
  %1222 = vmatprep.subr.mxu0 0.0
  %1223 = vmatpush1.msra.mxu0 0.0
  %1224 = vmatprep.subr.mxu0 0.0
  %1225 = vmatpush1.msra.mxu0 0.0
  %1226 = vmatprep.subr.mxu0 0.0
  %1227 = vmatpush1.msra.mxu0 0.0
  %1228 = vmatprep.subr.mxu0 0.0
  %1229 = vmatpush1.msra.mxu0 0.0
  %1230 = vmatprep.subr.mxu0 0.0
  %1231 = vmatpush1.msra.mxu0 0.0
  %1232 = vmatprep.subr.mxu0 0.0
  %1233 = vmatpush1.msra.mxu0 0.0
  %1234 = vmatprep.subr.mxu0 0.0
  %1235 = vmatpush1.msra.mxu0 0.0
  %1236 = vmatprep.subr.mxu0 0.0
  %1237 = vmatpush1.msra.mxu0 0.0
  %1238 = vmatprep.subr.mxu0 0.0
  %1239 = vmatpush1.msra.mxu0 0.0
  %1240 = vmatprep.subr.mxu0 0.0
  %1241 = vmatpush1.msra.mxu0 %v1205
  %1242 = vmatprep.subr.mxu0 0.0
  %1243 = vmatpush2.msra.mxu0 0.0
  %1244 = vmatprep.subr.mxu0 0.0
  %1245 = vmatpush2.msra.mxu0 0.0
  %1246 = vmatprep.subr.mxu0 0.0
  %1247 = vmatpush2.msra.mxu0 0.0
  %1248 = vmatprep.subr.mxu0 0.0
  %1249 = vmatpush2.msra.mxu0 0.0
  %1250 = vmatprep.subr.mxu0 0.0
  %1251 = vmatpush2.msra.mxu0 0.0
  %1252 = vmatprep.subr.mxu0 0.0
  %1253 = vmatpush2.msra.mxu0 0.0
  %1254 = vmatprep.subr.mxu0 0.0
  %1255 = vmatpush2.msra.mxu0 0.0
  %1256 = vmatprep.subr.mxu0 0.0
  %1257 = vmatpush2.msra.mxu0 0.0
  %1258 = vmatprep.subr.mxu0 0.0
  %1259 = vmatpush2.msra.mxu0 0.0
  %1260 = vmatprep.subr.mxu0 0.0
  %1261 = vmatpush2.msra.mxu0 0.0
  %1262 = vmatprep.subr.mxu0 0.0
  %1263 = vmatpush2.msra.mxu0 0.0
  %1264 = vmatprep.subr.mxu0 0.0
  %1265 = vmatpush2.msra.mxu0 0.0
  %1266 = vmatprep.subr.mxu0 0.0
  %1267 = vmatpush2.msra.mxu0 0.0
  %1268 = vmatprep.subr.mxu0 0.0
  %1269 = vmatpush2.msra.mxu0 0.0
  %1270 = vmatprep.subr.mxu0 0.0
  %1271 = vmatpush2.msra.mxu0 0.0
  %1272 = vmatprep.subr.mxu0 0.0
  %1273 = vmatpush2.msra.mxu0 0.0
  %1274 = vmatprep.mubr.f32.mxu0 0.0
  %1275 = vmatmul.mubr.f32.gmra.mxu0 %v1208
  %v1276 = vpop.f32.mrf.mxu0
  %v1277 = vadd.f32 0.0, %v1276
  %v1278 = vpop.f32.mrf.mxu0
  %1279 = vdwg.mxu0
  %1281 = vrot.lane.b32.xlu0 %v1277, 16
  %v1282 = vpop.permute.xlu0 %1281
  %v1284 = vsel %vm602, %v1110, %v1282
  %v1286 = vlaneseq
  %v1287 = vshrl.u32 %v1286, 7
  %v1288 = vsub.s32 0, %v1287
  %v1289 = vrot.slane %v199, %v1288
  %v1292 = vsel %vm466, %v942, 0
  %v1295 = vsel %vm466, %v1284, 0
  %1297 = vmatprep.subr.mxu0 0.0
  %1298 = vmatpush1.msra.mxu0 0.0
  %1299 = vmatprep.subr.mxu0 0.0
  %1300 = vmatpush1.msra.mxu0 0.0
  %1301 = vmatprep.subr.mxu0 0.0
  %1302 = vmatpush1.msra.mxu0 0.0
  %1303 = vmatprep.subr.mxu0 0.0
  %1304 = vmatpush1.msra.mxu0 0.0
  %1305 = vmatprep.subr.mxu0 0.0
  %1306 = vmatpush1.msra.mxu0 0.0
  %1307 = vmatprep.subr.mxu0 0.0
  %1308 = vmatpush1.msra.mxu0 0.0
  %1309 = vmatprep.subr.mxu0 0.0
  %1310 = vmatpush1.msra.mxu0 0.0
  %1311 = vmatprep.subr.mxu0 0.0
  %1312 = vmatpush1.msra.mxu0 0.0
  %1313 = vmatprep.subr.mxu0 0.0
  %1314 = vmatpush1.msra.mxu0 0.0
  %1315 = vmatprep.subr.mxu0 0.0
  %1316 = vmatpush1.msra.mxu0 0.0
  %1317 = vmatprep.subr.mxu0 0.0
  %1318 = vmatpush1.msra.mxu0 0.0
  %1319 = vmatprep.subr.mxu0 0.0
  %1320 = vmatpush1.msra.mxu0 0.0
  %1321 = vmatprep.subr.mxu0 0.0
  %1322 = vmatpush1.msra.mxu0 %v198
  %1323 = vmatprep.subr.mxu0 0.0
  %1324 = vmatpush1.msra.mxu0 %v197
  %1325 = vmatprep.subr.mxu0 0.0
  %1326 = vmatpush1.msra.mxu0 %v196
  %1327 = vmatprep.subr.mxu0 0.0
  %1328 = vmatpush1.msra.mxu0 %v195
  %1329 = vmatprep.subr.mxu0 0.0
  %1330 = vmatpush2.msra.mxu0 0.0
  %1331 = vmatprep.subr.mxu0 0.0
  %1332 = vmatpush2.msra.mxu0 0.0
  %1333 = vmatprep.subr.mxu0 0.0
  %1334 = vmatpush2.msra.mxu0 0.0
  %1335 = vmatprep.subr.mxu0 0.0
  %1336 = vmatpush2.msra.mxu0 0.0
  %1337 = vmatprep.subr.mxu0 0.0
  %1338 = vmatpush2.msra.mxu0 0.0
  %1339 = vmatprep.subr.mxu0 0.0
  %1340 = vmatpush2.msra.mxu0 0.0
  %1341 = vmatprep.subr.mxu0 0.0
  %1342 = vmatpush2.msra.mxu0 0.0
  %1343 = vmatprep.subr.mxu0 0.0
  %1344 = vmatpush2.msra.mxu0 0.0
  %1345 = vmatprep.subr.mxu0 0.0
  %1346 = vmatpush2.msra.mxu0 0.0
  %1347 = vmatprep.subr.mxu0 0.0
  %1348 = vmatpush2.msra.mxu0 0.0
  %1349 = vmatprep.subr.mxu0 0.0
  %1350 = vmatpush2.msra.mxu0 0.0
  %1351 = vmatprep.subr.mxu0 0.0
  %1352 = vmatpush2.msra.mxu0 0.0
  %1353 = vmatprep.subr.mxu0 0.0
  %1354 = vmatpush2.msra.mxu0 0.0
  %1355 = vmatprep.subr.mxu0 0.0
  %1356 = vmatpush2.msra.mxu0 0.0
  %1357 = vmatprep.subr.mxu0 0.0
  %1358 = vmatpush2.msra.mxu0 0.0
  %1359 = vmatprep.subr.mxu0 0.0
  %1360 = vmatpush2.msra.mxu0 0.0
  %1361 = vmatprep.mubr.f32.mxu0 0.0
  %1362 = vmatmul.mubr.f32.gmra.mxu0 %v1292
  %v1363 = vpop.f32.mrf.mxu0
  %v1364 = vadd.f32 %v1289, %v1363
  %v1365 = vpop.f32.mrf.mxu0
  %1366 = vmatprep.mubr.f32.mxu0 0.0
  %1367 = vmatmul.mubr.f32.gmra.mxu0 %v1295
  %v1368 = vpop.f32.mrf.mxu0
  %v1369 = vadd.f32 %v1289, %v1368
  %v1370 = vpop.f32.mrf.mxu0
  %1371 = vdwg.mxu0
  %v1372 = vadd.f32 %v1364, %v508
  %v1373 = vadd.f32 %v1369, %v509
  %v1374 = vsel %vm466, %v1372, 0.0
  %1375 = vadd.xlane.f32.xlu0 %v1374
  %v1376 = vpop.xlane.xlu0 %1375
  %v1377 = vsel %vm466, %v1373, 0.0
  %1378 = vadd.xlane.f32.xlu0 %v1377
  %v1379 = vpop.xlane.xlu0 %1378
  %v1380 = vmul.f32 %v1376, %v473
  %v1381 = vmul.f32 %v1379, %v473
  %v1382 = vsub.f32 %v1372, %v1380
  %v1383 = vsub.f32 %v1373, %v1381
  %v1384 = vmul.f32 %v1382, %v1382
  %v1385 = vmul.f32 %v1383, %v1383
  %v1386 = vsel %vm466, %v1384, 0.0
  %1387 = vadd.xlane.f32.xlu0 %v1386
  %v1388 = vpop.xlane.xlu0 %1387
  %v1389 = vsel %vm466, %v1385, 0.0
  %1390 = vadd.xlane.f32.xlu0 %v1389
  %v1391 = vpop.xlane.xlu0 %1390
  %v1392 = vmul.f32 %v1388, %v473
  %v1393 = vmul.f32 %v1391, %v473
  %v1394 = vadd.f32 %v1392, 1e-05
  %v1395 = vadd.f32 %v1393, 1e-05
  %v1396 = vrsqrt.pop %v1394
  %v1397 = vrsqrt.pop %v1395
  %v1398 = vmul.f32 %v1382, %v1396
  %v1399 = vmul.f32 %v1383, %v1397
  %v1401 = vlaneseq
  %v1402 = vshrl.u32 %v1401, 7
  %v1403 = vsub.s32 0, %v1402
  %v1404 = vrot.slane %v200, %v1403
  %v1406 = vmul.f32 %v1398, %v1404
  %v1407 = vmul.f32 %v1399, %v1404
  %v1409 = vlaneseq
  %v1410 = vshrl.u32 %v1409, 7
  %v1411 = vsub.s32 0, %v1410
  %v1412 = vrot.slane %v201, %v1411
  %v1414 = vadd.f32 %v1406, %v1412
  %v1415 = vadd.f32 %v1407, %v1412
  %v1417 = vlaneseq
  %v1418 = vshrl.u32 %v1417, 7
  %v1419 = vsub.s32 0, %v1418
  %v1420 = vrot.slane %v206, %v1419
  %v1423 = vsel %vm466, %v1414, 0
  %v1426 = vsel %vm466, %v1415, 0
  %1428 = vmatprep.subr.mxu0 0.0
  %1429 = vmatpush1.msra.mxu0 0.0
  %1430 = vmatprep.subr.mxu0 0.0
  %1431 = vmatpush1.msra.mxu0 0.0
  %1432 = vmatprep.subr.mxu0 0.0
  %1433 = vmatpush1.msra.mxu0 0.0
  %1434 = vmatprep.subr.mxu0 0.0
  %1435 = vmatpush1.msra.mxu0 0.0
  %1436 = vmatprep.subr.mxu0 0.0
  %1437 = vmatpush1.msra.mxu0 0.0
  %1438 = vmatprep.subr.mxu0 0.0
  %1439 = vmatpush1.msra.mxu0 0.0
  %1440 = vmatprep.subr.mxu0 0.0
  %1441 = vmatpush1.msra.mxu0 0.0
  %1442 = vmatprep.subr.mxu0 0.0
  %1443 = vmatpush1.msra.mxu0 0.0
  %1444 = vmatprep.subr.mxu0 0.0
  %1445 = vmatpush1.msra.mxu0 0.0
  %1446 = vmatprep.subr.mxu0 0.0
  %1447 = vmatpush1.msra.mxu0 0.0
  %1448 = vmatprep.subr.mxu0 0.0
  %1449 = vmatpush1.msra.mxu0 0.0
  %1450 = vmatprep.subr.mxu0 0.0
  %1451 = vmatpush1.msra.mxu0 0.0
  %1452 = vmatprep.subr.mxu0 0.0
  %1453 = vmatpush1.msra.mxu0 %v205
  %1454 = vmatprep.subr.mxu0 0.0
  %1455 = vmatpush1.msra.mxu0 %v204
  %1456 = vmatprep.subr.mxu0 0.0
  %1457 = vmatpush1.msra.mxu0 %v203
  %1458 = vmatprep.subr.mxu0 0.0
  %1459 = vmatpush1.msra.mxu0 %v202
  %1460 = vmatprep.subr.mxu0 0.0
  %1461 = vmatpush2.msra.mxu0 0.0
  %1462 = vmatprep.subr.mxu0 0.0
  %1463 = vmatpush2.msra.mxu0 0.0
  %1464 = vmatprep.subr.mxu0 0.0
  %1465 = vmatpush2.msra.mxu0 0.0
  %1466 = vmatprep.subr.mxu0 0.0
  %1467 = vmatpush2.msra.mxu0 0.0
  %1468 = vmatprep.subr.mxu0 0.0
  %1469 = vmatpush2.msra.mxu0 0.0
  %1470 = vmatprep.subr.mxu0 0.0
  %1471 = vmatpush2.msra.mxu0 0.0
  %1472 = vmatprep.subr.mxu0 0.0
  %1473 = vmatpush2.msra.mxu0 0.0
  %1474 = vmatprep.subr.mxu0 0.0
  %1475 = vmatpush2.msra.mxu0 0.0
  %1476 = vmatprep.subr.mxu0 0.0
  %1477 = vmatpush2.msra.mxu0 0.0
  %1478 = vmatprep.subr.mxu0 0.0
  %1479 = vmatpush2.msra.mxu0 0.0
  %1480 = vmatprep.subr.mxu0 0.0
  %1481 = vmatpush2.msra.mxu0 0.0
  %1482 = vmatprep.subr.mxu0 0.0
  %1483 = vmatpush2.msra.mxu0 0.0
  %1484 = vmatprep.subr.mxu0 0.0
  %1485 = vmatpush2.msra.mxu0 0.0
  %1486 = vmatprep.subr.mxu0 0.0
  %1487 = vmatpush2.msra.mxu0 0.0
  %1488 = vmatprep.subr.mxu0 0.0
  %1489 = vmatpush2.msra.mxu0 0.0
  %1490 = vmatprep.subr.mxu0 0.0
  %1491 = vmatpush2.msra.mxu0 0.0
  %1492 = vmatprep.mubr.f32.mxu0 0.0
  %1493 = vmatmul.mubr.f32.gmra.mxu0 %v1423
  %v1494 = vpop.f32.mrf.mxu0
  %v1495 = vadd.f32 %v1420, %v1494
  %v1496 = vpop.f32.mrf.mxu0
  %1497 = vmatprep.mubr.f32.mxu0 0.0
  %1498 = vmatmul.mubr.f32.gmra.mxu0 %v1426
  %v1499 = vpop.f32.mrf.mxu0
  %v1500 = vadd.f32 %v1420, %v1499
  %v1501 = vpop.f32.mrf.mxu0
  %1502 = vdwg.mxu0
  %v1503 = vmul.f32 %v1495, %v1495
  %v1504 = vmul.f32 %v1500, %v1500
  %v1505 = vmul.f32 %v1495, %v1503
  %v1506 = vmul.f32 %v1500, %v1504
  %v1507 = vmul.f32 %v1505, 0.044715
  %v1508 = vmul.f32 %v1506, 0.044715
  %v1509 = vadd.f32 %v1495, %v1507
  %v1510 = vadd.f32 %v1500, %v1508
  %v1511 = vmul.f32 %v1509, 0.7978846
  %v1512 = vmul.f32 %v1510, 0.7978846
  %v1513 = vtanh.pop %v1511
  %v1514 = vtanh.pop %v1512
  %v1515 = vadd.f32 %v1513, 1.0
  %v1516 = vadd.f32 %v1514, 1.0
  %v1517 = vmul.f32 %v1515, 0.5
  %v1518 = vmul.f32 %v1516, 0.5
  %v1519 = vmul.f32 %v1495, %v1517
  %v1520 = vmul.f32 %v1500, %v1518
  %v1522 = vlaneseq
  %v1523 = vshrl.u32 %v1522, 7
  %v1524 = vsub.s32 0, %v1523
  %v1525 = vrot.slane %v215, %v1524
  %v1528 = vsel %vm376, %v1519, 0
  %v1531 = vsel %vm376, %v1520, 0
  %1533 = vmatprep.subr.mxu0 0.0
  %1534 = vmatpush1.msra.mxu0 0.0
  %1535 = vmatprep.subr.mxu0 0.0
  %1536 = vmatpush1.msra.mxu0 0.0
  %1537 = vmatprep.subr.mxu0 0.0
  %1538 = vmatpush1.msra.mxu0 0.0
  %1539 = vmatprep.subr.mxu0 0.0
  %1540 = vmatpush1.msra.mxu0 0.0
  %1541 = vmatprep.subr.mxu0 0.0
  %1542 = vmatpush1.msra.mxu0 0.0
  %1543 = vmatprep.subr.mxu0 0.0
  %1544 = vmatpush1.msra.mxu0 0.0
  %1545 = vmatprep.subr.mxu0 0.0
  %1546 = vmatpush1.msra.mxu0 0.0
  %1547 = vmatprep.subr.mxu0 0.0
  %1548 = vmatpush1.msra.mxu0 0.0
  %1549 = vmatprep.subr.mxu0 0.0
  %1550 = vmatpush1.msra.mxu0 %v214
  %1551 = vmatprep.subr.mxu0 0.0
  %1552 = vmatpush1.msra.mxu0 %v213
  %1553 = vmatprep.subr.mxu0 0.0
  %1554 = vmatpush1.msra.mxu0 %v212
  %1555 = vmatprep.subr.mxu0 0.0
  %1556 = vmatpush1.msra.mxu0 %v211
  %1557 = vmatprep.subr.mxu0 0.0
  %1558 = vmatpush1.msra.mxu0 %v210
  %1559 = vmatprep.subr.mxu0 0.0
  %1560 = vmatpush1.msra.mxu0 %v209
  %1561 = vmatprep.subr.mxu0 0.0
  %1562 = vmatpush1.msra.mxu0 %v208
  %1563 = vmatprep.subr.mxu0 0.0
  %1564 = vmatpush1.msra.mxu0 %v207
  %1565 = vmatprep.subr.mxu0 0.0
  %1566 = vmatpush2.msra.mxu0 0.0
  %1567 = vmatprep.subr.mxu0 0.0
  %1568 = vmatpush2.msra.mxu0 0.0
  %1569 = vmatprep.subr.mxu0 0.0
  %1570 = vmatpush2.msra.mxu0 0.0
  %1571 = vmatprep.subr.mxu0 0.0
  %1572 = vmatpush2.msra.mxu0 0.0
  %1573 = vmatprep.subr.mxu0 0.0
  %1574 = vmatpush2.msra.mxu0 0.0
  %1575 = vmatprep.subr.mxu0 0.0
  %1576 = vmatpush2.msra.mxu0 0.0
  %1577 = vmatprep.subr.mxu0 0.0
  %1578 = vmatpush2.msra.mxu0 0.0
  %1579 = vmatprep.subr.mxu0 0.0
  %1580 = vmatpush2.msra.mxu0 0.0
  %1581 = vmatprep.subr.mxu0 0.0
  %1582 = vmatpush2.msra.mxu0 0.0
  %1583 = vmatprep.subr.mxu0 0.0
  %1584 = vmatpush2.msra.mxu0 0.0
  %1585 = vmatprep.subr.mxu0 0.0
  %1586 = vmatpush2.msra.mxu0 0.0
  %1587 = vmatprep.subr.mxu0 0.0
  %1588 = vmatpush2.msra.mxu0 0.0
  %1589 = vmatprep.subr.mxu0 0.0
  %1590 = vmatpush2.msra.mxu0 0.0
  %1591 = vmatprep.subr.mxu0 0.0
  %1592 = vmatpush2.msra.mxu0 0.0
  %1593 = vmatprep.subr.mxu0 0.0
  %1594 = vmatpush2.msra.mxu0 0.0
  %1595 = vmatprep.subr.mxu0 0.0
  %1596 = vmatpush2.msra.mxu0 0.0
  %1597 = vmatprep.mubr.f32.mxu0 0.0
  %1598 = vmatmul.mubr.f32.gmra.mxu0 %v1528
  %v1599 = vpop.f32.mrf.mxu0
  %v1600 = vadd.f32 %v1525, %v1599
  %v1601 = vpop.f32.mrf.mxu0
  %1602 = vmatprep.mubr.f32.mxu0 0.0
  %1603 = vmatmul.mubr.f32.gmra.mxu0 %v1531
  %v1604 = vpop.f32.mrf.mxu0
  %v1605 = vadd.f32 %v1525, %v1604
  %v1606 = vpop.f32.mrf.mxu0
  %1607 = vdwg.mxu0
  %v1608 = vadd.f32 %v1600, %v1414
  %v1609 = vadd.f32 %v1605, %v1415
  %v1610 = vsel %vm466, %v1608, 0.0
  %1611 = vadd.xlane.f32.xlu0 %v1610
  %v1612 = vpop.xlane.xlu0 %1611
  %v1613 = vsel %vm466, %v1609, 0.0
  %1614 = vadd.xlane.f32.xlu0 %v1613
  %v1615 = vpop.xlane.xlu0 %1614
  %v1616 = vmul.f32 %v1612, %v473
  %v1617 = vmul.f32 %v1615, %v473
  %v1618 = vsub.f32 %v1608, %v1616
  %v1619 = vsub.f32 %v1609, %v1617
  %v1620 = vmul.f32 %v1618, %v1618
  %v1621 = vmul.f32 %v1619, %v1619
  %v1622 = vsel %vm466, %v1620, 0.0
  %1623 = vadd.xlane.f32.xlu0 %v1622
  %v1624 = vpop.xlane.xlu0 %1623
  %v1625 = vsel %vm466, %v1621, 0.0
  %1626 = vadd.xlane.f32.xlu0 %v1625
  %v1627 = vpop.xlane.xlu0 %1626
  %v1628 = vmul.f32 %v1624, %v473
  %v1629 = vmul.f32 %v1627, %v473
  %v1630 = vadd.f32 %v1628, 1e-05
  %v1631 = vadd.f32 %v1629, 1e-05
  %v1632 = vrsqrt.pop %v1630
  %v1633 = vrsqrt.pop %v1631
  %v1634 = vmul.f32 %v1618, %v1632
  %v1635 = vmul.f32 %v1619, %v1633
  %v1637 = vlaneseq
  %v1638 = vshrl.u32 %v1637, 7
  %v1639 = vsub.s32 0, %v1638
  %v1640 = vrot.slane %v216, %v1639
  %v1642 = vmul.f32 %v1634, %v1640
  %v1643 = vmul.f32 %v1635, %v1640
  %v1645 = vlaneseq
  %v1646 = vshrl.u32 %v1645, 7
  %v1647 = vsub.s32 0, %v1646
  %v1648 = vrot.slane %v217, %v1647
  %v1650 = vadd.f32 %v1642, %v1648
  %v1651 = vadd.f32 %v1643, %v1648
  %v1653 = vlaneseq
  %v1654 = vshrl.u32 %v1653, 7
  %v1655 = vsub.s32 0, %v1654
  %v1656 = vrot.slane %v222, %v1655
  %v1659 = vsel %vm466, %v1650, 0
  %v1662 = vsel %vm466, %v1651, 0
  %1664 = vmatprep.subr.mxu0 0.0
  %1665 = vmatpush1.msra.mxu0 0.0
  %1666 = vmatprep.subr.mxu0 0.0
  %1667 = vmatpush1.msra.mxu0 0.0
  %1668 = vmatprep.subr.mxu0 0.0
  %1669 = vmatpush1.msra.mxu0 0.0
  %1670 = vmatprep.subr.mxu0 0.0
  %1671 = vmatpush1.msra.mxu0 0.0
  %1672 = vmatprep.subr.mxu0 0.0
  %1673 = vmatpush1.msra.mxu0 0.0
  %1674 = vmatprep.subr.mxu0 0.0
  %1675 = vmatpush1.msra.mxu0 0.0
  %1676 = vmatprep.subr.mxu0 0.0
  %1677 = vmatpush1.msra.mxu0 0.0
  %1678 = vmatprep.subr.mxu0 0.0
  %1679 = vmatpush1.msra.mxu0 0.0
  %1680 = vmatprep.subr.mxu0 0.0
  %1681 = vmatpush1.msra.mxu0 0.0
  %1682 = vmatprep.subr.mxu0 0.0
  %1683 = vmatpush1.msra.mxu0 0.0
  %1684 = vmatprep.subr.mxu0 0.0
  %1685 = vmatpush1.msra.mxu0 0.0
  %1686 = vmatprep.subr.mxu0 0.0
  %1687 = vmatpush1.msra.mxu0 0.0
  %1688 = vmatprep.subr.mxu0 0.0
  %1689 = vmatpush1.msra.mxu0 %v221
  %1690 = vmatprep.subr.mxu0 0.0
  %1691 = vmatpush1.msra.mxu0 %v220
  %1692 = vmatprep.subr.mxu0 0.0
  %1693 = vmatpush1.msra.mxu0 %v219
  %1694 = vmatprep.subr.mxu0 0.0
  %1695 = vmatpush1.msra.mxu0 %v218
  %1696 = vmatprep.subr.mxu0 0.0
  %1697 = vmatpush2.msra.mxu0 0.0
  %1698 = vmatprep.subr.mxu0 0.0
  %1699 = vmatpush2.msra.mxu0 0.0
  %1700 = vmatprep.subr.mxu0 0.0
  %1701 = vmatpush2.msra.mxu0 0.0
  %1702 = vmatprep.subr.mxu0 0.0
  %1703 = vmatpush2.msra.mxu0 0.0
  %1704 = vmatprep.subr.mxu0 0.0
  %1705 = vmatpush2.msra.mxu0 0.0
  %1706 = vmatprep.subr.mxu0 0.0
  %1707 = vmatpush2.msra.mxu0 0.0
  %1708 = vmatprep.subr.mxu0 0.0
  %1709 = vmatpush2.msra.mxu0 0.0
  %1710 = vmatprep.subr.mxu0 0.0
  %1711 = vmatpush2.msra.mxu0 0.0
  %1712 = vmatprep.subr.mxu0 0.0
  %1713 = vmatpush2.msra.mxu0 0.0
  %1714 = vmatprep.subr.mxu0 0.0
  %1715 = vmatpush2.msra.mxu0 0.0
  %1716 = vmatprep.subr.mxu0 0.0
  %1717 = vmatpush2.msra.mxu0 0.0
  %1718 = vmatprep.subr.mxu0 0.0
  %1719 = vmatpush2.msra.mxu0 0.0
  %1720 = vmatprep.subr.mxu0 0.0
  %1721 = vmatpush2.msra.mxu0 0.0
  %1722 = vmatprep.subr.mxu0 0.0
  %1723 = vmatpush2.msra.mxu0 0.0
  %1724 = vmatprep.subr.mxu0 0.0
  %1725 = vmatpush2.msra.mxu0 0.0
  %1726 = vmatprep.subr.mxu0 0.0
  %1727 = vmatpush2.msra.mxu0 0.0
  %1728 = vmatprep.mubr.f32.mxu0 0.0
  %1729 = vmatmul.mubr.f32.gmra.mxu0 %v1659
  %v1730 = vpop.f32.mrf.mxu0
  %v1731 = vadd.f32 %v1656, %v1730
  %v1732 = vpop.f32.mrf.mxu0
  %1733 = vmatprep.mubr.f32.mxu0 0.0
  %1734 = vmatmul.mubr.f32.gmra.mxu0 %v1662
  %v1735 = vpop.f32.mrf.mxu0
  %v1736 = vadd.f32 %v1656, %v1735
  %v1737 = vpop.f32.mrf.mxu0
  %1738 = vdwg.mxu0
  %1740 = vrot.lane.b32.xlu0 %v1731, 96
  %v1741 = vpop.permute.xlu0 %1740
  %v1742 = vsel %vm602, %v1731, 0
  %v1744 = vsel %vm602, %v1741, 0
  %1746 = vmatprep.subr.mxu0 0.0
  %1747 = vmatpush1.xpose.msra.mxu0 0.0
  %1748 = vmatprep.subr.mxu0 0.0
  %1749 = vmatpush1.xpose.msra.mxu0 0.0
  %1750 = vmatprep.subr.mxu0 0.0
  %1751 = vmatpush1.xpose.msra.mxu0 0.0
  %1752 = vmatprep.subr.mxu0 0.0
  %1753 = vmatpush1.xpose.msra.mxu0 0.0
  %1754 = vmatprep.subr.mxu0 0.0
  %1755 = vmatpush1.xpose.msra.mxu0 0.0
  %1756 = vmatprep.subr.mxu0 0.0
  %1757 = vmatpush1.xpose.msra.mxu0 0.0
  %1758 = vmatprep.subr.mxu0 0.0
  %1759 = vmatpush1.xpose.msra.mxu0 0.0
  %1760 = vmatprep.subr.mxu0 0.0
  %1761 = vmatpush1.xpose.msra.mxu0 0.0
  %1762 = vmatprep.subr.mxu0 0.0
  %1763 = vmatpush1.xpose.msra.mxu0 0.0
  %1764 = vmatprep.subr.mxu0 0.0
  %1765 = vmatpush1.xpose.msra.mxu0 0.0
  %1766 = vmatprep.subr.mxu0 0.0
  %1767 = vmatpush1.xpose.msra.mxu0 0.0
  %1768 = vmatprep.subr.mxu0 0.0
  %1769 = vmatpush1.xpose.msra.mxu0 0.0
  %1770 = vmatprep.subr.mxu0 0.0
  %1771 = vmatpush1.xpose.msra.mxu0 0.0
  %1772 = vmatprep.subr.mxu0 0.0
  %1773 = vmatpush1.xpose.msra.mxu0 0.0
  %1774 = vmatprep.subr.mxu0 0.0
  %1775 = vmatpush1.xpose.msra.mxu0 0.0
  %1776 = vmatprep.subr.mxu0 0.0
  %1777 = vmatpush1.xpose.msra.mxu0 %v1744
  %1778 = vmatprep.subr.mxu0 0.0
  %1779 = vmatpush2.xpose.msra.mxu0 0.0
  %1780 = vmatprep.subr.mxu0 0.0
  %1781 = vmatpush2.xpose.msra.mxu0 0.0
  %1782 = vmatprep.subr.mxu0 0.0
  %1783 = vmatpush2.xpose.msra.mxu0 0.0
  %1784 = vmatprep.subr.mxu0 0.0
  %1785 = vmatpush2.xpose.msra.mxu0 0.0
  %1786 = vmatprep.subr.mxu0 0.0
  %1787 = vmatpush2.xpose.msra.mxu0 0.0
  %1788 = vmatprep.subr.mxu0 0.0
  %1789 = vmatpush2.xpose.msra.mxu0 0.0
  %1790 = vmatprep.subr.mxu0 0.0
  %1791 = vmatpush2.xpose.msra.mxu0 0.0
  %1792 = vmatprep.subr.mxu0 0.0
  %1793 = vmatpush2.xpose.msra.mxu0 0.0
  %1794 = vmatprep.subr.mxu0 0.0
  %1795 = vmatpush2.xpose.msra.mxu0 0.0
  %1796 = vmatprep.subr.mxu0 0.0
  %1797 = vmatpush2.xpose.msra.mxu0 0.0
  %1798 = vmatprep.subr.mxu0 0.0
  %1799 = vmatpush2.xpose.msra.mxu0 0.0
  %1800 = vmatprep.subr.mxu0 0.0
  %1801 = vmatpush2.xpose.msra.mxu0 0.0
  %1802 = vmatprep.subr.mxu0 0.0
  %1803 = vmatpush2.xpose.msra.mxu0 0.0
  %1804 = vmatprep.subr.mxu0 0.0
  %1805 = vmatpush2.xpose.msra.mxu0 0.0
  %1806 = vmatprep.subr.mxu0 0.0
  %1807 = vmatpush2.xpose.msra.mxu0 0.0
  %1808 = vmatprep.subr.mxu0 0.0
  %1809 = vmatpush2.xpose.msra.mxu0 0.0
  %1810 = vmatprep.mubr.f32.mxu0 0.0
  %1811 = vmatmul.mubr.f32.gmra.mxu0 %v1742
  %v1812 = vpop.f32.mrf.mxu0
  %v1813 = vadd.f32 0.0, %v1812
  %v1814 = vpop.f32.mrf.mxu0
  %1815 = vdwg.mxu0
  %v1816 = vmul.f32 %v1813, 0.25
  %v1817 = vadd.f32 %v1816, %v681
  %v1818 = vsel %vm683, %v1817, -inf
  %1819 = vmax.xlane.f32.xlu0 %v1818
  %v1820 = vpop.xlane.xlu0 %1819
  %v1821 = vsub.f32 %v1817, %v1820
  %v1822 = vmul.f32 %v1821, 1.442695
  %v1823 = vpow.pop %v1822
  %v1824 = vsel %vm683, %v1823, 0.0
  %1825 = vadd.xlane.f32.xlu0 %v1824
  %v1826 = vpop.xlane.xlu0 %1825
  %v1827 = vrcp.pop %v1826
  %v1828 = vmul.f32 %v1823, %v1827
  %1829 = vrot.lane.b32.xlu0 %v1731, 64
  %v1830 = vpop.permute.xlu0 %1829
  %v1833 = vsel %vm683, %v1828, 0
  %1835 = vmatprep.subr.mxu0 0.0
  %1836 = vmatpush1.msra.mxu0 0.0
  %1837 = vmatprep.subr.mxu0 0.0
  %1838 = vmatpush1.msra.mxu0 0.0
  %1839 = vmatprep.subr.mxu0 0.0
  %1840 = vmatpush1.msra.mxu0 0.0
  %1841 = vmatprep.subr.mxu0 0.0
  %1842 = vmatpush1.msra.mxu0 0.0
  %1843 = vmatprep.subr.mxu0 0.0
  %1844 = vmatpush1.msra.mxu0 0.0
  %1845 = vmatprep.subr.mxu0 0.0
  %1846 = vmatpush1.msra.mxu0 0.0
  %1847 = vmatprep.subr.mxu0 0.0
  %1848 = vmatpush1.msra.mxu0 0.0
  %1849 = vmatprep.subr.mxu0 0.0
  %1850 = vmatpush1.msra.mxu0 0.0
  %1851 = vmatprep.subr.mxu0 0.0
  %1852 = vmatpush1.msra.mxu0 0.0
  %1853 = vmatprep.subr.mxu0 0.0
  %1854 = vmatpush1.msra.mxu0 0.0
  %1855 = vmatprep.subr.mxu0 0.0
  %1856 = vmatpush1.msra.mxu0 0.0
  %1857 = vmatprep.subr.mxu0 0.0
  %1858 = vmatpush1.msra.mxu0 0.0
  %1859 = vmatprep.subr.mxu0 0.0
  %1860 = vmatpush1.msra.mxu0 0.0
  %1861 = vmatprep.subr.mxu0 0.0
  %1862 = vmatpush1.msra.mxu0 0.0
  %1863 = vmatprep.subr.mxu0 0.0
  %1864 = vmatpush1.msra.mxu0 0.0
  %1865 = vmatprep.subr.mxu0 0.0
  %1866 = vmatpush1.msra.mxu0 %v1830
  %1867 = vmatprep.subr.mxu0 0.0
  %1868 = vmatpush2.msra.mxu0 0.0
  %1869 = vmatprep.subr.mxu0 0.0
  %1870 = vmatpush2.msra.mxu0 0.0
  %1871 = vmatprep.subr.mxu0 0.0
  %1872 = vmatpush2.msra.mxu0 0.0
  %1873 = vmatprep.subr.mxu0 0.0
  %1874 = vmatpush2.msra.mxu0 0.0
  %1875 = vmatprep.subr.mxu0 0.0
  %1876 = vmatpush2.msra.mxu0 0.0
  %1877 = vmatprep.subr.mxu0 0.0
  %1878 = vmatpush2.msra.mxu0 0.0
  %1879 = vmatprep.subr.mxu0 0.0
  %1880 = vmatpush2.msra.mxu0 0.0
  %1881 = vmatprep.subr.mxu0 0.0
  %1882 = vmatpush2.msra.mxu0 0.0
  %1883 = vmatprep.subr.mxu0 0.0
  %1884 = vmatpush2.msra.mxu0 0.0
  %1885 = vmatprep.subr.mxu0 0.0
  %1886 = vmatpush2.msra.mxu0 0.0
  %1887 = vmatprep.subr.mxu0 0.0
  %1888 = vmatpush2.msra.mxu0 0.0
  %1889 = vmatprep.subr.mxu0 0.0
  %1890 = vmatpush2.msra.mxu0 0.0
  %1891 = vmatprep.subr.mxu0 0.0
  %1892 = vmatpush2.msra.mxu0 0.0
  %1893 = vmatprep.subr.mxu0 0.0
  %1894 = vmatpush2.msra.mxu0 0.0
  %1895 = vmatprep.subr.mxu0 0.0
  %1896 = vmatpush2.msra.mxu0 0.0
  %1897 = vmatprep.subr.mxu0 0.0
  %1898 = vmatpush2.msra.mxu0 0.0
  %1899 = vmatprep.mubr.f32.mxu0 0.0
  %1900 = vmatmul.mubr.f32.gmra.mxu0 %v1833
  %v1901 = vpop.f32.mrf.mxu0
  %v1902 = vadd.f32 0.0, %v1901
  %v1903 = vpop.f32.mrf.mxu0
  %1904 = vdwg.mxu0
  %1905 = vrot.lane.b32.xlu0 %v1731, 112
  %v1906 = vpop.permute.xlu0 %1905
  %1907 = vrot.lane.b32.xlu0 %v1731, 80
  %v1908 = vpop.permute.xlu0 %1907
  %v1909 = vsel %vm602, %v1906, 0
  %v1911 = vsel %vm602, %v1908, 0
  %1913 = vmatprep.subr.mxu0 0.0
  %1914 = vmatpush1.xpose.msra.mxu0 0.0
  %1915 = vmatprep.subr.mxu0 0.0
  %1916 = vmatpush1.xpose.msra.mxu0 0.0
  %1917 = vmatprep.subr.mxu0 0.0
  %1918 = vmatpush1.xpose.msra.mxu0 0.0
  %1919 = vmatprep.subr.mxu0 0.0
  %1920 = vmatpush1.xpose.msra.mxu0 0.0
  %1921 = vmatprep.subr.mxu0 0.0
  %1922 = vmatpush1.xpose.msra.mxu0 0.0
  %1923 = vmatprep.subr.mxu0 0.0
  %1924 = vmatpush1.xpose.msra.mxu0 0.0
  %1925 = vmatprep.subr.mxu0 0.0
  %1926 = vmatpush1.xpose.msra.mxu0 0.0
  %1927 = vmatprep.subr.mxu0 0.0
  %1928 = vmatpush1.xpose.msra.mxu0 0.0
  %1929 = vmatprep.subr.mxu0 0.0
  %1930 = vmatpush1.xpose.msra.mxu0 0.0
  %1931 = vmatprep.subr.mxu0 0.0
  %1932 = vmatpush1.xpose.msra.mxu0 0.0
  %1933 = vmatprep.subr.mxu0 0.0
  %1934 = vmatpush1.xpose.msra.mxu0 0.0
  %1935 = vmatprep.subr.mxu0 0.0
  %1936 = vmatpush1.xpose.msra.mxu0 0.0
  %1937 = vmatprep.subr.mxu0 0.0
  %1938 = vmatpush1.xpose.msra.mxu0 0.0
  %1939 = vmatprep.subr.mxu0 0.0
  %1940 = vmatpush1.xpose.msra.mxu0 0.0
  %1941 = vmatprep.subr.mxu0 0.0
  %1942 = vmatpush1.xpose.msra.mxu0 0.0
  %1943 = vmatprep.subr.mxu0 0.0
  %1944 = vmatpush1.xpose.msra.mxu0 %v1911
  %1945 = vmatprep.subr.mxu0 0.0
  %1946 = vmatpush2.xpose.msra.mxu0 0.0
  %1947 = vmatprep.subr.mxu0 0.0
  %1948 = vmatpush2.xpose.msra.mxu0 0.0
  %1949 = vmatprep.subr.mxu0 0.0
  %1950 = vmatpush2.xpose.msra.mxu0 0.0
  %1951 = vmatprep.subr.mxu0 0.0
  %1952 = vmatpush2.xpose.msra.mxu0 0.0
  %1953 = vmatprep.subr.mxu0 0.0
  %1954 = vmatpush2.xpose.msra.mxu0 0.0
  %1955 = vmatprep.subr.mxu0 0.0
  %1956 = vmatpush2.xpose.msra.mxu0 0.0
  %1957 = vmatprep.subr.mxu0 0.0
  %1958 = vmatpush2.xpose.msra.mxu0 0.0
  %1959 = vmatprep.subr.mxu0 0.0
  %1960 = vmatpush2.xpose.msra.mxu0 0.0
  %1961 = vmatprep.subr.mxu0 0.0
  %1962 = vmatpush2.xpose.msra.mxu0 0.0
  %1963 = vmatprep.subr.mxu0 0.0
  %1964 = vmatpush2.xpose.msra.mxu0 0.0
  %1965 = vmatprep.subr.mxu0 0.0
  %1966 = vmatpush2.xpose.msra.mxu0 0.0
  %1967 = vmatprep.subr.mxu0 0.0
  %1968 = vmatpush2.xpose.msra.mxu0 0.0
  %1969 = vmatprep.subr.mxu0 0.0
  %1970 = vmatpush2.xpose.msra.mxu0 0.0
  %1971 = vmatprep.subr.mxu0 0.0
  %1972 = vmatpush2.xpose.msra.mxu0 0.0
  %1973 = vmatprep.subr.mxu0 0.0
  %1974 = vmatpush2.xpose.msra.mxu0 0.0
  %1975 = vmatprep.subr.mxu0 0.0
  %1976 = vmatpush2.xpose.msra.mxu0 0.0
  %1977 = vmatprep.mubr.f32.mxu0 0.0
  %1978 = vmatmul.mubr.f32.gmra.mxu0 %v1909
  %v1979 = vpop.f32.mrf.mxu0
  %v1980 = vadd.f32 0.0, %v1979
  %v1981 = vpop.f32.mrf.mxu0
  %1982 = vdwg.mxu0
  %v1983 = vmul.f32 %v1980, 0.25
  %v1984 = vadd.f32 %v1983, %v681
  %v1985 = vsel %vm683, %v1984, -inf
  %1986 = vmax.xlane.f32.xlu0 %v1985
  %v1987 = vpop.xlane.xlu0 %1986
  %v1988 = vsub.f32 %v1984, %v1987
  %v1989 = vmul.f32 %v1988, 1.442695
  %v1990 = vpow.pop %v1989
  %v1991 = vsel %vm683, %v1990, 0.0
  %1992 = vadd.xlane.f32.xlu0 %v1991
  %v1993 = vpop.xlane.xlu0 %1992
  %v1994 = vrcp.pop %v1993
  %v1995 = vmul.f32 %v1990, %v1994
  %1996 = vrot.lane.b32.xlu0 %v1731, 48
  %v1997 = vpop.permute.xlu0 %1996
  %v2000 = vsel %vm683, %v1995, 0
  %2002 = vmatprep.subr.mxu0 0.0
  %2003 = vmatpush1.msra.mxu0 0.0
  %2004 = vmatprep.subr.mxu0 0.0
  %2005 = vmatpush1.msra.mxu0 0.0
  %2006 = vmatprep.subr.mxu0 0.0
  %2007 = vmatpush1.msra.mxu0 0.0
  %2008 = vmatprep.subr.mxu0 0.0
  %2009 = vmatpush1.msra.mxu0 0.0
  %2010 = vmatprep.subr.mxu0 0.0
  %2011 = vmatpush1.msra.mxu0 0.0
  %2012 = vmatprep.subr.mxu0 0.0
  %2013 = vmatpush1.msra.mxu0 0.0
  %2014 = vmatprep.subr.mxu0 0.0
  %2015 = vmatpush1.msra.mxu0 0.0
  %2016 = vmatprep.subr.mxu0 0.0
  %2017 = vmatpush1.msra.mxu0 0.0
  %2018 = vmatprep.subr.mxu0 0.0
  %2019 = vmatpush1.msra.mxu0 0.0
  %2020 = vmatprep.subr.mxu0 0.0
  %2021 = vmatpush1.msra.mxu0 0.0
  %2022 = vmatprep.subr.mxu0 0.0
  %2023 = vmatpush1.msra.mxu0 0.0
  %2024 = vmatprep.subr.mxu0 0.0
  %2025 = vmatpush1.msra.mxu0 0.0
  %2026 = vmatprep.subr.mxu0 0.0
  %2027 = vmatpush1.msra.mxu0 0.0
  %2028 = vmatprep.subr.mxu0 0.0
  %2029 = vmatpush1.msra.mxu0 0.0
  %2030 = vmatprep.subr.mxu0 0.0
  %2031 = vmatpush1.msra.mxu0 0.0
  %2032 = vmatprep.subr.mxu0 0.0
  %2033 = vmatpush1.msra.mxu0 %v1997
  %2034 = vmatprep.subr.mxu0 0.0
  %2035 = vmatpush2.msra.mxu0 0.0
  %2036 = vmatprep.subr.mxu0 0.0
  %2037 = vmatpush2.msra.mxu0 0.0
  %2038 = vmatprep.subr.mxu0 0.0
  %2039 = vmatpush2.msra.mxu0 0.0
  %2040 = vmatprep.subr.mxu0 0.0
  %2041 = vmatpush2.msra.mxu0 0.0
  %2042 = vmatprep.subr.mxu0 0.0
  %2043 = vmatpush2.msra.mxu0 0.0
  %2044 = vmatprep.subr.mxu0 0.0
  %2045 = vmatpush2.msra.mxu0 0.0
  %2046 = vmatprep.subr.mxu0 0.0
  %2047 = vmatpush2.msra.mxu0 0.0
  %2048 = vmatprep.subr.mxu0 0.0
  %2049 = vmatpush2.msra.mxu0 0.0
  %2050 = vmatprep.subr.mxu0 0.0
  %2051 = vmatpush2.msra.mxu0 0.0
  %2052 = vmatprep.subr.mxu0 0.0
  %2053 = vmatpush2.msra.mxu0 0.0
  %2054 = vmatprep.subr.mxu0 0.0
  %2055 = vmatpush2.msra.mxu0 0.0
  %2056 = vmatprep.subr.mxu0 0.0
  %2057 = vmatpush2.msra.mxu0 0.0
  %2058 = vmatprep.subr.mxu0 0.0
  %2059 = vmatpush2.msra.mxu0 0.0
  %2060 = vmatprep.subr.mxu0 0.0
  %2061 = vmatpush2.msra.mxu0 0.0
  %2062 = vmatprep.subr.mxu0 0.0
  %2063 = vmatpush2.msra.mxu0 0.0
  %2064 = vmatprep.subr.mxu0 0.0
  %2065 = vmatpush2.msra.mxu0 0.0
  %2066 = vmatprep.mubr.f32.mxu0 0.0
  %2067 = vmatmul.mubr.f32.gmra.mxu0 %v2000
  %v2068 = vpop.f32.mrf.mxu0
  %v2069 = vadd.f32 0.0, %v2068
  %v2070 = vpop.f32.mrf.mxu0
  %2071 = vdwg.mxu0
  %2073 = vrot.lane.b32.xlu0 %v2069, 16
  %v2074 = vpop.permute.xlu0 %2073
  %v2076 = vsel %vm602, %v1902, %v2074
  %2078 = vrot.lane.b32.xlu0 %v1736, 96
  %v2079 = vpop.permute.xlu0 %2078
  %v2080 = vsel %vm602, %v1736, 0
  %v2082 = vsel %vm602, %v2079, 0
  %2084 = vmatprep.subr.mxu0 0.0
  %2085 = vmatpush1.xpose.msra.mxu0 0.0
  %2086 = vmatprep.subr.mxu0 0.0
  %2087 = vmatpush1.xpose.msra.mxu0 0.0
  %2088 = vmatprep.subr.mxu0 0.0
  %2089 = vmatpush1.xpose.msra.mxu0 0.0
  %2090 = vmatprep.subr.mxu0 0.0
  %2091 = vmatpush1.xpose.msra.mxu0 0.0
  %2092 = vmatprep.subr.mxu0 0.0
  %2093 = vmatpush1.xpose.msra.mxu0 0.0
  %2094 = vmatprep.subr.mxu0 0.0
  %2095 = vmatpush1.xpose.msra.mxu0 0.0
  %2096 = vmatprep.subr.mxu0 0.0
  %2097 = vmatpush1.xpose.msra.mxu0 0.0
  %2098 = vmatprep.subr.mxu0 0.0
  %2099 = vmatpush1.xpose.msra.mxu0 0.0
  %2100 = vmatprep.subr.mxu0 0.0
  %2101 = vmatpush1.xpose.msra.mxu0 0.0
  %2102 = vmatprep.subr.mxu0 0.0
  %2103 = vmatpush1.xpose.msra.mxu0 0.0
  %2104 = vmatprep.subr.mxu0 0.0
  %2105 = vmatpush1.xpose.msra.mxu0 0.0
  %2106 = vmatprep.subr.mxu0 0.0
  %2107 = vmatpush1.xpose.msra.mxu0 0.0
  %2108 = vmatprep.subr.mxu0 0.0
  %2109 = vmatpush1.xpose.msra.mxu0 0.0
  %2110 = vmatprep.subr.mxu0 0.0
  %2111 = vmatpush1.xpose.msra.mxu0 0.0
  %2112 = vmatprep.subr.mxu0 0.0
  %2113 = vmatpush1.xpose.msra.mxu0 0.0
  %2114 = vmatprep.subr.mxu0 0.0
  %2115 = vmatpush1.xpose.msra.mxu0 %v2082
  %2116 = vmatprep.subr.mxu0 0.0
  %2117 = vmatpush2.xpose.msra.mxu0 0.0
  %2118 = vmatprep.subr.mxu0 0.0
  %2119 = vmatpush2.xpose.msra.mxu0 0.0
  %2120 = vmatprep.subr.mxu0 0.0
  %2121 = vmatpush2.xpose.msra.mxu0 0.0
  %2122 = vmatprep.subr.mxu0 0.0
  %2123 = vmatpush2.xpose.msra.mxu0 0.0
  %2124 = vmatprep.subr.mxu0 0.0
  %2125 = vmatpush2.xpose.msra.mxu0 0.0
  %2126 = vmatprep.subr.mxu0 0.0
  %2127 = vmatpush2.xpose.msra.mxu0 0.0
  %2128 = vmatprep.subr.mxu0 0.0
  %2129 = vmatpush2.xpose.msra.mxu0 0.0
  %2130 = vmatprep.subr.mxu0 0.0
  %2131 = vmatpush2.xpose.msra.mxu0 0.0
  %2132 = vmatprep.subr.mxu0 0.0
  %2133 = vmatpush2.xpose.msra.mxu0 0.0
  %2134 = vmatprep.subr.mxu0 0.0
  %2135 = vmatpush2.xpose.msra.mxu0 0.0
  %2136 = vmatprep.subr.mxu0 0.0
  %2137 = vmatpush2.xpose.msra.mxu0 0.0
  %2138 = vmatprep.subr.mxu0 0.0
  %2139 = vmatpush2.xpose.msra.mxu0 0.0
  %2140 = vmatprep.subr.mxu0 0.0
  %2141 = vmatpush2.xpose.msra.mxu0 0.0
  %2142 = vmatprep.subr.mxu0 0.0
  %2143 = vmatpush2.xpose.msra.mxu0 0.0
  %2144 = vmatprep.subr.mxu0 0.0
  %2145 = vmatpush2.xpose.msra.mxu0 0.0
  %2146 = vmatprep.subr.mxu0 0.0
  %2147 = vmatpush2.xpose.msra.mxu0 0.0
  %2148 = vmatprep.mubr.f32.mxu0 0.0
  %2149 = vmatmul.mubr.f32.gmra.mxu0 %v2080
  %v2150 = vpop.f32.mrf.mxu0
  %v2151 = vadd.f32 0.0, %v2150
  %v2152 = vpop.f32.mrf.mxu0
  %2153 = vdwg.mxu0
  %v2154 = vmul.f32 %v2151, 0.25
  %v2155 = vadd.f32 %v2154, %v1024
  %v2156 = vsel %vm683, %v2155, -inf
  %2157 = vmax.xlane.f32.xlu0 %v2156
  %v2158 = vpop.xlane.xlu0 %2157
  %v2159 = vsub.f32 %v2155, %v2158
  %v2160 = vmul.f32 %v2159, 1.442695
  %v2161 = vpow.pop %v2160
  %v2162 = vsel %vm683, %v2161, 0.0
  %2163 = vadd.xlane.f32.xlu0 %v2162
  %v2164 = vpop.xlane.xlu0 %2163
  %v2165 = vrcp.pop %v2164
  %v2166 = vmul.f32 %v2161, %v2165
  %2167 = vrot.lane.b32.xlu0 %v1736, 64
  %v2168 = vpop.permute.xlu0 %2167
  %v2171 = vsel %vm683, %v2166, 0
  %2173 = vmatprep.subr.mxu0 0.0
  %2174 = vmatpush1.msra.mxu0 0.0
  %2175 = vmatprep.subr.mxu0 0.0
  %2176 = vmatpush1.msra.mxu0 0.0
  %2177 = vmatprep.subr.mxu0 0.0
  %2178 = vmatpush1.msra.mxu0 0.0
  %2179 = vmatprep.subr.mxu0 0.0
  %2180 = vmatpush1.msra.mxu0 0.0
  %2181 = vmatprep.subr.mxu0 0.0
  %2182 = vmatpush1.msra.mxu0 0.0
  %2183 = vmatprep.subr.mxu0 0.0
  %2184 = vmatpush1.msra.mxu0 0.0
  %2185 = vmatprep.subr.mxu0 0.0
  %2186 = vmatpush1.msra.mxu0 0.0
  %2187 = vmatprep.subr.mxu0 0.0
  %2188 = vmatpush1.msra.mxu0 0.0
  %2189 = vmatprep.subr.mxu0 0.0
  %2190 = vmatpush1.msra.mxu0 0.0
  %2191 = vmatprep.subr.mxu0 0.0
  %2192 = vmatpush1.msra.mxu0 0.0
  %2193 = vmatprep.subr.mxu0 0.0
  %2194 = vmatpush1.msra.mxu0 0.0
  %2195 = vmatprep.subr.mxu0 0.0
  %2196 = vmatpush1.msra.mxu0 0.0
  %2197 = vmatprep.subr.mxu0 0.0
  %2198 = vmatpush1.msra.mxu0 0.0
  %2199 = vmatprep.subr.mxu0 0.0
  %2200 = vmatpush1.msra.mxu0 0.0
  %2201 = vmatprep.subr.mxu0 0.0
  %2202 = vmatpush1.msra.mxu0 0.0
  %2203 = vmatprep.subr.mxu0 0.0
  %2204 = vmatpush1.msra.mxu0 %v2168
  %2205 = vmatprep.subr.mxu0 0.0
  %2206 = vmatpush2.msra.mxu0 0.0
  %2207 = vmatprep.subr.mxu0 0.0
  %2208 = vmatpush2.msra.mxu0 0.0
  %2209 = vmatprep.subr.mxu0 0.0
  %2210 = vmatpush2.msra.mxu0 0.0
  %2211 = vmatprep.subr.mxu0 0.0
  %2212 = vmatpush2.msra.mxu0 0.0
  %2213 = vmatprep.subr.mxu0 0.0
  %2214 = vmatpush2.msra.mxu0 0.0
  %2215 = vmatprep.subr.mxu0 0.0
  %2216 = vmatpush2.msra.mxu0 0.0
  %2217 = vmatprep.subr.mxu0 0.0
  %2218 = vmatpush2.msra.mxu0 0.0
  %2219 = vmatprep.subr.mxu0 0.0
  %2220 = vmatpush2.msra.mxu0 0.0
  %2221 = vmatprep.subr.mxu0 0.0
  %2222 = vmatpush2.msra.mxu0 0.0
  %2223 = vmatprep.subr.mxu0 0.0
  %2224 = vmatpush2.msra.mxu0 0.0
  %2225 = vmatprep.subr.mxu0 0.0
  %2226 = vmatpush2.msra.mxu0 0.0
  %2227 = vmatprep.subr.mxu0 0.0
  %2228 = vmatpush2.msra.mxu0 0.0
  %2229 = vmatprep.subr.mxu0 0.0
  %2230 = vmatpush2.msra.mxu0 0.0
  %2231 = vmatprep.subr.mxu0 0.0
  %2232 = vmatpush2.msra.mxu0 0.0
  %2233 = vmatprep.subr.mxu0 0.0
  %2234 = vmatpush2.msra.mxu0 0.0
  %2235 = vmatprep.subr.mxu0 0.0
  %2236 = vmatpush2.msra.mxu0 0.0
  %2237 = vmatprep.mubr.f32.mxu0 0.0
  %2238 = vmatmul.mubr.f32.gmra.mxu0 %v2171
  %v2239 = vpop.f32.mrf.mxu0
  %v2240 = vadd.f32 0.0, %v2239
  %v2241 = vpop.f32.mrf.mxu0
  %2242 = vdwg.mxu0
  %2243 = vrot.lane.b32.xlu0 %v1736, 112
  %v2244 = vpop.permute.xlu0 %2243
  %2245 = vrot.lane.b32.xlu0 %v1736, 80
  %v2246 = vpop.permute.xlu0 %2245
  %v2247 = vsel %vm602, %v2244, 0
  %v2249 = vsel %vm602, %v2246, 0
  %2251 = vmatprep.subr.mxu0 0.0
  %2252 = vmatpush1.xpose.msra.mxu0 0.0
  %2253 = vmatprep.subr.mxu0 0.0
  %2254 = vmatpush1.xpose.msra.mxu0 0.0
  %2255 = vmatprep.subr.mxu0 0.0
  %2256 = vmatpush1.xpose.msra.mxu0 0.0
  %2257 = vmatprep.subr.mxu0 0.0
  %2258 = vmatpush1.xpose.msra.mxu0 0.0
  %2259 = vmatprep.subr.mxu0 0.0
  %2260 = vmatpush1.xpose.msra.mxu0 0.0
  %2261 = vmatprep.subr.mxu0 0.0
  %2262 = vmatpush1.xpose.msra.mxu0 0.0
  %2263 = vmatprep.subr.mxu0 0.0
  %2264 = vmatpush1.xpose.msra.mxu0 0.0
  %2265 = vmatprep.subr.mxu0 0.0
  %2266 = vmatpush1.xpose.msra.mxu0 0.0
  %2267 = vmatprep.subr.mxu0 0.0
  %2268 = vmatpush1.xpose.msra.mxu0 0.0
  %2269 = vmatprep.subr.mxu0 0.0
  %2270 = vmatpush1.xpose.msra.mxu0 0.0
  %2271 = vmatprep.subr.mxu0 0.0
  %2272 = vmatpush1.xpose.msra.mxu0 0.0
  %2273 = vmatprep.subr.mxu0 0.0
  %2274 = vmatpush1.xpose.msra.mxu0 0.0
  %2275 = vmatprep.subr.mxu0 0.0
  %2276 = vmatpush1.xpose.msra.mxu0 0.0
  %2277 = vmatprep.subr.mxu0 0.0
  %2278 = vmatpush1.xpose.msra.mxu0 0.0
  %2279 = vmatprep.subr.mxu0 0.0
  %2280 = vmatpush1.xpose.msra.mxu0 0.0
  %2281 = vmatprep.subr.mxu0 0.0
  %2282 = vmatpush1.xpose.msra.mxu0 %v2249
  %2283 = vmatprep.subr.mxu0 0.0
  %2284 = vmatpush2.xpose.msra.mxu0 0.0
  %2285 = vmatprep.subr.mxu0 0.0
  %2286 = vmatpush2.xpose.msra.mxu0 0.0
  %2287 = vmatprep.subr.mxu0 0.0
  %2288 = vmatpush2.xpose.msra.mxu0 0.0
  %2289 = vmatprep.subr.mxu0 0.0
  %2290 = vmatpush2.xpose.msra.mxu0 0.0
  %2291 = vmatprep.subr.mxu0 0.0
  %2292 = vmatpush2.xpose.msra.mxu0 0.0
  %2293 = vmatprep.subr.mxu0 0.0
  %2294 = vmatpush2.xpose.msra.mxu0 0.0
  %2295 = vmatprep.subr.mxu0 0.0
  %2296 = vmatpush2.xpose.msra.mxu0 0.0
  %2297 = vmatprep.subr.mxu0 0.0
  %2298 = vmatpush2.xpose.msra.mxu0 0.0
  %2299 = vmatprep.subr.mxu0 0.0
  %2300 = vmatpush2.xpose.msra.mxu0 0.0
  %2301 = vmatprep.subr.mxu0 0.0
  %2302 = vmatpush2.xpose.msra.mxu0 0.0
  %2303 = vmatprep.subr.mxu0 0.0
  %2304 = vmatpush2.xpose.msra.mxu0 0.0
  %2305 = vmatprep.subr.mxu0 0.0
  %2306 = vmatpush2.xpose.msra.mxu0 0.0
  %2307 = vmatprep.subr.mxu0 0.0
  %2308 = vmatpush2.xpose.msra.mxu0 0.0
  %2309 = vmatprep.subr.mxu0 0.0
  %2310 = vmatpush2.xpose.msra.mxu0 0.0
  %2311 = vmatprep.subr.mxu0 0.0
  %2312 = vmatpush2.xpose.msra.mxu0 0.0
  %2313 = vmatprep.subr.mxu0 0.0
  %2314 = vmatpush2.xpose.msra.mxu0 0.0
  %2315 = vmatprep.mubr.f32.mxu0 0.0
  %2316 = vmatmul.mubr.f32.gmra.mxu0 %v2247
  %v2317 = vpop.f32.mrf.mxu0
  %v2318 = vadd.f32 0.0, %v2317
  %v2319 = vpop.f32.mrf.mxu0
  %2320 = vdwg.mxu0
  %v2321 = vmul.f32 %v2318, 0.25
  %v2322 = vadd.f32 %v2321, %v1024
  %v2323 = vsel %vm683, %v2322, -inf
  %2324 = vmax.xlane.f32.xlu0 %v2323
  %v2325 = vpop.xlane.xlu0 %2324
  %v2326 = vsub.f32 %v2322, %v2325
  %v2327 = vmul.f32 %v2326, 1.442695
  %v2328 = vpow.pop %v2327
  %v2329 = vsel %vm683, %v2328, 0.0
  %2330 = vadd.xlane.f32.xlu0 %v2329
  %v2331 = vpop.xlane.xlu0 %2330
  %v2332 = vrcp.pop %v2331
  %v2333 = vmul.f32 %v2328, %v2332
  %2334 = vrot.lane.b32.xlu0 %v1736, 48
  %v2335 = vpop.permute.xlu0 %2334
  %v2338 = vsel %vm683, %v2333, 0
  %2340 = vmatprep.subr.mxu0 0.0
  %2341 = vmatpush1.msra.mxu0 0.0
  %2342 = vmatprep.subr.mxu0 0.0
  %2343 = vmatpush1.msra.mxu0 0.0
  %2344 = vmatprep.subr.mxu0 0.0
  %2345 = vmatpush1.msra.mxu0 0.0
  %2346 = vmatprep.subr.mxu0 0.0
  %2347 = vmatpush1.msra.mxu0 0.0
  %2348 = vmatprep.subr.mxu0 0.0
  %2349 = vmatpush1.msra.mxu0 0.0
  %2350 = vmatprep.subr.mxu0 0.0
  %2351 = vmatpush1.msra.mxu0 0.0
  %2352 = vmatprep.subr.mxu0 0.0
  %2353 = vmatpush1.msra.mxu0 0.0
  %2354 = vmatprep.subr.mxu0 0.0
  %2355 = vmatpush1.msra.mxu0 0.0
  %2356 = vmatprep.subr.mxu0 0.0
  %2357 = vmatpush1.msra.mxu0 0.0
  %2358 = vmatprep.subr.mxu0 0.0
  %2359 = vmatpush1.msra.mxu0 0.0
  %2360 = vmatprep.subr.mxu0 0.0
  %2361 = vmatpush1.msra.mxu0 0.0
  %2362 = vmatprep.subr.mxu0 0.0
  %2363 = vmatpush1.msra.mxu0 0.0
  %2364 = vmatprep.subr.mxu0 0.0
  %2365 = vmatpush1.msra.mxu0 0.0
  %2366 = vmatprep.subr.mxu0 0.0
  %2367 = vmatpush1.msra.mxu0 0.0
  %2368 = vmatprep.subr.mxu0 0.0
  %2369 = vmatpush1.msra.mxu0 0.0
  %2370 = vmatprep.subr.mxu0 0.0
  %2371 = vmatpush1.msra.mxu0 %v2335
  %2372 = vmatprep.subr.mxu0 0.0
  %2373 = vmatpush2.msra.mxu0 0.0
  %2374 = vmatprep.subr.mxu0 0.0
  %2375 = vmatpush2.msra.mxu0 0.0
  %2376 = vmatprep.subr.mxu0 0.0
  %2377 = vmatpush2.msra.mxu0 0.0
  %2378 = vmatprep.subr.mxu0 0.0
  %2379 = vmatpush2.msra.mxu0 0.0
  %2380 = vmatprep.subr.mxu0 0.0
  %2381 = vmatpush2.msra.mxu0 0.0
  %2382 = vmatprep.subr.mxu0 0.0
  %2383 = vmatpush2.msra.mxu0 0.0
  %2384 = vmatprep.subr.mxu0 0.0
  %2385 = vmatpush2.msra.mxu0 0.0
  %2386 = vmatprep.subr.mxu0 0.0
  %2387 = vmatpush2.msra.mxu0 0.0
  %2388 = vmatprep.subr.mxu0 0.0
  %2389 = vmatpush2.msra.mxu0 0.0
  %2390 = vmatprep.subr.mxu0 0.0
  %2391 = vmatpush2.msra.mxu0 0.0
  %2392 = vmatprep.subr.mxu0 0.0
  %2393 = vmatpush2.msra.mxu0 0.0
  %2394 = vmatprep.subr.mxu0 0.0
  %2395 = vmatpush2.msra.mxu0 0.0
  %2396 = vmatprep.subr.mxu0 0.0
  %2397 = vmatpush2.msra.mxu0 0.0
  %2398 = vmatprep.subr.mxu0 0.0
  %2399 = vmatpush2.msra.mxu0 0.0
  %2400 = vmatprep.subr.mxu0 0.0
  %2401 = vmatpush2.msra.mxu0 0.0
  %2402 = vmatprep.subr.mxu0 0.0
  %2403 = vmatpush2.msra.mxu0 0.0
  %2404 = vmatprep.mubr.f32.mxu0 0.0
  %2405 = vmatmul.mubr.f32.gmra.mxu0 %v2338
  %v2406 = vpop.f32.mrf.mxu0
  %v2407 = vadd.f32 0.0, %v2406
  %v2408 = vpop.f32.mrf.mxu0
  %2409 = vdwg.mxu0
  %2411 = vrot.lane.b32.xlu0 %v2407, 16
  %v2412 = vpop.permute.xlu0 %2411
  %v2414 = vsel %vm602, %v2240, %v2412
  %v2416 = vlaneseq
  %v2417 = vshrl.u32 %v2416, 7
  %v2418 = vsub.s32 0, %v2417
  %v2419 = vrot.slane %v227, %v2418
  %v2422 = vsel %vm466, %v2076, 0
  %v2425 = vsel %vm466, %v2414, 0
  %2427 = vmatprep.subr.mxu0 0.0
  %2428 = vmatpush1.msra.mxu0 0.0
  %2429 = vmatprep.subr.mxu0 0.0
  %2430 = vmatpush1.msra.mxu0 0.0
  %2431 = vmatprep.subr.mxu0 0.0
  %2432 = vmatpush1.msra.mxu0 0.0
  %2433 = vmatprep.subr.mxu0 0.0
  %2434 = vmatpush1.msra.mxu0 0.0
  %2435 = vmatprep.subr.mxu0 0.0
  %2436 = vmatpush1.msra.mxu0 0.0
  %2437 = vmatprep.subr.mxu0 0.0
  %2438 = vmatpush1.msra.mxu0 0.0
  %2439 = vmatprep.subr.mxu0 0.0
  %2440 = vmatpush1.msra.mxu0 0.0
  %2441 = vmatprep.subr.mxu0 0.0
  %2442 = vmatpush1.msra.mxu0 0.0
  %2443 = vmatprep.subr.mxu0 0.0
  %2444 = vmatpush1.msra.mxu0 0.0
  %2445 = vmatprep.subr.mxu0 0.0
  %2446 = vmatpush1.msra.mxu0 0.0
  %2447 = vmatprep.subr.mxu0 0.0
  %2448 = vmatpush1.msra.mxu0 0.0
  %2449 = vmatprep.subr.mxu0 0.0
  %2450 = vmatpush1.msra.mxu0 0.0
  %2451 = vmatprep.subr.mxu0 0.0
  %2452 = vmatpush1.msra.mxu0 %v226
  %2453 = vmatprep.subr.mxu0 0.0
  %2454 = vmatpush1.msra.mxu0 %v225
  %2455 = vmatprep.subr.mxu0 0.0
  %2456 = vmatpush1.msra.mxu0 %v224
  %2457 = vmatprep.subr.mxu0 0.0
  %2458 = vmatpush1.msra.mxu0 %v223
  %2459 = vmatprep.subr.mxu0 0.0
  %2460 = vmatpush2.msra.mxu0 0.0
  %2461 = vmatprep.subr.mxu0 0.0
  %2462 = vmatpush2.msra.mxu0 0.0
  %2463 = vmatprep.subr.mxu0 0.0
  %2464 = vmatpush2.msra.mxu0 0.0
  %2465 = vmatprep.subr.mxu0 0.0
  %2466 = vmatpush2.msra.mxu0 0.0
  %2467 = vmatprep.subr.mxu0 0.0
  %2468 = vmatpush2.msra.mxu0 0.0
  %2469 = vmatprep.subr.mxu0 0.0
  %2470 = vmatpush2.msra.mxu0 0.0
  %2471 = vmatprep.subr.mxu0 0.0
  %2472 = vmatpush2.msra.mxu0 0.0
  %2473 = vmatprep.subr.mxu0 0.0
  %2474 = vmatpush2.msra.mxu0 0.0
  %2475 = vmatprep.subr.mxu0 0.0
  %2476 = vmatpush2.msra.mxu0 0.0
  %2477 = vmatprep.subr.mxu0 0.0
  %2478 = vmatpush2.msra.mxu0 0.0
  %2479 = vmatprep.subr.mxu0 0.0
  %2480 = vmatpush2.msra.mxu0 0.0
  %2481 = vmatprep.subr.mxu0 0.0
  %2482 = vmatpush2.msra.mxu0 0.0
  %2483 = vmatprep.subr.mxu0 0.0
  %2484 = vmatpush2.msra.mxu0 0.0
  %2485 = vmatprep.subr.mxu0 0.0
  %2486 = vmatpush2.msra.mxu0 0.0
  %2487 = vmatprep.subr.mxu0 0.0
  %2488 = vmatpush2.msra.mxu0 0.0
  %2489 = vmatprep.subr.mxu0 0.0
  %2490 = vmatpush2.msra.mxu0 0.0
  %2491 = vmatprep.mubr.f32.mxu0 0.0
  %2492 = vmatmul.mubr.f32.gmra.mxu0 %v2422
  %v2493 = vpop.f32.mrf.mxu0
  %v2494 = vadd.f32 %v2419, %v2493
  %v2495 = vpop.f32.mrf.mxu0
  %2496 = vmatprep.mubr.f32.mxu0 0.0
  %2497 = vmatmul.mubr.f32.gmra.mxu0 %v2425
  %v2498 = vpop.f32.mrf.mxu0
  %v2499 = vadd.f32 %v2419, %v2498
  %v2500 = vpop.f32.mrf.mxu0
  %2501 = vdwg.mxu0
  %v2502 = vadd.f32 %v2494, %v1650
  %v2503 = vadd.f32 %v2499, %v1651
  %v2504 = vsel %vm466, %v2502, 0.0
  %2505 = vadd.xlane.f32.xlu0 %v2504
  %v2506 = vpop.xlane.xlu0 %2505
  %v2507 = vsel %vm466, %v2503, 0.0
  %2508 = vadd.xlane.f32.xlu0 %v2507
  %v2509 = vpop.xlane.xlu0 %2508
  %v2510 = vmul.f32 %v2506, %v473
  %v2511 = vmul.f32 %v2509, %v473
  %v2512 = vsub.f32 %v2502, %v2510
  %v2513 = vsub.f32 %v2503, %v2511
  %v2514 = vmul.f32 %v2512, %v2512
  %v2515 = vmul.f32 %v2513, %v2513
  %v2516 = vsel %vm466, %v2514, 0.0
  %2517 = vadd.xlane.f32.xlu0 %v2516
  %v2518 = vpop.xlane.xlu0 %2517
  %v2519 = vsel %vm466, %v2515, 0.0
  %2520 = vadd.xlane.f32.xlu0 %v2519
  %v2521 = vpop.xlane.xlu0 %2520
  %v2522 = vmul.f32 %v2518, %v473
  %v2523 = vmul.f32 %v2521, %v473
  %v2524 = vadd.f32 %v2522, 1e-05
  %v2525 = vadd.f32 %v2523, 1e-05
  %v2526 = vrsqrt.pop %v2524
  %v2527 = vrsqrt.pop %v2525
  %v2528 = vmul.f32 %v2512, %v2526
  %v2529 = vmul.f32 %v2513, %v2527
  %v2531 = vlaneseq
  %v2532 = vshrl.u32 %v2531, 7
  %v2533 = vsub.s32 0, %v2532
  %v2534 = vrot.slane %v228, %v2533
  %v2536 = vmul.f32 %v2528, %v2534
  %v2537 = vmul.f32 %v2529, %v2534
  %v2539 = vlaneseq
  %v2540 = vshrl.u32 %v2539, 7
  %v2541 = vsub.s32 0, %v2540
  %v2542 = vrot.slane %v229, %v2541
  %v2544 = vadd.f32 %v2536, %v2542
  %v2545 = vadd.f32 %v2537, %v2542
  %v2547 = vlaneseq
  %v2548 = vshrl.u32 %v2547, 7
  %v2549 = vsub.s32 0, %v2548
  %v2550 = vrot.slane %v234, %v2549
  %v2553 = vsel %vm466, %v2544, 0
  %v2556 = vsel %vm466, %v2545, 0
  %2558 = vmatprep.subr.mxu0 0.0
  %2559 = vmatpush1.msra.mxu0 0.0
  %2560 = vmatprep.subr.mxu0 0.0
  %2561 = vmatpush1.msra.mxu0 0.0
  %2562 = vmatprep.subr.mxu0 0.0
  %2563 = vmatpush1.msra.mxu0 0.0
  %2564 = vmatprep.subr.mxu0 0.0
  %2565 = vmatpush1.msra.mxu0 0.0
  %2566 = vmatprep.subr.mxu0 0.0
  %2567 = vmatpush1.msra.mxu0 0.0
  %2568 = vmatprep.subr.mxu0 0.0
  %2569 = vmatpush1.msra.mxu0 0.0
  %2570 = vmatprep.subr.mxu0 0.0
  %2571 = vmatpush1.msra.mxu0 0.0
  %2572 = vmatprep.subr.mxu0 0.0
  %2573 = vmatpush1.msra.mxu0 0.0
  %2574 = vmatprep.subr.mxu0 0.0
  %2575 = vmatpush1.msra.mxu0 0.0
  %2576 = vmatprep.subr.mxu0 0.0
  %2577 = vmatpush1.msra.mxu0 0.0
  %2578 = vmatprep.subr.mxu0 0.0
  %2579 = vmatpush1.msra.mxu0 0.0
  %2580 = vmatprep.subr.mxu0 0.0
  %2581 = vmatpush1.msra.mxu0 0.0
  %2582 = vmatprep.subr.mxu0 0.0
  %2583 = vmatpush1.msra.mxu0 %v233
  %2584 = vmatprep.subr.mxu0 0.0
  %2585 = vmatpush1.msra.mxu0 %v232
  %2586 = vmatprep.subr.mxu0 0.0
  %2587 = vmatpush1.msra.mxu0 %v231
  %2588 = vmatprep.subr.mxu0 0.0
  %2589 = vmatpush1.msra.mxu0 %v230
  %2590 = vmatprep.subr.mxu0 0.0
  %2591 = vmatpush2.msra.mxu0 0.0
  %2592 = vmatprep.subr.mxu0 0.0
  %2593 = vmatpush2.msra.mxu0 0.0
  %2594 = vmatprep.subr.mxu0 0.0
  %2595 = vmatpush2.msra.mxu0 0.0
  %2596 = vmatprep.subr.mxu0 0.0
  %2597 = vmatpush2.msra.mxu0 0.0
  %2598 = vmatprep.subr.mxu0 0.0
  %2599 = vmatpush2.msra.mxu0 0.0
  %2600 = vmatprep.subr.mxu0 0.0
  %2601 = vmatpush2.msra.mxu0 0.0
  %2602 = vmatprep.subr.mxu0 0.0
  %2603 = vmatpush2.msra.mxu0 0.0
  %2604 = vmatprep.subr.mxu0 0.0
  %2605 = vmatpush2.msra.mxu0 0.0
  %2606 = vmatprep.subr.mxu0 0.0
  %2607 = vmatpush2.msra.mxu0 0.0
  %2608 = vmatprep.subr.mxu0 0.0
  %2609 = vmatpush2.msra.mxu0 0.0
  %2610 = vmatprep.subr.mxu0 0.0
  %2611 = vmatpush2.msra.mxu0 0.0
  %2612 = vmatprep.subr.mxu0 0.0
  %2613 = vmatpush2.msra.mxu0 0.0
  %2614 = vmatprep.subr.mxu0 0.0
  %2615 = vmatpush2.msra.mxu0 0.0
  %2616 = vmatprep.subr.mxu0 0.0
  %2617 = vmatpush2.msra.mxu0 0.0
  %2618 = vmatprep.subr.mxu0 0.0
  %2619 = vmatpush2.msra.mxu0 0.0
  %2620 = vmatprep.subr.mxu0 0.0
  %2621 = vmatpush2.msra.mxu0 0.0
  %2622 = vmatprep.mubr.f32.mxu0 0.0
  %2623 = vmatmul.mubr.f32.gmra.mxu0 %v2553
  %v2624 = vpop.f32.mrf.mxu0
  %v2625 = vadd.f32 %v2550, %v2624
  %v2626 = vpop.f32.mrf.mxu0
  %2627 = vmatprep.mubr.f32.mxu0 0.0
  %2628 = vmatmul.mubr.f32.gmra.mxu0 %v2556
  %v2629 = vpop.f32.mrf.mxu0
  %v2630 = vadd.f32 %v2550, %v2629
  %v2631 = vpop.f32.mrf.mxu0
  %2632 = vdwg.mxu0
  %v2633 = vmul.f32 %v2625, %v2625
  %v2634 = vmul.f32 %v2630, %v2630
  %v2635 = vmul.f32 %v2625, %v2633
  %v2636 = vmul.f32 %v2630, %v2634
  %v2637 = vmul.f32 %v2635, 0.044715
  %v2638 = vmul.f32 %v2636, 0.044715
  %v2639 = vadd.f32 %v2625, %v2637
  %v2640 = vadd.f32 %v2630, %v2638
  %v2641 = vmul.f32 %v2639, 0.7978846
  %v2642 = vmul.f32 %v2640, 0.7978846
  %v2643 = vtanh.pop %v2641
  %v2644 = vtanh.pop %v2642
  %v2645 = vadd.f32 %v2643, 1.0
  %v2646 = vadd.f32 %v2644, 1.0
  %v2647 = vmul.f32 %v2645, 0.5
  %v2648 = vmul.f32 %v2646, 0.5
  %v2649 = vmul.f32 %v2625, %v2647
  %v2650 = vmul.f32 %v2630, %v2648
  %v2652 = vlaneseq
  %v2653 = vshrl.u32 %v2652, 7
  %v2654 = vsub.s32 0, %v2653
  %v2655 = vrot.slane %v243, %v2654
  %v2658 = vsel %vm376, %v2649, 0
  %v2661 = vsel %vm376, %v2650, 0
  %2663 = vmatprep.subr.mxu0 0.0
  %2664 = vmatpush1.msra.mxu0 0.0
  %2665 = vmatprep.subr.mxu0 0.0
  %2666 = vmatpush1.msra.mxu0 0.0
  %2667 = vmatprep.subr.mxu0 0.0
  %2668 = vmatpush1.msra.mxu0 0.0
  %2669 = vmatprep.subr.mxu0 0.0
  %2670 = vmatpush1.msra.mxu0 0.0
  %2671 = vmatprep.subr.mxu0 0.0
  %2672 = vmatpush1.msra.mxu0 0.0
  %2673 = vmatprep.subr.mxu0 0.0
  %2674 = vmatpush1.msra.mxu0 0.0
  %2675 = vmatprep.subr.mxu0 0.0
  %2676 = vmatpush1.msra.mxu0 0.0
  %2677 = vmatprep.subr.mxu0 0.0
  %2678 = vmatpush1.msra.mxu0 0.0
  %2679 = vmatprep.subr.mxu0 0.0
  %2680 = vmatpush1.msra.mxu0 %v242
  %2681 = vmatprep.subr.mxu0 0.0
  %2682 = vmatpush1.msra.mxu0 %v241
  %2683 = vmatprep.subr.mxu0 0.0
  %2684 = vmatpush1.msra.mxu0 %v240
  %2685 = vmatprep.subr.mxu0 0.0
  %2686 = vmatpush1.msra.mxu0 %v239
  %2687 = vmatprep.subr.mxu0 0.0
  %2688 = vmatpush1.msra.mxu0 %v238
  %2689 = vmatprep.subr.mxu0 0.0
  %2690 = vmatpush1.msra.mxu0 %v237
  %2691 = vmatprep.subr.mxu0 0.0
  %2692 = vmatpush1.msra.mxu0 %v236
  %2693 = vmatprep.subr.mxu0 0.0
  %2694 = vmatpush1.msra.mxu0 %v235
  %2695 = vmatprep.subr.mxu0 0.0
  %2696 = vmatpush2.msra.mxu0 0.0
  %2697 = vmatprep.subr.mxu0 0.0
  %2698 = vmatpush2.msra.mxu0 0.0
  %2699 = vmatprep.subr.mxu0 0.0
  %2700 = vmatpush2.msra.mxu0 0.0
  %2701 = vmatprep.subr.mxu0 0.0
  %2702 = vmatpush2.msra.mxu0 0.0
  %2703 = vmatprep.subr.mxu0 0.0
  %2704 = vmatpush2.msra.mxu0 0.0
  %2705 = vmatprep.subr.mxu0 0.0
  %2706 = vmatpush2.msra.mxu0 0.0
  %2707 = vmatprep.subr.mxu0 0.0
  %2708 = vmatpush2.msra.mxu0 0.0
  %2709 = vmatprep.subr.mxu0 0.0
  %2710 = vmatpush2.msra.mxu0 0.0
  %2711 = vmatprep.subr.mxu0 0.0
  %2712 = vmatpush2.msra.mxu0 0.0
  %2713 = vmatprep.subr.mxu0 0.0
  %2714 = vmatpush2.msra.mxu0 0.0
  %2715 = vmatprep.subr.mxu0 0.0
  %2716 = vmatpush2.msra.mxu0 0.0
  %2717 = vmatprep.subr.mxu0 0.0
  %2718 = vmatpush2.msra.mxu0 0.0
  %2719 = vmatprep.subr.mxu0 0.0
  %2720 = vmatpush2.msra.mxu0 0.0
  %2721 = vmatprep.subr.mxu0 0.0
  %2722 = vmatpush2.msra.mxu0 0.0
  %2723 = vmatprep.subr.mxu0 0.0
  %2724 = vmatpush2.msra.mxu0 0.0
  %2725 = vmatprep.subr.mxu0 0.0
  %2726 = vmatpush2.msra.mxu0 0.0
  %2727 = vmatprep.mubr.f32.mxu0 0.0
  %2728 = vmatmul.mubr.f32.gmra.mxu0 %v2658
  %v2729 = vpop.f32.mrf.mxu0
  %v2730 = vadd.f32 %v2655, %v2729
  %v2731 = vpop.f32.mrf.mxu0
  %2732 = vmatprep.mubr.f32.mxu0 0.0
  %2733 = vmatmul.mubr.f32.gmra.mxu0 %v2661
  %v2734 = vpop.f32.mrf.mxu0
  %v2735 = vadd.f32 %v2655, %v2734
  %v2736 = vpop.f32.mrf.mxu0
  %2737 = vdwg.mxu0
  %v2738 = vadd.f32 %v2730, %v2544
  %v2739 = vadd.f32 %v2735, %v2545
  %v2740 = vsel %vm466, %v2738, 0.0
  %2741 = vadd.xlane.f32.xlu0 %v2740
  %v2742 = vpop.xlane.xlu0 %2741
  %v2743 = vsel %vm466, %v2739, 0.0
  %2744 = vadd.xlane.f32.xlu0 %v2743
  %v2745 = vpop.xlane.xlu0 %2744
  %v2746 = vmul.f32 %v2742, %v473
  %v2747 = vmul.f32 %v2745, %v473
  %v2748 = vsub.f32 %v2738, %v2746
  %v2749 = vsub.f32 %v2739, %v2747
  %v2750 = vmul.f32 %v2748, %v2748
  %v2751 = vmul.f32 %v2749, %v2749
  %v2752 = vsel %vm466, %v2750, 0.0
  %2753 = vadd.xlane.f32.xlu0 %v2752
  %v2754 = vpop.xlane.xlu0 %2753
  %v2755 = vsel %vm466, %v2751, 0.0
  %2756 = vadd.xlane.f32.xlu0 %v2755
  %v2757 = vpop.xlane.xlu0 %2756
  %v2758 = vmul.f32 %v2754, %v473
  %v2759 = vmul.f32 %v2757, %v473
  %v2760 = vadd.f32 %v2758, 1e-05
  %v2761 = vadd.f32 %v2759, 1e-05
  %v2762 = vrsqrt.pop %v2760
  %v2763 = vrsqrt.pop %v2761
  %v2764 = vmul.f32 %v2748, %v2762
  %v2765 = vmul.f32 %v2749, %v2763
  %v2767 = vlaneseq
  %v2768 = vshrl.u32 %v2767, 7
  %v2769 = vsub.s32 0, %v2768
  %v2770 = vrot.slane %v244, %v2769
  %v2772 = vmul.f32 %v2764, %v2770
  %v2773 = vmul.f32 %v2765, %v2770
  %v2775 = vlaneseq
  %v2776 = vshrl.u32 %v2775, 7
  %v2777 = vsub.s32 0, %v2776
  %v2778 = vrot.slane %v245, %v2777
  %v2780 = vadd.f32 %v2772, %v2778
  %v2781 = vadd.f32 %v2773, %v2778
  %v2783 = vrot.slane %v2781, 7
  %vm2785 = vcmask 1040384
  %v2786 = vsel %vm2785, %v2780, %v2783
  %v2788 = vlaneseq
  %v2789 = vshrl.u32 %v2788, 7
  %v2790 = vsub.s32 0, %v2789
  %v2791 = vrot.slane %v250, %v2790
  %v2794 = vsel %vm466, %v2786, 0
  %2796 = vmatprep.subr.mxu0 0.0
  %2797 = vmatpush1.msra.mxu0 0.0
  %2798 = vmatprep.subr.mxu0 0.0
  %2799 = vmatpush1.msra.mxu0 0.0
  %2800 = vmatprep.subr.mxu0 0.0
  %2801 = vmatpush1.msra.mxu0 0.0
  %2802 = vmatprep.subr.mxu0 0.0
  %2803 = vmatpush1.msra.mxu0 0.0
  %2804 = vmatprep.subr.mxu0 0.0
  %2805 = vmatpush1.msra.mxu0 0.0
  %2806 = vmatprep.subr.mxu0 0.0
  %2807 = vmatpush1.msra.mxu0 0.0
  %2808 = vmatprep.subr.mxu0 0.0
  %2809 = vmatpush1.msra.mxu0 0.0
  %2810 = vmatprep.subr.mxu0 0.0
  %2811 = vmatpush1.msra.mxu0 0.0
  %2812 = vmatprep.subr.mxu0 0.0
  %2813 = vmatpush1.msra.mxu0 0.0
  %2814 = vmatprep.subr.mxu0 0.0
  %2815 = vmatpush1.msra.mxu0 0.0
  %2816 = vmatprep.subr.mxu0 0.0
  %2817 = vmatpush1.msra.mxu0 0.0
  %2818 = vmatprep.subr.mxu0 0.0
  %2819 = vmatpush1.msra.mxu0 0.0
  %2820 = vmatprep.subr.mxu0 0.0
  %2821 = vmatpush1.msra.mxu0 %v249
  %2822 = vmatprep.subr.mxu0 0.0
  %2823 = vmatpush1.msra.mxu0 %v248
  %2824 = vmatprep.subr.mxu0 0.0
  %2825 = vmatpush1.msra.mxu0 %v247
  %2826 = vmatprep.subr.mxu0 0.0
  %2827 = vmatpush1.msra.mxu0 %v246
  %2828 = vmatprep.subr.mxu0 0.0
  %2829 = vmatpush2.msra.mxu0 0.0
  %2830 = vmatprep.subr.mxu0 0.0
  %2831 = vmatpush2.msra.mxu0 0.0
  %2832 = vmatprep.subr.mxu0 0.0
  %2833 = vmatpush2.msra.mxu0 0.0
  %2834 = vmatprep.subr.mxu0 0.0
  %2835 = vmatpush2.msra.mxu0 0.0
  %2836 = vmatprep.subr.mxu0 0.0
  %2837 = vmatpush2.msra.mxu0 0.0
  %2838 = vmatprep.subr.mxu0 0.0
  %2839 = vmatpush2.msra.mxu0 0.0
  %2840 = vmatprep.subr.mxu0 0.0
  %2841 = vmatpush2.msra.mxu0 0.0
  %2842 = vmatprep.subr.mxu0 0.0
  %2843 = vmatpush2.msra.mxu0 0.0
  %2844 = vmatprep.subr.mxu0 0.0
  %2845 = vmatpush2.msra.mxu0 0.0
  %2846 = vmatprep.subr.mxu0 0.0
  %2847 = vmatpush2.msra.mxu0 0.0
  %2848 = vmatprep.subr.mxu0 0.0
  %2849 = vmatpush2.msra.mxu0 0.0
  %2850 = vmatprep.subr.mxu0 0.0
  %2851 = vmatpush2.msra.mxu0 0.0
  %2852 = vmatprep.subr.mxu0 0.0
  %2853 = vmatpush2.msra.mxu0 0.0
  %2854 = vmatprep.subr.mxu0 0.0
  %2855 = vmatpush2.msra.mxu0 0.0
  %2856 = vmatprep.subr.mxu0 0.0
  %2857 = vmatpush2.msra.mxu0 0.0
  %2858 = vmatprep.subr.mxu0 0.0
  %2859 = vmatpush2.msra.mxu0 0.0
  %2860 = vmatprep.mubr.f32.mxu0 0.0
  %2861 = vmatmul.mubr.f32.gmra.mxu0 %v2794
  %v2862 = vpop.f32.mrf.mxu0
  %v2863 = vadd.f32 %v2791, %v2862
  %v2864 = vpop.f32.mrf.mxu0
  %2865 = vdwg.mxu0
  %v2866 = vtanh.pop %v2863
  %v2868 = vlaneseq
  %v2869 = vshrl.u32 %v2868, 7
  %v2870 = vsub.s32 0, %v2869
  %v2871 = vrot.slane %v255, %v2870
  %v2874 = vsel %vm466, %v2866, 0
  %2876 = vmatprep.subr.mxu0 0.0
  %2877 = vmatpush1.msra.mxu0 0.0
  %2878 = vmatprep.subr.mxu0 0.0
  %2879 = vmatpush1.msra.mxu0 0.0
  %2880 = vmatprep.subr.mxu0 0.0
  %2881 = vmatpush1.msra.mxu0 0.0
  %2882 = vmatprep.subr.mxu0 0.0
  %2883 = vmatpush1.msra.mxu0 0.0
  %2884 = vmatprep.subr.mxu0 0.0
  %2885 = vmatpush1.msra.mxu0 0.0
  %2886 = vmatprep.subr.mxu0 0.0
  %2887 = vmatpush1.msra.mxu0 0.0
  %2888 = vmatprep.subr.mxu0 0.0
  %2889 = vmatpush1.msra.mxu0 0.0
  %2890 = vmatprep.subr.mxu0 0.0
  %2891 = vmatpush1.msra.mxu0 0.0
  %2892 = vmatprep.subr.mxu0 0.0
  %2893 = vmatpush1.msra.mxu0 0.0
  %2894 = vmatprep.subr.mxu0 0.0
  %2895 = vmatpush1.msra.mxu0 0.0
  %2896 = vmatprep.subr.mxu0 0.0
  %2897 = vmatpush1.msra.mxu0 0.0
  %2898 = vmatprep.subr.mxu0 0.0
  %2899 = vmatpush1.msra.mxu0 0.0
  %2900 = vmatprep.subr.mxu0 0.0
  %2901 = vmatpush1.msra.mxu0 %v254
  %2902 = vmatprep.subr.mxu0 0.0
  %2903 = vmatpush1.msra.mxu0 %v253
  %2904 = vmatprep.subr.mxu0 0.0
  %2905 = vmatpush1.msra.mxu0 %v252
  %2906 = vmatprep.subr.mxu0 0.0
  %2907 = vmatpush1.msra.mxu0 %v251
  %2908 = vmatprep.subr.mxu0 0.0
  %2909 = vmatpush2.msra.mxu0 0.0
  %2910 = vmatprep.subr.mxu0 0.0
  %2911 = vmatpush2.msra.mxu0 0.0
  %2912 = vmatprep.subr.mxu0 0.0
  %2913 = vmatpush2.msra.mxu0 0.0
  %2914 = vmatprep.subr.mxu0 0.0
  %2915 = vmatpush2.msra.mxu0 0.0
  %2916 = vmatprep.subr.mxu0 0.0
  %2917 = vmatpush2.msra.mxu0 0.0
  %2918 = vmatprep.subr.mxu0 0.0
  %2919 = vmatpush2.msra.mxu0 0.0
  %2920 = vmatprep.subr.mxu0 0.0
  %2921 = vmatpush2.msra.mxu0 0.0
  %2922 = vmatprep.subr.mxu0 0.0
  %2923 = vmatpush2.msra.mxu0 0.0
  %2924 = vmatprep.subr.mxu0 0.0
  %2925 = vmatpush2.msra.mxu0 0.0
  %2926 = vmatprep.subr.mxu0 0.0
  %2927 = vmatpush2.msra.mxu0 0.0
  %2928 = vmatprep.subr.mxu0 0.0
  %2929 = vmatpush2.msra.mxu0 0.0
  %2930 = vmatprep.subr.mxu0 0.0
  %2931 = vmatpush2.msra.mxu0 0.0
  %2932 = vmatprep.subr.mxu0 0.0
  %2933 = vmatpush2.msra.mxu0 0.0
  %2934 = vmatprep.subr.mxu0 0.0
  %2935 = vmatpush2.msra.mxu0 0.0
  %2936 = vmatprep.subr.mxu0 0.0
  %2937 = vmatpush2.msra.mxu0 0.0
  %2938 = vmatprep.subr.mxu0 0.0
  %2939 = vmatpush2.msra.mxu0 0.0
  %2940 = vmatprep.mubr.f32.mxu0 0.0
  %2941 = vmatmul.mubr.f32.gmra.mxu0 %v2874
  %v2942 = vpop.f32.mrf.mxu0
  %v2943 = vadd.f32 %v2871, %v2942
  %v2944 = vpop.f32.mrf.mxu0
  %2945 = vdwg.mxu0
  %v2947 = vlaneseq
  %v2948 = vshrl.u32 %v2947, 7
  %v2949 = vsub.s32 0, %v2948
  %v2950 = vrot.slane %v259, %v2949
  %vm2952 = vcmask 162816
  %v2954 = vsel %vm2952, %v2943, 0
  %vm2956 = vcmask 1043456
  %v2958 = vsel %vm2956, %v258, 0
  %2960 = vmatprep.subr.mxu0 0.0
  %2961 = vmatpush1.msra.mxu0 0.0
  %2962 = vmatprep.subr.mxu0 0.0
  %2963 = vmatpush1.msra.mxu0 0.0
  %2964 = vmatprep.subr.mxu0 0.0
  %2965 = vmatpush1.msra.mxu0 0.0
  %2966 = vmatprep.subr.mxu0 0.0
  %2967 = vmatpush1.msra.mxu0 0.0
  %2968 = vmatprep.subr.mxu0 0.0
  %2969 = vmatpush1.msra.mxu0 0.0
  %2970 = vmatprep.subr.mxu0 0.0
  %2971 = vmatpush1.msra.mxu0 0.0
  %2972 = vmatprep.subr.mxu0 0.0
  %2973 = vmatpush1.msra.mxu0 0.0
  %2974 = vmatprep.subr.mxu0 0.0
  %2975 = vmatpush1.msra.mxu0 0.0
  %2976 = vmatprep.subr.mxu0 0.0
  %2977 = vmatpush1.msra.mxu0 0.0
  %2978 = vmatprep.subr.mxu0 0.0
  %2979 = vmatpush1.msra.mxu0 0.0
  %2980 = vmatprep.subr.mxu0 0.0
  %2981 = vmatpush1.msra.mxu0 0.0
  %2982 = vmatprep.subr.mxu0 0.0
  %2983 = vmatpush1.msra.mxu0 0.0
  %2984 = vmatprep.subr.mxu0 0.0
  %2985 = vmatpush1.msra.mxu0 0.0
  %2986 = vmatprep.subr.mxu0 0.0
  %2987 = vmatpush1.msra.mxu0 %v2958
  %2988 = vmatprep.subr.mxu0 0.0
  %2989 = vmatpush1.msra.mxu0 %v257
  %2990 = vmatprep.subr.mxu0 0.0
  %2991 = vmatpush1.msra.mxu0 %v256
  %2992 = vmatprep.subr.mxu0 0.0
  %2993 = vmatpush2.msra.mxu0 0.0
  %2994 = vmatprep.subr.mxu0 0.0
  %2995 = vmatpush2.msra.mxu0 0.0
  %2996 = vmatprep.subr.mxu0 0.0
  %2997 = vmatpush2.msra.mxu0 0.0
  %2998 = vmatprep.subr.mxu0 0.0
  %2999 = vmatpush2.msra.mxu0 0.0
  %3000 = vmatprep.subr.mxu0 0.0
  %3001 = vmatpush2.msra.mxu0 0.0
  %3002 = vmatprep.subr.mxu0 0.0
  %3003 = vmatpush2.msra.mxu0 0.0
  %3004 = vmatprep.subr.mxu0 0.0
  %3005 = vmatpush2.msra.mxu0 0.0
  %3006 = vmatprep.subr.mxu0 0.0
  %3007 = vmatpush2.msra.mxu0 0.0
  %3008 = vmatprep.subr.mxu0 0.0
  %3009 = vmatpush2.msra.mxu0 0.0
  %3010 = vmatprep.subr.mxu0 0.0
  %3011 = vmatpush2.msra.mxu0 0.0
  %3012 = vmatprep.subr.mxu0 0.0
  %3013 = vmatpush2.msra.mxu0 0.0
  %3014 = vmatprep.subr.mxu0 0.0
  %3015 = vmatpush2.msra.mxu0 0.0
  %3016 = vmatprep.subr.mxu0 0.0
  %3017 = vmatpush2.msra.mxu0 0.0
  %3018 = vmatprep.subr.mxu0 0.0
  %3019 = vmatpush2.msra.mxu0 0.0
  %3020 = vmatprep.subr.mxu0 0.0
  %3021 = vmatpush2.msra.mxu0 0.0
  %3022 = vmatprep.subr.mxu0 0.0
  %3023 = vmatpush2.msra.mxu0 0.0
  %3024 = vmatprep.mubr.f32.mxu0 0.0
  %3025 = vmatmul.mubr.f32.gmra.mxu0 %v2954
  %v3026 = vpop.f32.mrf.mxu0
  %v3027 = vadd.f32 %v2950, %v3026
  %v3028 = vpop.f32.mrf.mxu0
  %3029 = vdwg.mxu0
  %v3030 = vmax.f32 %v3027, 0.0
  %v3032 = vlaneseq
  %v3033 = vshrl.u32 %v3032, 7
  %v3034 = vsub.s32 0, %v3033
  %v3035 = vrot.slane %v263, %v3034
  %v3038 = vsel %vm2952, %v3030, 0
  %v3041 = vsel %vm2956, %v262, 0
  %3043 = vmatprep.subr.mxu0 0.0
  %3044 = vmatpush1.msra.mxu0 0.0
  %3045 = vmatprep.subr.mxu0 0.0
  %3046 = vmatpush1.msra.mxu0 0.0
  %3047 = vmatprep.subr.mxu0 0.0
  %3048 = vmatpush1.msra.mxu0 0.0
  %3049 = vmatprep.subr.mxu0 0.0
  %3050 = vmatpush1.msra.mxu0 0.0
  %3051 = vmatprep.subr.mxu0 0.0
  %3052 = vmatpush1.msra.mxu0 0.0
  %3053 = vmatprep.subr.mxu0 0.0
  %3054 = vmatpush1.msra.mxu0 0.0
  %3055 = vmatprep.subr.mxu0 0.0
  %3056 = vmatpush1.msra.mxu0 0.0
  %3057 = vmatprep.subr.mxu0 0.0
  %3058 = vmatpush1.msra.mxu0 0.0
  %3059 = vmatprep.subr.mxu0 0.0
  %3060 = vmatpush1.msra.mxu0 0.0
  %3061 = vmatprep.subr.mxu0 0.0
  %3062 = vmatpush1.msra.mxu0 0.0
  %3063 = vmatprep.subr.mxu0 0.0
  %3064 = vmatpush1.msra.mxu0 0.0
  %3065 = vmatprep.subr.mxu0 0.0
  %3066 = vmatpush1.msra.mxu0 0.0
  %3067 = vmatprep.subr.mxu0 0.0
  %3068 = vmatpush1.msra.mxu0 0.0
  %3069 = vmatprep.subr.mxu0 0.0
  %3070 = vmatpush1.msra.mxu0 %v3041
  %3071 = vmatprep.subr.mxu0 0.0
  %3072 = vmatpush1.msra.mxu0 %v261
  %3073 = vmatprep.subr.mxu0 0.0
  %3074 = vmatpush1.msra.mxu0 %v260
  %3075 = vmatprep.subr.mxu0 0.0
  %3076 = vmatpush2.msra.mxu0 0.0
  %3077 = vmatprep.subr.mxu0 0.0
  %3078 = vmatpush2.msra.mxu0 0.0
  %3079 = vmatprep.subr.mxu0 0.0
  %3080 = vmatpush2.msra.mxu0 0.0
  %3081 = vmatprep.subr.mxu0 0.0
  %3082 = vmatpush2.msra.mxu0 0.0
  %3083 = vmatprep.subr.mxu0 0.0
  %3084 = vmatpush2.msra.mxu0 0.0
  %3085 = vmatprep.subr.mxu0 0.0
  %3086 = vmatpush2.msra.mxu0 0.0
  %3087 = vmatprep.subr.mxu0 0.0
  %3088 = vmatpush2.msra.mxu0 0.0
  %3089 = vmatprep.subr.mxu0 0.0
  %3090 = vmatpush2.msra.mxu0 0.0
  %3091 = vmatprep.subr.mxu0 0.0
  %3092 = vmatpush2.msra.mxu0 0.0
  %3093 = vmatprep.subr.mxu0 0.0
  %3094 = vmatpush2.msra.mxu0 0.0
  %3095 = vmatprep.subr.mxu0 0.0
  %3096 = vmatpush2.msra.mxu0 0.0
  %3097 = vmatprep.subr.mxu0 0.0
  %3098 = vmatpush2.msra.mxu0 0.0
  %3099 = vmatprep.subr.mxu0 0.0
  %3100 = vmatpush2.msra.mxu0 0.0
  %3101 = vmatprep.subr.mxu0 0.0
  %3102 = vmatpush2.msra.mxu0 0.0
  %3103 = vmatprep.subr.mxu0 0.0
  %3104 = vmatpush2.msra.mxu0 0.0
  %3105 = vmatprep.subr.mxu0 0.0
  %3106 = vmatpush2.msra.mxu0 0.0
  %3107 = vmatprep.mubr.f32.mxu0 0.0
  %3108 = vmatmul.mubr.f32.gmra.mxu0 %v3038
  %v3109 = vpop.f32.mrf.mxu0
  %v3110 = vadd.f32 %v3035, %v3109
  %v3111 = vpop.f32.mrf.mxu0
  %3112 = vdwg.mxu0
  %v3113 = vxor.u32 %v3110, 2147483648
  %v3114 = vmul.f32 %v3113, 1.442695
  %v3115 = vpow.pop %v3114
  %v3116 = vadd.f32 %v3115, 1.0
  %v3117 = vrcp.pop %v3116
  %v3118 = vmul.f32 1.0, %v3117
  %vm3119 = vcmask 1024
  %3120 = vst.msk [vmem:[%s83] sm:$0x3] %vm3119, %v3118
  // Predicated region
  $region166: #{tpu_custom_call.1} parent=0 // pred_check
    _
  $region167: #{tpu_custom_call.1} parent=0 // pred_check_branch
    %3122 = sbr.rel (0) target = $region169
  $region168: #{tpu_custom_call.1} parent=0 // pred_region
    _
  $region169: #{tpu_custom_call.1} parent=0 // pred_fallthru
    _
  // Predicated region
  $region170: #{tpu_custom_call.1} parent=0 // pred_check
    _
  $region171: #{tpu_custom_call.1} parent=0 // pred_check_branch
    %3124 = sbr.rel (0) target = $region173
  $region172: #{tpu_custom_call.1} parent=0 // pred_region
    _
  $region173: #{tpu_custom_call.1} parent=0 // pred_fallthru
    _

</llo_original>
